<compile_context>
chip_gen: v6e
topology: v6e:2x2x1
jax: 0.10.0
libtpu: 0.0.40
codegen_flags: <defaults>
</compile_context>

<pallas_src>
import functools

import jax
import jax.numpy as jnp
from jax.experimental import pallas as pl
from jax.experimental.pallas import tpu as pltpu

NUM_STAGE = 2


# --------------------------------------------------------------------------
# Kernel
# --------------------------------------------------------------------------
def _mlp_kernel(x_ref, w1_ref, b_ref, sw_ref, w2_ref, b2_ref, out_ref):
    """One batch-tile of the full forward pass.

    x_ref   : (TB, IN)        f32
    w1_ref  : (IN, L)         bf16   (BN1 folded in)
    b_ref   : (1+2*NS, 1, L)  f32    (BN-folded biases: input layer + stages)
    sw_ref  : (2*NS, L, L)    bf16   (BN folded in)
    w2_ref  : (L, OUT_PAD)    bf16   (zero-padded to 128 lanes)
    b2_ref  : (1, OUT_PAD)    f32
    out_ref : (TB, OUT_PAD)   f32
    """
    # Input projection (+folded BN) + ReLU.  Dropout == identity at eval.
    xb = x_ref[...].astype(jnp.bfloat16)
    y = jnp.dot(xb, w1_ref[...], preferred_element_type=jnp.float32)
    y = jnp.maximum(y + b_ref[0], 0.0)

    # Residual linear stages.
    for st in range(NUM_STAGE):
        t = y
        for j in range(2):
            idx = 2 * st + j  # static index -> cheap VMEM slice
            tb = t.astype(jnp.bfloat16)
            t = jnp.dot(tb, sw_ref[idx], preferred_element_type=jnp.float32)
            t = jnp.maximum(t + b_ref[1 + idx], 0.0)
        y = y + t

    # Output projection (lane-dense padded store).
    yb = y.astype(jnp.bfloat16)
    out = jnp.dot(yb, w2_ref[...], preferred_element_type=jnp.float32)
    out_ref[...] = out + b2_ref[...]


# --------------------------------------------------------------------------
# Per-generation tuning helpers
# --------------------------------------------------------------------------
def _device_kind():
    try:
        return jax.devices()[0].device_kind.lower()
    except Exception:
        return ""


def _pick_tile_b(batch, requested=None):
    """Batch tile: multiple of 16 (bf16 vreg packing); sized per MXU width."""
    kind = _device_kind()
    if requested is None:
        # v5e MXU is 4x128x128 -> M=128 already a full systolic pass;
        # v6e/v7x MXU is 2x256x256 -> prefer M=256.
        tb = 128 if "v5" in kind else 256
    else:
        tb = int(requested)
    tb = max(16, (tb // 16) * 16)
    # v7x: 2 TensorCores per chip -> make sure the batch-parallel grid has at
    # least 2 steps so both cores get work.
    if "v7" in kind or "7x" in kind:
        while tb > 16 and -(-batch // tb) < 2:
            tb = max(16, ((tb // 2) // 16) * 16)
    return tb


def _vmem_limit_bytes(in_size, L, out_pad, n_bias, n_sw, tile_b, weight_bufs):
    """Sized VMEM budget: weights (x buffer count) + pipelined act tiles
    + f32 intermediates + headroom, capped below physical VMEM."""
    bf16, f32 = 2, 4

    def rpad(n, m):
        return -(-n // m) * m

    weights = (rpad(in_size, 16) * L * bf16          # w1
               + n_bias * 8 * L * f32                # biases (sublane-padded)
               + n_sw * L * L * bf16                 # stage weights
               + L * rpad(out_pad, 128) * bf16       # w2
               + 8 * rpad(out_pad, 128) * f32)       # b2
    weights *= weight_bufs
    acts = 2 * tile_b * (rpad(in_size, 128) + rpad(out_pad, 128)) * f32
    scratch = 6 * tile_b * L * f32                   # f32 intermediates (y, t)
    total = weights + acts + scratch + 16 * 1024 * 1024  # headroom
    kind = _device_kind()
    cap = (56 if ("v7" in kind or "7x" in kind) else 100) * 1024 * 1024
    return int(min(total, cap))


# --------------------------------------------------------------------------
# pallas_call wrapper
# --------------------------------------------------------------------------
@functools.partial(
    jax.jit,
    static_argnames=("tile_b", "single_buffer_weights", "vmem_limit_bytes"))
def _forward_padded(x, w1, biases, stage_w, w2, b2, *,
                    tile_b, single_buffer_weights, vmem_limit_bytes):
    """x: (B_pad, in_size) f32 with B_pad % tile_b == 0.
    Returns (B_pad, out_pad) f32."""
    b_pad, in_size = x.shape
    L = w1.shape[1]
    out_pad = w2.shape[1]
    n_bias = biases.shape[0]
    n_sw = stage_w.shape[0]

    # Grid-invariant weights: constant block index -> DMA'd once, VMEM-resident.
    # Single-buffer them (nothing to pipeline) when supported.
    wkw = {"pipeline_mode": pl.Buffered(1)} if single_buffer_weights else {}
    weight_specs = [
        pl.BlockSpec((in_size, L), lambda i: (0, 0), **wkw),
        pl.BlockSpec((n_bias, 1, L), lambda i: (0, 0, 0), **wkw),
        pl.BlockSpec((n_sw, L, L), lambda i: (0, 0, 0), **wkw),
        pl.BlockSpec((L, out_pad), lambda i: (0, 0), **wkw),
        pl.BlockSpec((1, out_pad), lambda i: (0, 0), **wkw),
    ]

    grid = (b_pad // tile_b,)
    return pl.pallas_call(
        _mlp_kernel,
        out_shape=jax.ShapeDtypeStruct((b_pad, out_pad), jnp.float32),
        grid=grid,
        in_specs=[pl.BlockSpec((tile_b, in_size), lambda i: (i, 0))]
                 + weight_specs,
        out_specs=pl.BlockSpec((tile_b, out_pad), lambda i: (i, 0)),
        compiler_params=pltpu.CompilerParams(
            dimension_semantics=("parallel",),
            vmem_limit_bytes=vmem_limit_bytes,
        ),
    )(x, w1, biases, stage_w, w2, b2)


def model_2d_to_3d_pose(x, params, output_size, tile_b=None):
    """x: (B, input_size) f32.  Returns (B, output_size) f32."""
    B, in_size = x.shape
    L = params["w1"].shape[1]
    out_pad = params["w2"].shape[1]
    n_bias = params["biases"].shape[0]
    n_sw = params["stage_w"].shape[0]

    tb = _pick_tile_b(B, tile_b)
    b_pad = -(-B // tb) * tb
    x_p = jnp.pad(x, ((0, b_pad - B), (0, 0))) if b_pad != B else x

    args = (x_p, params["w1"], params["biases"], params["stage_w"],
            params["w2"], params["b2"])
    try:
        out = _forward_padded(
            *args, tile_b=tb, single_buffer_weights=True,
            vmem_limit_bytes=_vmem_limit_bytes(in_size, L, out_pad, n_bias,
                                               n_sw, tb, weight_bufs=1))
        out = jax.block_until_ready(out)
    except Exception:
        # Fallback: this jax build does not honor Buffered(1) on pallas_call
        # inputs -> use default double buffering (and size VMEM for it).
        out = _forward_padded(
            *args, tile_b=tb, single_buffer_weights=False,
            vmem_limit_bytes=_vmem_limit_bytes(in_size, L, out_pad, n_bias,
                                               n_sw, tb, weight_bufs=2))
        out = jax.block_until_ready(out)

    return out[:B, :output_size]


# --------------------------------------------------------------------------
# Parameters (BN folded) + pure-JAX reference
# --------------------------------------------------------------------------
def make_params(key, linear_size=128, input_size=32, output_size=48,
                num_stage=NUM_STAGE, eps=1e-5):
    """Deterministic synthetic weights with BN folded into the linears.

    Weights are bf16 (halves HBM/VMEM traffic); biases stay f32 (added after
    the f32 MXU accumulation).  The output projection is zero-padded to a
    lane-dense 128-wide last dim.
    """
    L = linear_size
    out_pad = ((output_size + 127) // 128) * 128

    def nxt():
        nonlocal key
        key, sub = jax.random.split(key)
        return sub

    def bn_fold():
        gamma = jax.random.uniform(nxt(), (L,), jnp.float32, 0.5, 1.5)
        beta = jax.random.normal(nxt(), (L,), jnp.float32) * 0.1
        mean = jax.random.normal(nxt(), (L,), jnp.float32) * 0.1
        var = jax.random.uniform(nxt(), (L,), jnp.float32, 0.5, 1.5)
        scale = gamma / jnp.sqrt(var + eps)
        shift = beta - mean * scale
        return scale, shift

    p = {}

    # Input layer + BN1, folded: y = x @ (W*scale) + (b*scale + shift)
    w1 = jax.random.normal(nxt(), (input_size, L), jnp.float32) * 0.05
    b1 = jax.random.normal(nxt(), (L,), jnp.float32) * 0.05
    s1, sh1 = bn_fold()
    p["w1"] = (w1 * s1[None, :]).astype(jnp.bfloat16)
    biases = [(b1 * s1 + sh1).reshape(1, L)]

    # Residual stages (2 linears + 2 BNs each), folded the same way.
    sw = []
    for _ in range(num_stage):
        for _ in range(2):
            w = jax.random.normal(nxt(), (L, L), jnp.float32) * 0.05
            b = jax.random.normal(nxt(), (L,), jnp.float32) * 0.05
            sc, sh = bn_fold()
            sw.append((w * sc[None, :]).astype(jnp.bfloat16))
            biases.append((b * sc + sh).reshape(1, L))
    p["stage_w"] = jnp.stack(sw)                      # (2*NS, L, L) bf16
    p["biases"] = jnp.stack(biases)                   # (1+2*NS, 1, L) f32

    # Output projection, zero-padded to a lane-dense 128-wide last dim.
    w2 = jax.random.normal(nxt(), (L, output_size), jnp.float32) * 0.05
    b2 = jax.random.normal(nxt(), (output_size,), jnp.float32) * 0.05
    w2_pad = jnp.zeros((L, out_pad), jnp.float32).at[:, :output_size].set(w2)
    b2_pad = jnp.zeros((1, out_pad), jnp.float32).at[:, :output_size].set(b2)
    p["w2"] = w2_pad.astype(jnp.bfloat16)
    p["b2"] = b2_pad
    return p


def reference_forward(x, p, output_size):
    """Pure-JAX reference with identical numerics (bf16 weights/acts, f32 acc)."""
    def mm(a, w):
        return jnp.dot(a.astype(jnp.bfloat16), w,
                       preferred_element_type=jnp.float32)

    y = jnp.maximum(mm(x, p["w1"]) + p["biases"][0], 0.0)
    for st in range(NUM_STAGE):
        t = y
        for j in range(2):
            idx = 2 * st + j
            t = jnp.maximum(mm(t, p["stage_w"][idx]) + p["biases"][1 + idx], 0.0)
        y = y + t
    out = mm(y, p["w2"]) + p["b2"]
    return out[:, :output_size]


# --------------------------------------------------------------------------
# Demo / self-test
# --------------------------------------------------------------------------
if __name__ == "__main__":
    key = jax.random.PRNGKey(0)
    k_param, k_x = jax.random.split(key)

    LINEAR_SIZE = 128      # small stand-in for the default 1024
    B = 300                # pads to >= 2 batch tiles on every generation
    INPUT_SIZE = 16 * 2    # 32  (16 joints x 2D)
    OUTPUT_SIZE = 16 * 3   # 48  (16 joints x 3D)

    params = make_params(k_param, linear_size=LINEAR_SIZE,
                         input_size=INPUT_SIZE, output_size=OUTPUT_SIZE)
    x = jax.random.normal(k_x, (B, INPUT_SIZE), jnp.float32)

    out = model_2d_to_3d_pose(x, params, output_size=OUTPUT_SIZE)
    out = jax.block_until_ready(out)

    ref = reference_forward(x, params, OUTPUT_SIZE)
    assert out.shape == (B, OUTPUT_SIZE), out.shape
    assert jnp.allclose(out, ref, atol=2e-3, rtol=2e-3), "mismatch vs reference"

    print("KERNEL_OK")
</pallas_src>

<mosaic_0001>
module attributes {stable_mosaic.version = 11 : i64} {
  func.func @_mlp_kernel(%arg0: i32, %arg1: memref<256x32xf32, #tpu.memory_space<vmem>>, %arg2: memref<32x128xbf16, #tpu.memory_space<vmem>>, %arg3: memref<5x1x128xf32, #tpu.memory_space<vmem>>, %arg4: memref<4x128x128xbf16, #tpu.memory_space<vmem>>, %arg5: memref<128x128xbf16, #tpu.memory_space<vmem>>, %arg6: memref<1x128xf32, #tpu.memory_space<vmem>>, %arg7: memref<256x128xf32, #tpu.memory_space<vmem>>) attributes {dimension_semantics = [#tpu.dimension_semantics<parallel>], iteration_bounds = array<i64: 2>, scalar_prefetch = 0 : i64, scratch_operands = 0 : i64, tpu.core_type = #tpu.core_type<tc>, window_params = [{transform_indices = @transform_0, window_bounds = array<i64: 256, 32>}, {pipeline_mode = #tpu.pipeline_mode<synchronous>, transform_indices = @transform_1, window_bounds = array<i64: 32, 128>}, {pipeline_mode = #tpu.pipeline_mode<synchronous>, transform_indices = @transform_2, window_bounds = array<i64: 5, 1, 128>}, {pipeline_mode = #tpu.pipeline_mode<synchronous>, transform_indices = @transform_3, window_bounds = array<i64: 4, 128, 128>}, {pipeline_mode = #tpu.pipeline_mode<synchronous>, transform_indices = @transform_4, window_bounds = array<i64: 128, 128>}, {pipeline_mode = #tpu.pipeline_mode<synchronous>, transform_indices = @transform_5, window_bounds = array<i64: 1, 128>}, {transform_indices = @transform_6, window_bounds = array<i64: 256, 128>}]} {
    %c0 = arith.constant 0 : index
    %c0_0 = arith.constant 0 : index
    %0 = vector.load %arg1[%c0, %c0_0] : memref<256x32xf32, #tpu.memory_space<vmem>>, vector<256x32xf32>
    %1 = arith.truncf %0 : vector<256x32xf32> to vector<256x32xbf16>
    %c0_1 = arith.constant 0 : index
    %c0_2 = arith.constant 0 : index
    %2 = vector.load %arg2[%c0_1, %c0_2] : memref<32x128xbf16, #tpu.memory_space<vmem>>, vector<32x128xbf16>
    %cst = arith.constant dense<0.000000e+00> : vector<256x128xf32>
    %3 = tpu.matmul %1, %2, %cst {dimension_numbers = #tpu.dot_dimension_numbers<[1], [0], [0], [1], [0, 0, 1, 1], [], []>} : vector<256x32xbf16>, vector<32x128xbf16>, vector<256x128xf32> -> vector<256x128xf32>
    %c0_3 = arith.constant 0 : index
    %c0_4 = arith.constant 0 : index
    %c0_5 = arith.constant 0 : index
    %4 = vector.load %arg3[%c0_3, %c0_4, %c0_5] : memref<5x1x128xf32, #tpu.memory_space<vmem>>, vector<1x1x128xf32>
    %5 = vector.shape_cast %4 : vector<1x1x128xf32> to vector<1x128xf32>
    %6 = vector.broadcast %5 : vector<1x128xf32> to vector<256x128xf32>
    %7 = arith.addf %3, %6 : vector<256x128xf32>
    %cst_6 = arith.constant 0.000000e+00 : f32
    %8 = vector.broadcast %cst_6 : f32 to vector<256x128xf32>
    %9 = arith.maximumf %7, %8 : vector<256x128xf32>
    %10 = arith.truncf %9 : vector<256x128xf32> to vector<256x128xbf16>
    %c0_7 = arith.constant 0 : index
    %c0_8 = arith.constant 0 : index
    %c0_9 = arith.constant 0 : index
    %11 = vector.load %arg4[%c0_7, %c0_8, %c0_9] : memref<4x128x128xbf16, #tpu.memory_space<vmem>>, vector<1x128x128xbf16>
    %12 = vector.shape_cast %11 : vector<1x128x128xbf16> to vector<128x128xbf16>
    %cst_10 = arith.constant dense<0.000000e+00> : vector<256x128xf32>
    %13 = tpu.matmul %10, %12, %cst_10 {dimension_numbers = #tpu.dot_dimension_numbers<[1], [0], [0], [1], [0, 0, 1, 1], [], []>} : vector<256x128xbf16>, vector<128x128xbf16>, vector<256x128xf32> -> vector<256x128xf32>
    %c1 = arith.constant 1 : index
    %c0_11 = arith.constant 0 : index
    %c0_12 = arith.constant 0 : index
    %14 = vector.load %arg3[%c1, %c0_11, %c0_12] : memref<5x1x128xf32, #tpu.memory_space<vmem>>, vector<1x1x128xf32>
    %15 = vector.shape_cast %14 : vector<1x1x128xf32> to vector<1x128xf32>
    %16 = vector.broadcast %15 : vector<1x128xf32> to vector<256x128xf32>
    %17 = arith.addf %13, %16 : vector<256x128xf32>
    %cst_13 = arith.constant 0.000000e+00 : f32
    %18 = vector.broadcast %cst_13 : f32 to vector<256x128xf32>
    %19 = arith.maximumf %17, %18 : vector<256x128xf32>
    %20 = arith.truncf %19 : vector<256x128xf32> to vector<256x128xbf16>
    %c1_14 = arith.constant 1 : index
    %c0_15 = arith.constant 0 : index
    %c0_16 = arith.constant 0 : index
    %21 = vector.load %arg4[%c1_14, %c0_15, %c0_16] : memref<4x128x128xbf16, #tpu.memory_space<vmem>>, vector<1x128x128xbf16>
    %22 = vector.shape_cast %21 : vector<1x128x128xbf16> to vector<128x128xbf16>
    %cst_17 = arith.constant dense<0.000000e+00> : vector<256x128xf32>
    %23 = tpu.matmul %20, %22, %cst_17 {dimension_numbers = #tpu.dot_dimension_numbers<[1], [0], [0], [1], [0, 0, 1, 1], [], []>} : vector<256x128xbf16>, vector<128x128xbf16>, vector<256x128xf32> -> vector<256x128xf32>
    %c2 = arith.constant 2 : index
    %c0_18 = arith.constant 0 : index
    %c0_19 = arith.constant 0 : index
    %24 = vector.load %arg3[%c2, %c0_18, %c0_19] : memref<5x1x128xf32, #tpu.memory_space<vmem>>, vector<1x1x128xf32>
    %25 = vector.shape_cast %24 : vector<1x1x128xf32> to vector<1x128xf32>
    %26 = vector.broadcast %25 : vector<1x128xf32> to vector<256x128xf32>
    %27 = arith.addf %23, %26 : vector<256x128xf32>
    %cst_20 = arith.constant 0.000000e+00 : f32
    %28 = vector.broadcast %cst_20 : f32 to vector<256x128xf32>
    %29 = arith.maximumf %27, %28 : vector<256x128xf32>
    %30 = arith.addf %9, %29 : vector<256x128xf32>
    %31 = arith.truncf %30 : vector<256x128xf32> to vector<256x128xbf16>
    %c2_21 = arith.constant 2 : index
    %c0_22 = arith.constant 0 : index
    %c0_23 = arith.constant 0 : index
    %32 = vector.load %arg4[%c2_21, %c0_22, %c0_23] : memref<4x128x128xbf16, #tpu.memory_space<vmem>>, vector<1x128x128xbf16>
    %33 = vector.shape_cast %32 : vector<1x128x128xbf16> to vector<128x128xbf16>
    %cst_24 = arith.constant dense<0.000000e+00> : vector<256x128xf32>
    %34 = tpu.matmul %31, %33, %cst_24 {dimension_numbers = #tpu.dot_dimension_numbers<[1], [0], [0], [1], [0, 0, 1, 1], [], []>} : vector<256x128xbf16>, vector<128x128xbf16>, vector<256x128xf32> -> vector<256x128xf32>
    %c3 = arith.constant 3 : index
    %c0_25 = arith.constant 0 : index
    %c0_26 = arith.constant 0 : index
    %35 = vector.load %arg3[%c3, %c0_25, %c0_26] : memref<5x1x128xf32, #tpu.memory_space<vmem>>, vector<1x1x128xf32>
    %36 = vector.shape_cast %35 : vector<1x1x128xf32> to vector<1x128xf32>
    %37 = vector.broadcast %36 : vector<1x128xf32> to vector<256x128xf32>
    %38 = arith.addf %34, %37 : vector<256x128xf32>
    %cst_27 = arith.constant 0.000000e+00 : f32
    %39 = vector.broadcast %cst_27 : f32 to vector<256x128xf32>
    %40 = arith.maximumf %38, %39 : vector<256x128xf32>
    %41 = arith.truncf %40 : vector<256x128xf32> to vector<256x128xbf16>
    %c3_28 = arith.constant 3 : index
    %c0_29 = arith.constant 0 : index
    %c0_30 = arith.constant 0 : index
    %42 = vector.load %arg4[%c3_28, %c0_29, %c0_30] : memref<4x128x128xbf16, #tpu.memory_space<vmem>>, vector<1x128x128xbf16>
    %43 = vector.shape_cast %42 : vector<1x128x128xbf16> to vector<128x128xbf16>
    %cst_31 = arith.constant dense<0.000000e+00> : vector<256x128xf32>
    %44 = tpu.matmul %41, %43, %cst_31 {dimension_numbers = #tpu.dot_dimension_numbers<[1], [0], [0], [1], [0, 0, 1, 1], [], []>} : vector<256x128xbf16>, vector<128x128xbf16>, vector<256x128xf32> -> vector<256x128xf32>
    %c4 = arith.constant 4 : index
    %c0_32 = arith.constant 0 : index
    %c0_33 = arith.constant 0 : index
    %45 = vector.load %arg3[%c4, %c0_32, %c0_33] : memref<5x1x128xf32, #tpu.memory_space<vmem>>, vector<1x1x128xf32>
    %46 = vector.shape_cast %45 : vector<1x1x128xf32> to vector<1x128xf32>
    %47 = vector.broadcast %46 : vector<1x128xf32> to vector<256x128xf32>
    %48 = arith.addf %44, %47 : vector<256x128xf32>
    %cst_34 = arith.constant 0.000000e+00 : f32
    %49 = vector.broadcast %cst_34 : f32 to vector<256x128xf32>
    %50 = arith.maximumf %48, %49 : vector<256x128xf32>
    %51 = arith.addf %30, %50 : vector<256x128xf32>
    %52 = arith.truncf %51 : vector<256x128xf32> to vector<256x128xbf16>
    %c0_35 = arith.constant 0 : index
    %c0_36 = arith.constant 0 : index
    %53 = vector.load %arg5[%c0_35, %c0_36] : memref<128x128xbf16, #tpu.memory_space<vmem>>, vector<128x128xbf16>
    %cst_37 = arith.constant dense<0.000000e+00> : vector<256x128xf32>
    %54 = tpu.matmul %52, %53, %cst_37 {dimension_numbers = #tpu.dot_dimension_numbers<[1], [0], [0], [1], [0, 0, 1, 1], [], []>} : vector<256x128xbf16>, vector<128x128xbf16>, vector<256x128xf32> -> vector<256x128xf32>
    %c0_38 = arith.constant 0 : index
    %c0_39 = arith.constant 0 : index
    %55 = vector.load %arg6[%c0_38, %c0_39] : memref<1x128xf32, #tpu.memory_space<vmem>>, vector<1x128xf32>
    %56 = vector.broadcast %55 : vector<1x128xf32> to vector<256x128xf32>
    %57 = arith.addf %54, %56 : vector<256x128xf32>
    %c0_40 = arith.constant 0 : index
    %c0_41 = arith.constant 0 : index
    %58 = vector.load %arg7[%c0_40, %c0_41] : memref<256x128xf32, #tpu.memory_space<vmem>>, vector<256x128xf32>
    tpu.vector_store %arg7[%c0_40, %c0_41], %57 {strides = array<i32>} : memref<256x128xf32, #tpu.memory_space<vmem>>, vector<256x128xf32>,
    return
  }
  func.func @transform_0(%arg0: i32) -> (i32, i32) {
    %c0_i32 = arith.constant 0 : i32
    %c0_i32_0 = arith.constant 0 : i32
    return %arg0, %c0_i32 : i32, i32
  }
  func.func @transform_1(%arg0: i32) -> (i32, i32) {
    %c0_i32 = arith.constant 0 : i32
    %c0_i32_0 = arith.constant 0 : i32
    %c0_i32_1 = arith.constant 0 : i32
    return %c0_i32, %c0_i32_0 : i32, i32
  }
  func.func @transform_2(%arg0: i32) -> (i32, i32, i32) {
    %c0_i32 = arith.constant 0 : i32
    %c0_i32_0 = arith.constant 0 : i32
    %c0_i32_1 = arith.constant 0 : i32
    %c0_i32_2 = arith.constant 0 : i32
    return %c0_i32, %c0_i32_0, %c0_i32_1 : i32, i32, i32
  }
  func.func @transform_3(%arg0: i32) -> (i32, i32, i32) {
    %c0_i32 = arith.constant 0 : i32
    %c0_i32_0 = arith.constant 0 : i32
    %c0_i32_1 = arith.constant 0 : i32
    %c0_i32_2 = arith.constant 0 : i32
    return %c0_i32, %c0_i32_0, %c0_i32_1 : i32, i32, i32
  }
  func.func @transform_4(%arg0: i32) -> (i32, i32) {
    %c0_i32 = arith.constant 0 : i32
    %c0_i32_0 = arith.constant 0 : i32
    %c0_i32_1 = arith.constant 0 : i32
    return %c0_i32, %c0_i32_0 : i32, i32
  }
  func.func @transform_5(%arg0: i32) -> (i32, i32) {
    %c0_i32 = arith.constant 0 : i32
    %c0_i32_0 = arith.constant 0 : i32
    %c0_i32_1 = arith.constant 0 : i32
    return %c0_i32, %c0_i32_0 : i32, i32
  }
  func.func @transform_6(%arg0: i32) -> (i32, i32) {
    %c0_i32 = arith.constant 0 : i32
    %c0_i32_0 = arith.constant 0 : i32
    return %arg0, %c0_i32 : i32, i32
  }
}

module attributes {stable_mosaic.version = 11 : i64} {
  func.func @_mlp_kernel(%arg0: i32, %arg1: memref<256x32xf32, #tpu.memory_space<vmem>>, %arg2: memref<32x128xbf16, #tpu.memory_space<vmem>>, %arg3: memref<5x1x128xf32, #tpu.memory_space<vmem>>, %arg4: memref<4x128x128xbf16, #tpu.memory_space<vmem>>, %arg5: memref<128x128xbf16, #tpu.memory_space<vmem>>, %arg6: memref<1x128xf32, #tpu.memory_space<vmem>>, %arg7: memref<256x128xf32, #tpu.memory_space<vmem>>) attributes {dimension_semantics = [#tpu.dimension_semantics<parallel>], iteration_bounds = array<i64: 2>, scalar_prefetch = 0 : i64, scratch_operands = 0 : i64, tpu.core_type = #tpu.core_type<tc>, window_params = [{transform_indices = @transform_0, window_bounds = array<i64: 256, 32>}, {pipeline_mode = #tpu.pipeline_mode<synchronous>, transform_indices = @transform_1, window_bounds = array<i64: 32, 128>}, {pipeline_mode = #tpu.pipeline_mode<synchronous>, transform_indices = @transform_2, window_bounds = array<i64: 5, 1, 128>}, {pipeline_mode = #tpu.pipeline_mode<synchronous>, transform_indices = @transform_3, window_bounds = array<i64: 4, 128, 128>}, {pipeline_mode = #tpu.pipeline_mode<synchronous>, transform_indices = @transform_4, window_bounds = array<i64: 128, 128>}, {pipeline_mode = #tpu.pipeline_mode<synchronous>, transform_indices = @transform_5, window_bounds = array<i64: 1, 128>}, {transform_indices = @transform_6, window_bounds = array<i64: 256, 128>}]} {
    %c0 = arith.constant 0 : index
    %c0_0 = arith.constant 0 : index
    %0 = vector.load %arg1[%c0, %c0_0] : memref<256x32xf32, #tpu.memory_space<vmem>>, vector<256x32xf32>
    %1 = arith.truncf %0 : vector<256x32xf32> to vector<256x32xbf16>
    %c0_1 = arith.constant 0 : index
    %c0_2 = arith.constant 0 : index
    %2 = vector.load %arg2[%c0_1, %c0_2] : memref<32x128xbf16, #tpu.memory_space<vmem>>, vector<32x128xbf16>
    %cst = arith.constant dense<0.000000e+00> : vector<256x128xf32>
    %3 = tpu.matmul %1, %2, %cst {dimension_numbers = #tpu.dot_dimension_numbers<[1], [0], [0], [1], [0, 0, 1, 1], [], []>} : vector<256x32xbf16>, vector<32x128xbf16>, vector<256x128xf32> -> vector<256x128xf32>
    %c0_3 = arith.constant 0 : index
    %c0_4 = arith.constant 0 : index
    %c0_5 = arith.constant 0 : index
    %4 = vector.load %arg3[%c0_3, %c0_4, %c0_5] : memref<5x1x128xf32, #tpu.memory_space<vmem>>, vector<1x1x128xf32>
    %5 = vector.shape_cast %4 : vector<1x1x128xf32> to vector<1x128xf32>
    %6 = vector.broadcast %5 : vector<1x128xf32> to vector<256x128xf32>
    %7 = arith.addf %3, %6 : vector<256x128xf32>
    %cst_6 = arith.constant 0.000000e+00 : f32
    %8 = vector.broadcast %cst_6 : f32 to vector<256x128xf32>
    %9 = arith.maximumf %7, %8 : vector<256x128xf32>
    %10 = arith.truncf %9 : vector<256x128xf32> to vector<256x128xbf16>
    %c0_7 = arith.constant 0 : index
    %c0_8 = arith.constant 0 : index
    %c0_9 = arith.constant 0 : index
    %11 = vector.load %arg4[%c0_7, %c0_8, %c0_9] : memref<4x128x128xbf16, #tpu.memory_space<vmem>>, vector<1x128x128xbf16>
    %12 = vector.shape_cast %11 : vector<1x128x128xbf16> to vector<128x128xbf16>
    %cst_10 = arith.constant dense<0.000000e+00> : vector<256x128xf32>
    %13 = tpu.matmul %10, %12, %cst_10 {dimension_numbers = #tpu.dot_dimension_numbers<[1], [0], [0], [1], [0, 0, 1, 1], [], []>} : vector<256x128xbf16>, vector<128x128xbf16>, vector<256x128xf32> -> vector<256x128xf32>
    %c1 = arith.constant 1 : index
    %c0_11 = arith.constant 0 : index
    %c0_12 = arith.constant 0 : index
    %14 = vector.load %arg3[%c1, %c0_11, %c0_12] : memref<5x1x128xf32, #tpu.memory_space<vmem>>, vector<1x1x128xf32>
    %15 = vector.shape_cast %14 : vector<1x1x128xf32> to vector<1x128xf32>
    %16 = vector.broadcast %15 : vector<1x128xf32> to vector<256x128xf32>
    %17 = arith.addf %13, %16 : vector<256x128xf32>
    %cst_13 = arith.constant 0.000000e+00 : f32
    %18 = vector.broadcast %cst_13 : f32 to vector<256x128xf32>
    %19 = arith.maximumf %17, %18 : vector<256x128xf32>
    %20 = arith.truncf %19 : vector<256x128xf32> to vector<256x128xbf16>
    %c1_14 = arith.constant 1 : index
    %c0_15 = arith.constant 0 : index
    %c0_16 = arith.constant 0 : index
    %21 = vector.load %arg4[%c1_14, %c0_15, %c0_16] : memref<4x128x128xbf16, #tpu.memory_space<vmem>>, vector<1x128x128xbf16>
    %22 = vector.shape_cast %21 : vector<1x128x128xbf16> to vector<128x128xbf16>
    %cst_17 = arith.constant dense<0.000000e+00> : vector<256x128xf32>
    %23 = tpu.matmul %20, %22, %cst_17 {dimension_numbers = #tpu.dot_dimension_numbers<[1], [0], [0], [1], [0, 0, 1, 1], [], []>} : vector<256x128xbf16>, vector<128x128xbf16>, vector<256x128xf32> -> vector<256x128xf32>
    %c2 = arith.constant 2 : index
    %c0_18 = arith.constant 0 : index
    %c0_19 = arith.constant 0 : index
    %24 = vector.load %arg3[%c2, %c0_18, %c0_19] : memref<5x1x128xf32, #tpu.memory_space<vmem>>, vector<1x1x128xf32>
    %25 = vector.shape_cast %24 : vector<1x1x128xf32> to vector<1x128xf32>
    %26 = vector.broadcast %25 : vector<1x128xf32> to vector<256x128xf32>
    %27 = arith.addf %23, %26 : vector<256x128xf32>
    %cst_20 = arith.constant 0.000000e+00 : f32
    %28 = vector.broadcast %cst_20 : f32 to vector<256x128xf32>
    %29 = arith.maximumf %27, %28 : vector<256x128xf32>
    %30 = arith.addf %9, %29 : vector<256x128xf32>
    %31 = arith.truncf %30 : vector<256x128xf32> to vector<256x128xbf16>
    %c2_21 = arith.constant 2 : index
    %c0_22 = arith.constant 0 : index
    %c0_23 = arith.constant 0 : index
    %32 = vector.load %arg4[%c2_21, %c0_22, %c0_23] : memref<4x128x128xbf16, #tpu.memory_space<vmem>>, vector<1x128x128xbf16>
    %33 = vector.shape_cast %32 : vector<1x128x128xbf16> to vector<128x128xbf16>
    %cst_24 = arith.constant dense<0.000000e+00> : vector<256x128xf32>
    %34 = tpu.matmul %31, %33, %cst_24 {dimension_numbers = #tpu.dot_dimension_numbers<[1], [0], [0], [1], [0, 0, 1, 1], [], []>} : vector<256x128xbf16>, vector<128x128xbf16>, vector<256x128xf32> -> vector<256x128xf32>
    %c3 = arith.constant 3 : index
    %c0_25 = arith.constant 0 : index
    %c0_26 = arith.constant 0 : index
    %35 = vector.load %arg3[%c3, %c0_25, %c0_26] : memref<5x1x128xf32, #tpu.memory_space<vmem>>, vector<1x1x128xf32>
    %36 = vector.shape_cast %35 : vector<1x1x128xf32> to vector<1x128xf32>
    %37 = vector.broadcast %36 : vector<1x128xf32> to vector<256x128xf32>
    %38 = arith.addf %34, %37 : vector<256x128xf32>
    %cst_27 = arith.constant 0.000000e+00 : f32
    %39 = vector.broadcast %cst_27 : f32 to vector<256x128xf32>
    %40 = arith.maximumf %38, %39 : vector<256x128xf32>
    %41 = arith.truncf %40 : vector<256x128xf32> to vector<256x128xbf16>
    %c3_28 = arith.constant 3 : index
    %c0_29 = arith.constant 0 : index
    %c0_30 = arith.constant 0 : index
    %42 = vector.load %arg4[%c3_28, %c0_29, %c0_30] : memref<4x128x128xbf16, #tpu.memory_space<vmem>>, vector<1x128x128xbf16>
    %43 = vector.shape_cast %42 : vector<1x128x128xbf16> to vector<128x128xbf16>
    %cst_31 = arith.constant dense<0.000000e+00> : vector<256x128xf32>
    %44 = tpu.matmul %41, %43, %cst_31 {dimension_numbers = #tpu.dot_dimension_numbers<[1], [0], [0], [1], [0, 0, 1, 1], [], []>} : vector<256x128xbf16>, vector<128x128xbf16>, vector<256x128xf32> -> vector<256x128xf32>
    %c4 = arith.constant 4 : index
    %c0_32 = arith.constant 0 : index
    %c0_33 = arith.constant 0 : index
    %45 = vector.load %arg3[%c4, %c0_32, %c0_33] : memref<5x1x128xf32, #tpu.memory_space<vmem>>, vector<1x1x128xf32>
    %46 = vector.shape_cast %45 : vector<1x1x128xf32> to vector<1x128xf32>
    %47 = vector.broadcast %46 : vector<1x128xf32> to vector<256x128xf32>
    %48 = arith.addf %44, %47 : vector<256x128xf32>
    %cst_34 = arith.constant 0.000000e+00 : f32
    %49 = vector.broadcast %cst_34 : f32 to vector<256x128xf32>
    %50 = arith.maximumf %48, %49 : vector<256x128xf32>
    %51 = arith.addf %30, %50 : vector<256x128xf32>
    %52 = arith.truncf %51 : vector<256x128xf32> to vector<256x128xbf16>
    %c0_35 = arith.constant 0 : index
    %c0_36 = arith.constant 0 : index
    %53 = vector.load %arg5[%c0_35, %c0_36] : memref<128x128xbf16, #tpu.memory_space<vmem>>, vector<128x128xbf16>
    %cst_37 = arith.constant dense<0.000000e+00> : vector<256x128xf32>
    %54 = tpu.matmul %52, %53, %cst_37 {dimension_numbers = #tpu.dot_dimension_numbers<[1], [0], [0], [1], [0, 0, 1, 1], [], []>} : vector<256x128xbf16>, vector<128x128xbf16>, vector<256x128xf32> -> vector<256x128xf32>
    %c0_38 = arith.constant 0 : index
    %c0_39 = arith.constant 0 : index
    %55 = vector.load %arg6[%c0_38, %c0_39] : memref<1x128xf32, #tpu.memory_space<vmem>>, vector<1x128xf32>
    %56 = vector.broadcast %55 : vector<1x128xf32> to vector<256x128xf32>
    %57 = arith.addf %54, %56 : vector<256x128xf32>
    %c0_40 = arith.constant 0 : index
    %c0_41 = arith.constant 0 : index
    %58 = vector.load %arg7[%c0_40, %c0_41] : memref<256x128xf32, #tpu.memory_space<vmem>>, vector<256x128xf32>
    tpu.vector_store %arg7[%c0_40, %c0_41], %57 {strides = array<i32>} : memref<256x128xf32, #tpu.memory_space<vmem>>, vector<256x128xf32>,
    return
  }
  func.func @transform_0(%arg0: i32) -> (i32, i32) {
    %c0_i32 = arith.constant 0 : i32
    %c0_i32_0 = arith.constant 0 : i32
    return %arg0, %c0_i32 : i32, i32
  }
  func.func @transform_1(%arg0: i32) -> (i32, i32) {
    %c0_i32 = arith.constant 0 : i32
    %c0_i32_0 = arith.constant 0 : i32
    %c0_i32_1 = arith.constant 0 : i32
    return %c0_i32, %c0_i32_0 : i32, i32
  }
  func.func @transform_2(%arg0: i32) -> (i32, i32, i32) {
    %c0_i32 = arith.constant 0 : i32
    %c0_i32_0 = arith.constant 0 : i32
    %c0_i32_1 = arith.constant 0 : i32
    %c0_i32_2 = arith.constant 0 : i32
    return %c0_i32, %c0_i32_0, %c0_i32_1 : i32, i32, i32
  }
  func.func @transform_3(%arg0: i32) -> (i32, i32, i32) {
    %c0_i32 = arith.constant 0 : i32
    %c0_i32_0 = arith.constant 0 : i32
    %c0_i32_1 = arith.constant 0 : i32
    %c0_i32_2 = arith.constant 0 : i32
    return %c0_i32, %c0_i32_0, %c0_i32_1 : i32, i32, i32
  }
  func.func @transform_4(%arg0: i32) -> (i32, i32) {
    %c0_i32 = arith.constant 0 : i32
    %c0_i32_0 = arith.constant 0 : i32
    %c0_i32_1 = arith.constant 0 : i32
    return %c0_i32, %c0_i32_0 : i32, i32
  }
  func.func @transform_5(%arg0: i32) -> (i32, i32) {
    %c0_i32 = arith.constant 0 : i32
    %c0_i32_0 = arith.constant 0 : i32
    %c0_i32_1 = arith.constant 0 : i32
    return %c0_i32, %c0_i32_0 : i32, i32
  }
  func.func @transform_6(%arg0: i32) -> (i32, i32) {
    %c0_i32 = arith.constant 0 : i32
    %c0_i32_0 = arith.constant 0 : i32
    return %arg0, %c0_i32 : i32, i32
  }
}

</mosaic_0001>

<llo_original>
// kernel: _forward_padded.1
$region0: #{_forward_padded.1}
  #allocation0 [shape = 'u32[]', space=smem, size = 0x4, offset = 0x4, fixed_abs, tag = 'smem constant byte address 0x4 - core index']
  #allocation1 [shape = 'u32[144,128]{1,0:T(1,128)}', space=vmem, size = 0x12000, scoped, tag = 'internal scratch']
  %s0 = inlined_call_operand.vmem [shape: f32[512,32], index: 0, kind: input, shape index: {}]
  %s1 = inlined_call_operand.vmem [shape: bf16[32,128], index: 1, kind: input, shape index: {}]
  %s2 = inlined_call_operand.vmem [shape: f32[5,1,128], index: 2, kind: input, shape index: {}]
  %s3 = inlined_call_operand.vmem [shape: bf16[4,128,128], index: 3, kind: input, shape index: {}]
  %s4 = inlined_call_operand.vmem [shape: bf16[128,128], index: 4, kind: input, shape index: {}]
  %s5 = inlined_call_operand.vmem [shape: f32[1,128], index: 5, kind: input, shape index: {}]
  %s6 = inlined_call_operand.hbm [shape: f32[512,128], index: 6, kind: output, shape index: {}]
  %s7 = sld [smem:[#allocation0]]
  $region57: #{_forward_padded.1} parent=0
    _
  %s9 = ssub.s32 1, %s7
  %s10 = scalar_select 0, %s9, %s7
  $region1: #{_forward_padded.1} parent=0
    #allocation2 [shape = 'u8[262144]{0}', space=vmem, size = 0x40000, scoped, tag = 'output window, operand 0']
    #allocation3 [shape = 's32[2]{0}', space=sflag, size = 0x8, scoped, tag = 'scoped memory for _forward_padded.1']
    %11 = vsyncpa [#allocation3], 0
    %s12 = scalar_lea.sflag [#allocation3], 1
    %13 = vsyncpa %s12, 0
    loop: start=0, step=1, limit=4
    $region2: #{_forward_padded.1} parent=1 // loop_pre_header
      _
    $region3: #{_forward_padded.1} parent=1 // loop_header
      %s15 = sphi 0, %s19
      %p16 = scmp.ge.s32.totalorder %s15, 4
      %s25 = sphi 0, %s27
      %s28 = sphi 0, %s25
      %s29 = sphi 0, %s28
      %s45 = sphi 0, %s29
      %s49 = sphi 0, %s49
      %s51 = sphi 0, %s49
      %s52 = sphi 0, %s51
      %s66 = sphi 0, %s52
      %s70 = sphi 0, %s70
      %s72 = sphi 0, %s70
      %s73 = sphi 0, %s72
      %s87 = sphi 0, %s73
      %s91 = sphi 0, %s91
      %s93 = sphi 0, %s91
      %s94 = sphi 0, %s93
      %s108 = sphi 0, %s94
      %s112 = sphi 0, %s112
      %s114 = sphi 0, %s112
      %s115 = sphi 0, %s114
      %s129 = sphi 0, %s115
      %s133 = sphi 0, %s133
      %s135 = sphi 0, %s133
      %s136 = sphi 0, %s135
      %s150 = sphi 0, %s136
      %s156 = sphi 0, %s158
      %s159 = sphi 0, %s156
      %s160 = sphi 0, %s159
      %s176 = sphi 0, %s160
    $region4: #{_forward_padded.1} parent=1 // loop_header_branch
      %18 = sbr.rel (%p16) target = $region8
    $region5: #{_forward_padded.1} parent=1 // loop_body
      %s20 = ssub.s32 %s15, 1
      %s21 = ssub.s32 %s15, 2
      %s22 = sadd.s32 %s15, 1
      %s23 = ssub.s32 %s15, %s22
      %p24 = scmp.eq.s32.totalorder %s23, 0
      %s26 = sadd.s32 %s25, 1
      %s27 = scalar_select %p24, %s25, %s26
      %p30 = pneg %p24
      %p31 = scmp.eq.s32.totalorder %s15, 1
      %p32 = por %p30, %p31
      %p33 = scmp.ne.s32.totalorder %s25, %s28
      %p34 = scmp.eq.s32.totalorder %s15, 0
      %p35 = por %p33, %p34
      %p36 = scmp.ne.s32.totalorder %s25, %s28
      %p37 = scmp.eq.s32.totalorder %s20, 1
      %p38 = por %p36, %p37
      %p39 = scmp.ne.s32.totalorder %s28, %s29
      %p40 = scmp.eq.s32.totalorder %s20, 0
      %p41 = por %p39, %p40
      %p42 = scmp.ne.s32.totalorder %s28, %s29
      %p43 = scmp.eq.s32.totalorder %s21, 1
      %p44 = por %p42, %p43
      %p46 = scmp.ne.s32.totalorder %s29, %s45
      %p47 = scmp.eq.s32.totalorder %s21, 0
      %p48 = por %p46, %p47
      %s50 = sadd.s32 %s49, 1
      %p53 = scmp.eq.s32.totalorder %s15, 1
      %p54 = scmp.ne.s32.totalorder %s49, %s51
      %p55 = scmp.eq.s32.totalorder %s15, 0
      %p56 = por %p54, %p55
      %p57 = scmp.ne.s32.totalorder %s49, %s51
      %p58 = scmp.eq.s32.totalorder %s20, 1
      %p59 = por %p57, %p58
      %p60 = scmp.ne.s32.totalorder %s51, %s52
      %p61 = scmp.eq.s32.totalorder %s20, 0
      %p62 = por %p60, %p61
      %p63 = scmp.ne.s32.totalorder %s51, %s52
      %p64 = scmp.eq.s32.totalorder %s21, 1
      %p65 = por %p63, %p64
      %p67 = scmp.ne.s32.totalorder %s52, %s66
      %p68 = scmp.eq.s32.totalorder %s21, 0
      %p69 = por %p67, %p68
      %s71 = sadd.s32 %s70, 1
      %p74 = scmp.eq.s32.totalorder %s15, 1
      %p75 = scmp.ne.s32.totalorder %s70, %s72
      %p76 = scmp.eq.s32.totalorder %s15, 0
      %p77 = por %p75, %p76
      %p78 = scmp.ne.s32.totalorder %s70, %s72
      %p79 = scmp.eq.s32.totalorder %s20, 1
      %p80 = por %p78, %p79
      %p81 = scmp.ne.s32.totalorder %s72, %s73
      %p82 = scmp.eq.s32.totalorder %s20, 0
      %p83 = por %p81, %p82
      %p84 = scmp.ne.s32.totalorder %s72, %s73
      %p85 = scmp.eq.s32.totalorder %s21, 1
      %p86 = por %p84, %p85
      %p88 = scmp.ne.s32.totalorder %s73, %s87
      %p89 = scmp.eq.s32.totalorder %s21, 0
      %p90 = por %p88, %p89
      %s92 = sadd.s32 %s91, 1
      %p95 = scmp.eq.s32.totalorder %s15, 1
      %p96 = scmp.ne.s32.totalorder %s91, %s93
      %p97 = scmp.eq.s32.totalorder %s15, 0
      %p98 = por %p96, %p97
      %p99 = scmp.ne.s32.totalorder %s91, %s93
      %p100 = scmp.eq.s32.totalorder %s20, 1
      %p101 = por %p99, %p100
      %p102 = scmp.ne.s32.totalorder %s93, %s94
      %p103 = scmp.eq.s32.totalorder %s20, 0
      %p104 = por %p102, %p103
      %p105 = scmp.ne.s32.totalorder %s93, %s94
      %p106 = scmp.eq.s32.totalorder %s21, 1
      %p107 = por %p105, %p106
      %p109 = scmp.ne.s32.totalorder %s94, %s108
      %p110 = scmp.eq.s32.totalorder %s21, 0
      %p111 = por %p109, %p110
      %s113 = sadd.s32 %s112, 1
      %p116 = scmp.eq.s32.totalorder %s15, 1
      %p117 = scmp.ne.s32.totalorder %s112, %s114
      %p118 = scmp.eq.s32.totalorder %s15, 0
      %p119 = por %p117, %p118
      %p120 = scmp.ne.s32.totalorder %s112, %s114
      %p121 = scmp.eq.s32.totalorder %s20, 1
      %p122 = por %p120, %p121
      %p123 = scmp.ne.s32.totalorder %s114, %s115
      %p124 = scmp.eq.s32.totalorder %s20, 0
      %p125 = por %p123, %p124
      %p126 = scmp.ne.s32.totalorder %s114, %s115
      %p127 = scmp.eq.s32.totalorder %s21, 1
      %p128 = por %p126, %p127
      %p130 = scmp.ne.s32.totalorder %s115, %s129
      %p131 = scmp.eq.s32.totalorder %s21, 0
      %p132 = por %p130, %p131
      %s134 = sadd.s32 %s133, 1
      %p137 = scmp.eq.s32.totalorder %s15, 1
      %p138 = scmp.ne.s32.totalorder %s133, %s135
      %p139 = scmp.eq.s32.totalorder %s15, 0
      %p140 = por %p138, %p139
      %p141 = scmp.ne.s32.totalorder %s133, %s135
      %p142 = scmp.eq.s32.totalorder %s20, 1
      %p143 = por %p141, %p142
      %p144 = scmp.ne.s32.totalorder %s135, %s136
      %p145 = scmp.eq.s32.totalorder %s20, 0
      %p146 = por %p144, %p145
      %p147 = scmp.ne.s32.totalorder %s135, %s136
      %p148 = scmp.eq.s32.totalorder %s21, 1
      %p149 = por %p147, %p148
      %p151 = scmp.ne.s32.totalorder %s136, %s150
      %p152 = scmp.eq.s32.totalorder %s21, 0
      %p153 = por %p151, %p152
      %s154 = ssub.s32 %s15, %s22
      %p155 = scmp.eq.s32.totalorder %s154, 0
      %s157 = sadd.s32 %s156, 1
      %s158 = scalar_select %p155, %s156, %s157
      %p161 = pneg %p155
      %p162 = scmp.eq.s32.totalorder %s15, 1
      %p163 = por %p161, %p162
      %p164 = scmp.ne.s32.totalorder %s156, %s159
      %p165 = scmp.eq.s32.totalorder %s15, 0
      %p166 = por %p164, %p165
      %p167 = scmp.ne.s32.totalorder %s156, %s159
      %p168 = scmp.eq.s32.totalorder %s20, 1
      %p169 = por %p167, %p168
      %p170 = scmp.ne.s32.totalorder %s159, %s160
      %p171 = scmp.eq.s32.totalorder %s20, 0
      %p172 = por %p170, %p171
      %p173 = scmp.ne.s32.totalorder %s159, %s160
      %p174 = scmp.eq.s32.totalorder %s21, 1
      %p175 = por %p173, %p174
      %p177 = scmp.ne.s32.totalorder %s160, %s176
      %p178 = scmp.eq.s32.totalorder %s21, 0
      %p179 = por %p177, %p178
      %p180 = scmp.le.s32.totalorder 1, %s15
      %p181 = scmp.lt.s32.totalorder %s15, 3
      %p182 = pnand %p180, %p181
      %p183 = pneg %p182
      // Predicated region
      $region9: #{_forward_padded.1} parent=5 // pred_check
        _
      $region10: #{_forward_padded.1} parent=5 // pred_check_branch
        %185 = sbr.rel (%p182) target = $region12
      $region11: #{_forward_padded.1} parent=5 // pred_region
        %s186 = ssub.s32 %s15, 1
        // Predicated region
        $region13: #{_forward_padded.1} parent=11 // pred_check
          %p187 = pneg %p62
        $region14: #{_forward_padded.1} parent=11 // pred_check_branch
          %189 = sbr.rel (%p187) target = $region16
        $region15: #{_forward_padded.1} parent=11 // pred_region
          _
        $region16: #{_forward_padded.1} parent=11 // pred_fallthru
          _
        // Predicated region
        $region17: #{_forward_padded.1} parent=11 // pred_check
          %p190 = pneg %p83
        $region18: #{_forward_padded.1} parent=11 // pred_check_branch
          %192 = sbr.rel (%p190) target = $region20
        $region19: #{_forward_padded.1} parent=11 // pred_region
          _
        $region20: #{_forward_padded.1} parent=11 // pred_fallthru
          _
        // Predicated region
        $region21: #{_forward_padded.1} parent=11 // pred_check
          %p193 = pneg %p104
        $region22: #{_forward_padded.1} parent=11 // pred_check_branch
          %195 = sbr.rel (%p193) target = $region24
        $region23: #{_forward_padded.1} parent=11 // pred_region
          _
        $region24: #{_forward_padded.1} parent=11 // pred_fallthru
          _
        // Predicated region
        $region25: #{_forward_padded.1} parent=11 // pred_check
          %p196 = pneg %p125
        $region26: #{_forward_padded.1} parent=11 // pred_check_branch
          %198 = sbr.rel (%p196) target = $region28
        $region27: #{_forward_padded.1} parent=11 // pred_region
          _
        $region28: #{_forward_padded.1} parent=11 // pred_fallthru
          _
        // Predicated region
        $region29: #{_forward_padded.1} parent=11 // pred_check
          %p199 = pneg %p146
        $region30: #{_forward_padded.1} parent=11 // pred_check_branch
          %201 = sbr.rel (%p199) target = $region32
        $region31: #{_forward_padded.1} parent=11 // pred_region
          _
        $region32: #{_forward_padded.1} parent=11 // pred_fallthru
          _
      $region12: #{_forward_padded.1} parent=5 // pred_fallthru
        _
      %p202 = scmp.lt.s32.totalorder %s15, 2
      // Predicated region
      $region33: #{_forward_padded.1} parent=5 // pred_check
        %p203 = pneg %p202
      $region34: #{_forward_padded.1} parent=5 // pred_check_branch
        %205 = sbr.rel (%p203) target = $region36
      $region35: #{_forward_padded.1} parent=5 // pred_region
        // Predicated region
        $region37: #{_forward_padded.1} parent=35 // pred_check
          %p206 = pneg %p35
        $region38: #{_forward_padded.1} parent=35 // pred_check_branch
          %208 = sbr.rel (%p206) target = $region40
        $region39: #{_forward_padded.1} parent=35 // pred_region
          %s209 = smul.u32 32, %s15
          %p210 = scmp.lt.s32.totalorder %s209, 63
          %s211 = scalar_select %p210, %s209, 63
          %s212 = smul.addr %s211, 8
          %s213 = scalar_lea.vmem %s0, %s212
          %s214 = smul.u32 32, %s15
        $region40: #{_forward_padded.1} parent=35 // pred_fallthru
          _
      $region36: #{_forward_padded.1} parent=5 // pred_fallthru
        _
      %p215 = scmp.le.s32.totalorder 1, %s15
      %p216 = scmp.lt.s32.totalorder %s15, 3
      %p217 = pnand %p215, %p216
      %p218 = pneg %p217
      // Predicated region
      $region41: #{_forward_padded.1} parent=5 // pred_check
        _
      $region42: #{_forward_padded.1} parent=5 // pred_check_branch
        %220 = sbr.rel (%p217) target = $region44
      $region43: #{_forward_padded.1} parent=5 // pred_region
        %s221 = ssub.s32 %s15, 1
        %s222 = smul.u32 32, %s20
        %p223 = scmp.lt.s32.totalorder %s222, 63
        %s224 = scalar_select %p223, %s222, 63
        %s225 = smul.addr %s224, 8
        %s226 = scalar_lea.vmem %s0, %s225
        %p227 = pneg %p41
        %p228 = pneg %p38
        %p229 = pneg %p62
        %p230 = pneg %p59
        %p231 = pneg %p83
        %p232 = pneg %p80
        %p233 = pneg %p104
        %p234 = pneg %p101
        %p235 = pneg %p125
        %p236 = pneg %p122
        %p237 = pneg %p146
        %p238 = pneg %p143
        %p239 = pneg %p172
        %p240 = pneg %p169
        %s241 = sand.u32 %s159, 1
        %s242 = scalar_lea.sflag [#allocation3], %s241
        %s243 = sand.u32 %s159, 1
        %s244 = smul.addr %s243, 256
        %s245 = scalar_lea.vmem [#allocation2], %s244
        %s246 = smul.u32 32, %s20
        %p247 = scmp.lt.s32.totalorder %s246, 63
        %s248 = scalar_select %p247, %s246, 63
        %s249 = smul.addr %s248, 8
        %s250 = scalar_lea.vmem %s0, %s249
        %s251 = smul.u32 32, %s20
        %s252 = smul.u32 32, %s20
        %v254 = vld [vmem:[%s250] sm:$0xff]
        %v255 = vld [vmem:[%s250 + $0x8] sm:$0xff]
        %v256 = vld [vmem:[%s250 + $0x10] sm:$0xff]
        %v257 = vld [vmem:[%s250 + $0x18] sm:$0xff]
        %v258 = vld [vmem:[%s250 + $0x20] sm:$0xff]
        %v259 = vld [vmem:[%s250 + $0x28] sm:$0xff]
        %v260 = vld [vmem:[%s250 + $0x30] sm:$0xff]
        %v261 = vld [vmem:[%s250 + $0x38] sm:$0xff]
        %v262 = vld [vmem:[%s250 + $0x40] sm:$0xff]
        %v263 = vld [vmem:[%s250 + $0x48] sm:$0xff]
        %v264 = vld [vmem:[%s250 + $0x50] sm:$0xff]
        %v265 = vld [vmem:[%s250 + $0x58] sm:$0xff]
        %v266 = vld [vmem:[%s250 + $0x60] sm:$0xff]
        %v267 = vld [vmem:[%s250 + $0x68] sm:$0xff]
        %v268 = vld [vmem:[%s250 + $0x70] sm:$0xff]
        %v269 = vld [vmem:[%s250 + $0x78] sm:$0xff]
        %v270 = vld [vmem:[%s250 + $0x80] sm:$0xff]
        %v271 = vld [vmem:[%s250 + $0x88] sm:$0xff]
        %v272 = vld [vmem:[%s250 + $0x90] sm:$0xff]
        %v273 = vld [vmem:[%s250 + $0x98] sm:$0xff]
        %v274 = vld [vmem:[%s250 + $0xa0] sm:$0xff]
        %v275 = vld [vmem:[%s250 + $0xa8] sm:$0xff]
        %v276 = vld [vmem:[%s250 + $0xb0] sm:$0xff]
        %v277 = vld [vmem:[%s250 + $0xb8] sm:$0xff]
        %v278 = vld [vmem:[%s250 + $0xc0] sm:$0xff]
        %v279 = vld [vmem:[%s250 + $0xc8] sm:$0xff]
        %v280 = vld [vmem:[%s250 + $0xd0] sm:$0xff]
        %v281 = vld [vmem:[%s250 + $0xd8] sm:$0xff]
        %v282 = vld [vmem:[%s250 + $0xe0] sm:$0xff]
        %v283 = vld [vmem:[%s250 + $0xe8] sm:$0xff]
        %v284 = vld [vmem:[%s250 + $0xf0] sm:$0xff]
        %v285 = vld [vmem:[%s250 + $0xf8] sm:$0xff]
        %v286 = vpack.c.bf16 %v255, %v254
        %v287 = vpack.c.bf16 %v257, %v256
        %v288 = vpack.c.bf16 %v259, %v258
        %v289 = vpack.c.bf16 %v261, %v260
        %v290 = vpack.c.bf16 %v263, %v262
        %v291 = vpack.c.bf16 %v265, %v264
        %v292 = vpack.c.bf16 %v267, %v266
        %v293 = vpack.c.bf16 %v269, %v268
        %v294 = vpack.c.bf16 %v271, %v270
        %v295 = vpack.c.bf16 %v273, %v272
        %v296 = vpack.c.bf16 %v275, %v274
        %v297 = vpack.c.bf16 %v277, %v276
        %v298 = vpack.c.bf16 %v279, %v278
        %v299 = vpack.c.bf16 %v281, %v280
        %v300 = vpack.c.bf16 %v283, %v282
        %v301 = vpack.c.bf16 %v285, %v284
        %v302 = vld [vmem:[%s1] sm:$0xf]
        %v303 = vld [vmem:[%s1 + $0x4] sm:$0xf]
        %v304 = vld [vmem:[%s1 + $0x8] sm:$0xf]
        %v305 = vld [vmem:[%s1 + $0xc] sm:$0xf]
        %v306 = vld [vmem:[%s2] sm:$0x1]
        %v308 = vlaneseq
        %v309 = vshrl.u32 %v308, 7
        %v310 = vsub.s32 0, %v309
        %v311 = vrot.slane %v306, %v310
        %v317 = vunpack.c.l.b16 %v302
        %v318 = vunpack.c.l.b16 %v303
        %v319 = vunpack.c.l.b16 %v304
        %v320 = vunpack.c.l.b16 %v305
        %v321 = vpack.c.b16 %v318, %v317
        %v322 = vpack.c.b16 %v320, %v319
        %vm325 = vcmask 261120
        %v327 = vsel %vm325, %v286, 0
        %v330 = vsel %vm325, %v287, 0
        %v333 = vsel %vm325, %v288, 0
        %v336 = vsel %vm325, %v289, 0
        %v339 = vsel %vm325, %v290, 0
        %v342 = vsel %vm325, %v291, 0
        %v345 = vsel %vm325, %v292, 0
        %v348 = vsel %vm325, %v293, 0
        %v351 = vsel %vm325, %v294, 0
        %v354 = vsel %vm325, %v295, 0
        %v357 = vsel %vm325, %v296, 0
        %v360 = vsel %vm325, %v297, 0
        %v363 = vsel %vm325, %v298, 0
        %v366 = vsel %vm325, %v299, 0
        %v369 = vsel %vm325, %v300, 0
        %v372 = vsel %vm325, %v301, 0
        %374 = vmatprep.subr.bf16.mxu0 0
        %375 = vmatpush1.bf16.msra.mxu0 0
        %376 = vmatprep.subr.bf16.mxu0 0
        %377 = vmatpush1.bf16.msra.mxu0 0
        %378 = vmatprep.subr.bf16.mxu0 0
        %379 = vmatpush1.bf16.msra.mxu0 0
        %380 = vmatprep.subr.bf16.mxu0 0
        %381 = vmatpush1.bf16.msra.mxu0 0
        %382 = vmatprep.subr.bf16.mxu0 0
        %383 = vmatpush1.bf16.msra.mxu0 0
        %384 = vmatprep.subr.bf16.mxu0 0
        %385 = vmatpush1.bf16.msra.mxu0 0
        %386 = vmatprep.subr.bf16.mxu0 0
        %387 = vmatpush1.bf16.msra.mxu0 %v322
        %388 = vmatprep.subr.bf16.mxu0 0
        %389 = vmatpush1.bf16.msra.mxu0 %v321
        %390 = vmatprep.subr.bf16.mxu0 0
        %391 = vmatpush2.bf16.msra.mxu0 0
        %392 = vmatprep.subr.bf16.mxu0 0
        %393 = vmatpush2.bf16.msra.mxu0 0
        %394 = vmatprep.subr.bf16.mxu0 0
        %395 = vmatpush2.bf16.msra.mxu0 0
        %396 = vmatprep.subr.bf16.mxu0 0
        %397 = vmatpush2.bf16.msra.mxu0 0
        %398 = vmatprep.subr.bf16.mxu0 0
        %399 = vmatpush2.bf16.msra.mxu0 0
        %400 = vmatprep.subr.bf16.mxu0 0
        %401 = vmatpush2.bf16.msra.mxu0 0
        %402 = vmatprep.subr.bf16.mxu0 0
        %403 = vmatpush2.bf16.msra.mxu0 0
        %404 = vmatprep.subr.bf16.mxu0 0
        %405 = vmatpush2.bf16.msra.mxu0 0
        %406 = vmatprep.mubr.bf16.mxu0 0
        %407 = vmatmul.mubr.bf16.gmra.mxu0 %v327
        %v408 = vpop.f32.mrf.mxu0
        %v409 = vadd.f32 %v311, %v408
        %v410 = vpop.f32.mrf.mxu0
        %v411 = vpop.f32.mrf.mxu0
        %v412 = vadd.f32 %v311, %v411
        %v413 = vpop.f32.mrf.mxu0
        %414 = vmatprep.mubr.bf16.mxu0 0
        %415 = vmatmul.mubr.bf16.gmra.mxu0 %v330
        %v416 = vpop.f32.mrf.mxu0
        %v417 = vadd.f32 %v311, %v416
        %v418 = vpop.f32.mrf.mxu0
        %v419 = vpop.f32.mrf.mxu0
        %v420 = vadd.f32 %v311, %v419
        %v421 = vpop.f32.mrf.mxu0
        %422 = vmatprep.mubr.bf16.mxu0 0
        %423 = vmatmul.mubr.bf16.gmra.mxu0 %v333
        %v424 = vpop.f32.mrf.mxu0
        %v425 = vadd.f32 %v311, %v424
        %v426 = vpop.f32.mrf.mxu0
        %v427 = vpop.f32.mrf.mxu0
        %v428 = vadd.f32 %v311, %v427
        %v429 = vpop.f32.mrf.mxu0
        %430 = vmatprep.mubr.bf16.mxu0 0
        %431 = vmatmul.mubr.bf16.gmra.mxu0 %v336
        %v432 = vpop.f32.mrf.mxu0
        %v433 = vadd.f32 %v311, %v432
        %v434 = vpop.f32.mrf.mxu0
        %v435 = vpop.f32.mrf.mxu0
        %v436 = vadd.f32 %v311, %v435
        %v437 = vpop.f32.mrf.mxu0
        %438 = vmatprep.mubr.bf16.mxu0 0
        %439 = vmatmul.mubr.bf16.gmra.mxu0 %v339
        %v440 = vpop.f32.mrf.mxu0
        %v441 = vadd.f32 %v311, %v440
        %v442 = vpop.f32.mrf.mxu0
        %v443 = vpop.f32.mrf.mxu0
        %v444 = vadd.f32 %v311, %v443
        %v445 = vpop.f32.mrf.mxu0
        %446 = vmatprep.mubr.bf16.mxu0 0
        %447 = vmatmul.mubr.bf16.gmra.mxu0 %v342
        %v448 = vpop.f32.mrf.mxu0
        %v449 = vadd.f32 %v311, %v448
        %v450 = vpop.f32.mrf.mxu0
        %v451 = vpop.f32.mrf.mxu0
        %v452 = vadd.f32 %v311, %v451
        %v453 = vpop.f32.mrf.mxu0
        %454 = vmatprep.mubr.bf16.mxu0 0
        %455 = vmatmul.mubr.bf16.gmra.mxu0 %v345
        %v456 = vpop.f32.mrf.mxu0
        %v457 = vadd.f32 %v311, %v456
        %v458 = vpop.f32.mrf.mxu0
        %v459 = vpop.f32.mrf.mxu0
        %v460 = vadd.f32 %v311, %v459
        %v461 = vpop.f32.mrf.mxu0
        %462 = vmatprep.mubr.bf16.mxu0 0
        %463 = vmatmul.mubr.bf16.gmra.mxu0 %v348
        %v464 = vpop.f32.mrf.mxu0
        %v465 = vadd.f32 %v311, %v464
        %v466 = vpop.f32.mrf.mxu0
        %v467 = vpop.f32.mrf.mxu0
        %v468 = vadd.f32 %v311, %v467
        %v469 = vpop.f32.mrf.mxu0
        %470 = vmatprep.mubr.bf16.mxu0 0
        %471 = vmatmul.mubr.bf16.gmra.mxu0 %v351
        %v472 = vpop.f32.mrf.mxu0
        %v473 = vadd.f32 %v311, %v472
        %v474 = vpop.f32.mrf.mxu0
        %v475 = vpop.f32.mrf.mxu0
        %v476 = vadd.f32 %v311, %v475
        %v477 = vpop.f32.mrf.mxu0
        %478 = vmatprep.mubr.bf16.mxu0 0
        %479 = vmatmul.mubr.bf16.gmra.mxu0 %v354
        %v480 = vpop.f32.mrf.mxu0
        %v481 = vadd.f32 %v311, %v480
        %v482 = vpop.f32.mrf.mxu0
        %v483 = vpop.f32.mrf.mxu0
        %v484 = vadd.f32 %v311, %v483
        %v485 = vpop.f32.mrf.mxu0
        %486 = vmatprep.mubr.bf16.mxu0 0
        %487 = vmatmul.mubr.bf16.gmra.mxu0 %v357
        %v488 = vpop.f32.mrf.mxu0
        %v489 = vadd.f32 %v311, %v488
        %v490 = vpop.f32.mrf.mxu0
        %v491 = vpop.f32.mrf.mxu0
        %v492 = vadd.f32 %v311, %v491
        %v493 = vpop.f32.mrf.mxu0
        %494 = vmatprep.mubr.bf16.mxu0 0
        %495 = vmatmul.mubr.bf16.gmra.mxu0 %v360
        %v496 = vpop.f32.mrf.mxu0
        %v497 = vadd.f32 %v311, %v496
        %v498 = vpop.f32.mrf.mxu0
        %v499 = vpop.f32.mrf.mxu0
        %v500 = vadd.f32 %v311, %v499
        %v501 = vpop.f32.mrf.mxu0
        %502 = vmatprep.mubr.bf16.mxu0 0
        %503 = vmatmul.mubr.bf16.gmra.mxu0 %v363
        %v504 = vpop.f32.mrf.mxu0
        %v505 = vadd.f32 %v311, %v504
        %v506 = vpop.f32.mrf.mxu0
        %v507 = vpop.f32.mrf.mxu0
        %v508 = vadd.f32 %v311, %v507
        %v509 = vpop.f32.mrf.mxu0
        %510 = vmatprep.mubr.bf16.mxu0 0
        %511 = vmatmul.mubr.bf16.gmra.mxu0 %v366
        %v512 = vpop.f32.mrf.mxu0
        %v513 = vadd.f32 %v311, %v512
        %v514 = vpop.f32.mrf.mxu0
        %v515 = vpop.f32.mrf.mxu0
        %v516 = vadd.f32 %v311, %v515
        %v517 = vpop.f32.mrf.mxu0
        %518 = vmatprep.mubr.bf16.mxu0 0
        %519 = vmatmul.mubr.bf16.gmra.mxu0 %v369
        %v520 = vpop.f32.mrf.mxu0
        %v521 = vadd.f32 %v311, %v520
        %v522 = vpop.f32.mrf.mxu0
        %v523 = vpop.f32.mrf.mxu0
        %v524 = vadd.f32 %v311, %v523
        %v525 = vpop.f32.mrf.mxu0
        %526 = vmatprep.mubr.bf16.mxu0 0
        %527 = vmatmul.mubr.bf16.gmra.mxu0 %v372
        %v528 = vpop.f32.mrf.mxu0
        %v529 = vadd.f32 %v311, %v528
        %v530 = vpop.f32.mrf.mxu0
        %v531 = vpop.f32.mrf.mxu0
        %v532 = vadd.f32 %v311, %v531
        %v533 = vpop.f32.mrf.mxu0
        %534 = vdwg.mxu0
        %v535 = vmax.f32 %v409, 0.0
        %v536 = vmax.f32 %v412, 0.0
        %v537 = vmax.f32 %v417, 0.0
        %v538 = vmax.f32 %v420, 0.0
        %v539 = vmax.f32 %v425, 0.0
        %v540 = vmax.f32 %v428, 0.0
        %v541 = vmax.f32 %v433, 0.0
        %v542 = vmax.f32 %v436, 0.0
        %v543 = vmax.f32 %v441, 0.0
        %v544 = vmax.f32 %v444, 0.0
        %v545 = vmax.f32 %v449, 0.0
        %v546 = vmax.f32 %v452, 0.0
        %v547 = vmax.f32 %v457, 0.0
        %v548 = vmax.f32 %v460, 0.0
        %v549 = vmax.f32 %v465, 0.0
        %v550 = vmax.f32 %v468, 0.0
        %v551 = vmax.f32 %v473, 0.0
        %v552 = vmax.f32 %v476, 0.0
        %v553 = vmax.f32 %v481, 0.0
        %v554 = vmax.f32 %v484, 0.0
        %v555 = vmax.f32 %v489, 0.0
        %v556 = vmax.f32 %v492, 0.0
        %v557 = vmax.f32 %v497, 0.0
        %v558 = vmax.f32 %v500, 0.0
        %v559 = vmax.f32 %v505, 0.0
        %v560 = vmax.f32 %v508, 0.0
        %v561 = vmax.f32 %v513, 0.0
        %v562 = vmax.f32 %v516, 0.0
        %v563 = vmax.f32 %v521, 0.0
        %v564 = vmax.f32 %v524, 0.0
        %v565 = vmax.f32 %v529, 0.0
        %v566 = vmax.f32 %v532, 0.0
        %v567 = vpack.c.bf16 %v536, %v535
        %v568 = vpack.c.bf16 %v538, %v537
        %v569 = vpack.c.bf16 %v540, %v539
        %v570 = vpack.c.bf16 %v542, %v541
        %v571 = vpack.c.bf16 %v544, %v543
        %v572 = vpack.c.bf16 %v546, %v545
        %v573 = vpack.c.bf16 %v548, %v547
        %v574 = vpack.c.bf16 %v550, %v549
        %v575 = vpack.c.bf16 %v552, %v551
        %v576 = vpack.c.bf16 %v554, %v553
        %v577 = vpack.c.bf16 %v556, %v555
        %v578 = vpack.c.bf16 %v558, %v557
        %v579 = vpack.c.bf16 %v560, %v559
        %v580 = vpack.c.bf16 %v562, %v561
        %v581 = vpack.c.bf16 %v564, %v563
        %v582 = vpack.c.bf16 %v566, %v565
        %v583 = vld [vmem:[%s3] sm:$0xf]
        %v584 = vld [vmem:[%s3 + $0x4] sm:$0xf]
        %v585 = vld [vmem:[%s3 + $0x8] sm:$0xf]
        %v586 = vld [vmem:[%s3 + $0xc] sm:$0xf]
        %v587 = vld [vmem:[%s3 + $0x10] sm:$0xf]
        %v588 = vld [vmem:[%s3 + $0x14] sm:$0xf]
        %v589 = vld [vmem:[%s3 + $0x18] sm:$0xf]
        %v590 = vld [vmem:[%s3 + $0x1c] sm:$0xf]
        %v591 = vld [vmem:[%s3 + $0x20] sm:$0xf]
        %v592 = vld [vmem:[%s3 + $0x24] sm:$0xf]
        %v593 = vld [vmem:[%s3 + $0x28] sm:$0xf]
        %v594 = vld [vmem:[%s3 + $0x2c] sm:$0xf]
        %v595 = vld [vmem:[%s3 + $0x30] sm:$0xf]
        %v596 = vld [vmem:[%s3 + $0x34] sm:$0xf]
        %v597 = vld [vmem:[%s3 + $0x38] sm:$0xf]
        %v598 = vld [vmem:[%s3 + $0x3c] sm:$0xf]
        %s599 = scalar_lea.vmem %s2, 1
        %v600 = vld [vmem:[%s599] sm:$0x1]
        %v602 = vlaneseq
        %v603 = vshrl.u32 %v602, 7
        %v604 = vsub.s32 0, %v603
        %v605 = vrot.slane %v600, %v604
        %v623 = vunpack.c.l.b16 %v583
        %v624 = vunpack.c.l.b16 %v584
        %v625 = vunpack.c.l.b16 %v585
        %v626 = vunpack.c.l.b16 %v586
        %v627 = vunpack.c.l.b16 %v587
        %v628 = vunpack.c.l.b16 %v588
        %v629 = vunpack.c.l.b16 %v589
        %v630 = vunpack.c.l.b16 %v590
        %v631 = vunpack.c.l.b16 %v591
        %v632 = vunpack.c.l.b16 %v592
        %v633 = vunpack.c.l.b16 %v593
        %v634 = vunpack.c.l.b16 %v594
        %v635 = vunpack.c.l.b16 %v595
        %v636 = vunpack.c.l.b16 %v596
        %v637 = vunpack.c.l.b16 %v597
        %v638 = vunpack.c.l.b16 %v598
        %v639 = vpack.c.b16 %v624, %v623
        %v640 = vpack.c.b16 %v626, %v625
        %v641 = vpack.c.b16 %v628, %v627
        %v642 = vpack.c.b16 %v630, %v629
        %v643 = vpack.c.b16 %v632, %v631
        %v644 = vpack.c.b16 %v634, %v633
        %v645 = vpack.c.b16 %v636, %v635
        %v646 = vpack.c.b16 %v638, %v637
        %655 = vmatprep.subr.bf16.mxu0 0
        %656 = vmatpush1.bf16.msra.mxu0 %v646
        %657 = vmatprep.subr.bf16.mxu0 0
        %658 = vmatpush1.bf16.msra.mxu0 %v645
        %659 = vmatprep.subr.bf16.mxu0 0
        %660 = vmatpush1.bf16.msra.mxu0 %v644
        %661 = vmatprep.subr.bf16.mxu0 0
        %662 = vmatpush1.bf16.msra.mxu0 %v643
        %663 = vmatprep.subr.bf16.mxu0 0
        %664 = vmatpush1.bf16.msra.mxu0 %v642
        %665 = vmatprep.subr.bf16.mxu0 0
        %666 = vmatpush1.bf16.msra.mxu0 %v641
        %667 = vmatprep.subr.bf16.mxu0 0
        %668 = vmatpush1.bf16.msra.mxu0 %v640
        %669 = vmatprep.subr.bf16.mxu0 0
        %670 = vmatpush1.bf16.msra.mxu0 %v639
        %671 = vmatprep.subr.bf16.mxu0 0
        %672 = vmatpush2.bf16.msra.mxu0 0
        %673 = vmatprep.subr.bf16.mxu0 0
        %674 = vmatpush2.bf16.msra.mxu0 0
        %675 = vmatprep.subr.bf16.mxu0 0
        %676 = vmatpush2.bf16.msra.mxu0 0
        %677 = vmatprep.subr.bf16.mxu0 0
        %678 = vmatpush2.bf16.msra.mxu0 0
        %679 = vmatprep.subr.bf16.mxu0 0
        %680 = vmatpush2.bf16.msra.mxu0 0
        %681 = vmatprep.subr.bf16.mxu0 0
        %682 = vmatpush2.bf16.msra.mxu0 0
        %683 = vmatprep.subr.bf16.mxu0 0
        %684 = vmatpush2.bf16.msra.mxu0 0
        %685 = vmatprep.subr.bf16.mxu0 0
        %686 = vmatpush2.bf16.msra.mxu0 0
        %687 = vmatprep.mubr.bf16.mxu0 0
        %688 = vmatmul.mubr.bf16.gmra.mxu0 %v567
        %v689 = vpop.f32.mrf.mxu0
        %v690 = vadd.f32 %v605, %v689
        %v691 = vpop.f32.mrf.mxu0
        %v692 = vpop.f32.mrf.mxu0
        %v693 = vadd.f32 %v605, %v692
        %v694 = vpop.f32.mrf.mxu0
        %695 = vmatprep.mubr.bf16.mxu0 0
        %696 = vmatmul.mubr.bf16.gmra.mxu0 %v568
        %v697 = vpop.f32.mrf.mxu0
        %v698 = vadd.f32 %v605, %v697
        %v699 = vpop.f32.mrf.mxu0
        %v700 = vpop.f32.mrf.mxu0
        %v701 = vadd.f32 %v605, %v700
        %v702 = vpop.f32.mrf.mxu0
        %703 = vmatprep.mubr.bf16.mxu0 0
        %704 = vmatmul.mubr.bf16.gmra.mxu0 %v569
        %v705 = vpop.f32.mrf.mxu0
        %v706 = vadd.f32 %v605, %v705
        %v707 = vpop.f32.mrf.mxu0
        %v708 = vpop.f32.mrf.mxu0
        %v709 = vadd.f32 %v605, %v708
        %v710 = vpop.f32.mrf.mxu0
        %711 = vmatprep.mubr.bf16.mxu0 0
        %712 = vmatmul.mubr.bf16.gmra.mxu0 %v570
        %v713 = vpop.f32.mrf.mxu0
        %v714 = vadd.f32 %v605, %v713
        %v715 = vpop.f32.mrf.mxu0
        %v716 = vpop.f32.mrf.mxu0
        %v717 = vadd.f32 %v605, %v716
        %v718 = vpop.f32.mrf.mxu0
        %719 = vmatprep.mubr.bf16.mxu0 0
        %720 = vmatmul.mubr.bf16.gmra.mxu0 %v571
        %v721 = vpop.f32.mrf.mxu0
        %v722 = vadd.f32 %v605, %v721
        %v723 = vpop.f32.mrf.mxu0
        %v724 = vpop.f32.mrf.mxu0
        %v725 = vadd.f32 %v605, %v724
        %v726 = vpop.f32.mrf.mxu0
        %727 = vmatprep.mubr.bf16.mxu0 0
        %728 = vmatmul.mubr.bf16.gmra.mxu0 %v572
        %v729 = vpop.f32.mrf.mxu0
        %v730 = vadd.f32 %v605, %v729
        %v731 = vpop.f32.mrf.mxu0
        %v732 = vpop.f32.mrf.mxu0
        %v733 = vadd.f32 %v605, %v732
        %v734 = vpop.f32.mrf.mxu0
        %735 = vmatprep.mubr.bf16.mxu0 0
        %736 = vmatmul.mubr.bf16.gmra.mxu0 %v573
        %v737 = vpop.f32.mrf.mxu0
        %v738 = vadd.f32 %v605, %v737
        %v739 = vpop.f32.mrf.mxu0
        %v740 = vpop.f32.mrf.mxu0
        %v741 = vadd.f32 %v605, %v740
        %v742 = vpop.f32.mrf.mxu0
        %743 = vmatprep.mubr.bf16.mxu0 0
        %744 = vmatmul.mubr.bf16.gmra.mxu0 %v574
        %v745 = vpop.f32.mrf.mxu0
        %v746 = vadd.f32 %v605, %v745
        %v747 = vpop.f32.mrf.mxu0
        %v748 = vpop.f32.mrf.mxu0
        %v749 = vadd.f32 %v605, %v748
        %v750 = vpop.f32.mrf.mxu0
        %751 = vmatprep.mubr.bf16.mxu0 0
        %752 = vmatmul.mubr.bf16.gmra.mxu0 %v575
        %v753 = vpop.f32.mrf.mxu0
        %v754 = vadd.f32 %v605, %v753
        %v755 = vpop.f32.mrf.mxu0
        %v756 = vpop.f32.mrf.mxu0
        %v757 = vadd.f32 %v605, %v756
        %v758 = vpop.f32.mrf.mxu0
        %759 = vmatprep.mubr.bf16.mxu0 0
        %760 = vmatmul.mubr.bf16.gmra.mxu0 %v576
        %v761 = vpop.f32.mrf.mxu0
        %v762 = vadd.f32 %v605, %v761
        %v763 = vpop.f32.mrf.mxu0
        %v764 = vpop.f32.mrf.mxu0
        %v765 = vadd.f32 %v605, %v764
        %v766 = vpop.f32.mrf.mxu0
        %767 = vmatprep.mubr.bf16.mxu0 0
        %768 = vmatmul.mubr.bf16.gmra.mxu0 %v577
        %v769 = vpop.f32.mrf.mxu0
        %v770 = vadd.f32 %v605, %v769
        %v771 = vpop.f32.mrf.mxu0
        %v772 = vpop.f32.mrf.mxu0
        %v773 = vadd.f32 %v605, %v772
        %v774 = vpop.f32.mrf.mxu0
        %775 = vmatprep.mubr.bf16.mxu0 0
        %776 = vmatmul.mubr.bf16.gmra.mxu0 %v578
        %v777 = vpop.f32.mrf.mxu0
        %v778 = vadd.f32 %v605, %v777
        %v779 = vpop.f32.mrf.mxu0
        %v780 = vpop.f32.mrf.mxu0
        %v781 = vadd.f32 %v605, %v780
        %v782 = vpop.f32.mrf.mxu0
        %783 = vmatprep.mubr.bf16.mxu0 0
        %784 = vmatmul.mubr.bf16.gmra.mxu0 %v579
        %v785 = vpop.f32.mrf.mxu0
        %v786 = vadd.f32 %v605, %v785
        %v787 = vpop.f32.mrf.mxu0
        %v788 = vpop.f32.mrf.mxu0
        %v789 = vadd.f32 %v605, %v788
        %v790 = vpop.f32.mrf.mxu0
        %791 = vmatprep.mubr.bf16.mxu0 0
        %792 = vmatmul.mubr.bf16.gmra.mxu0 %v580
        %v793 = vpop.f32.mrf.mxu0
        %v794 = vadd.f32 %v605, %v793
        %v795 = vpop.f32.mrf.mxu0
        %v796 = vpop.f32.mrf.mxu0
        %v797 = vadd.f32 %v605, %v796
        %v798 = vpop.f32.mrf.mxu0
        %799 = vmatprep.mubr.bf16.mxu0 0
        %800 = vmatmul.mubr.bf16.gmra.mxu0 %v581
        %v801 = vpop.f32.mrf.mxu0
        %v802 = vadd.f32 %v605, %v801
        %v803 = vpop.f32.mrf.mxu0
        %v804 = vpop.f32.mrf.mxu0
        %v805 = vadd.f32 %v605, %v804
        %v806 = vpop.f32.mrf.mxu0
        %807 = vmatprep.mubr.bf16.mxu0 0
        %808 = vmatmul.mubr.bf16.gmra.mxu0 %v582
        %v809 = vpop.f32.mrf.mxu0
        %v810 = vadd.f32 %v605, %v809
        %v811 = vpop.f32.mrf.mxu0
        %v812 = vpop.f32.mrf.mxu0
        %v813 = vadd.f32 %v605, %v812
        %v814 = vpop.f32.mrf.mxu0
        %815 = vdwg.mxu0
        %v816 = vmax.f32 %v690, 0.0
        %v817 = vmax.f32 %v693, 0.0
        %v818 = vmax.f32 %v698, 0.0
        %v819 = vmax.f32 %v701, 0.0
        %v820 = vmax.f32 %v706, 0.0
        %v821 = vmax.f32 %v709, 0.0
        %v822 = vmax.f32 %v714, 0.0
        %v823 = vmax.f32 %v717, 0.0
        %v824 = vmax.f32 %v722, 0.0
        %v825 = vmax.f32 %v725, 0.0
        %v826 = vmax.f32 %v730, 0.0
        %v827 = vmax.f32 %v733, 0.0
        %v828 = vmax.f32 %v738, 0.0
        %v829 = vmax.f32 %v741, 0.0
        %v830 = vmax.f32 %v746, 0.0
        %v831 = vmax.f32 %v749, 0.0
        %v832 = vmax.f32 %v754, 0.0
        %v833 = vmax.f32 %v757, 0.0
        %v834 = vmax.f32 %v762, 0.0
        %v835 = vmax.f32 %v765, 0.0
        %v836 = vmax.f32 %v770, 0.0
        %v837 = vmax.f32 %v773, 0.0
        %v838 = vmax.f32 %v778, 0.0
        %v839 = vmax.f32 %v781, 0.0
        %v840 = vmax.f32 %v786, 0.0
        %v841 = vmax.f32 %v789, 0.0
        %v842 = vmax.f32 %v794, 0.0
        %v843 = vmax.f32 %v797, 0.0
        %v844 = vmax.f32 %v802, 0.0
        %v845 = vmax.f32 %v805, 0.0
        %v846 = vmax.f32 %v810, 0.0
        %v847 = vmax.f32 %v813, 0.0
        %v848 = vpack.c.bf16 %v817, %v816
        %v849 = vpack.c.bf16 %v819, %v818
        %v850 = vpack.c.bf16 %v821, %v820
        %v851 = vpack.c.bf16 %v823, %v822
        %v852 = vpack.c.bf16 %v825, %v824
        %v853 = vpack.c.bf16 %v827, %v826
        %v854 = vpack.c.bf16 %v829, %v828
        %v855 = vpack.c.bf16 %v831, %v830
        %v856 = vpack.c.bf16 %v833, %v832
        %v857 = vpack.c.bf16 %v835, %v834
        %v858 = vpack.c.bf16 %v837, %v836
        %v859 = vpack.c.bf16 %v839, %v838
        %v860 = vpack.c.bf16 %v841, %v840
        %v861 = vpack.c.bf16 %v843, %v842
        %v862 = vpack.c.bf16 %v845, %v844
        %v863 = vpack.c.bf16 %v847, %v846
        %s864 = scalar_lea.vmem %s3, 64
        %v865 = vld [vmem:[%s864] sm:$0xf]
        %v866 = vld [vmem:[%s864 + $0x4] sm:$0xf]
        %v867 = vld [vmem:[%s864 + $0x8] sm:$0xf]
        %v868 = vld [vmem:[%s864 + $0xc] sm:$0xf]
        %v869 = vld [vmem:[%s864 + $0x10] sm:$0xf]
        %v870 = vld [vmem:[%s864 + $0x14] sm:$0xf]
        %v871 = vld [vmem:[%s864 + $0x18] sm:$0xf]
        %v872 = vld [vmem:[%s864 + $0x1c] sm:$0xf]
        %v873 = vld [vmem:[%s864 + $0x20] sm:$0xf]
        %v874 = vld [vmem:[%s864 + $0x24] sm:$0xf]
        %v875 = vld [vmem:[%s864 + $0x28] sm:$0xf]
        %v876 = vld [vmem:[%s864 + $0x2c] sm:$0xf]
        %v877 = vld [vmem:[%s864 + $0x30] sm:$0xf]
        %v878 = vld [vmem:[%s864 + $0x34] sm:$0xf]
        %v879 = vld [vmem:[%s864 + $0x38] sm:$0xf]
        %v880 = vld [vmem:[%s864 + $0x3c] sm:$0xf]
        %s881 = scalar_lea.vmem %s2, 2
        %v882 = vld [vmem:[%s881] sm:$0x1]
        %v884 = vlaneseq
        %v885 = vshrl.u32 %v884, 7
        %v886 = vsub.s32 0, %v885
        %v887 = vrot.slane %v882, %v886
        %v905 = vunpack.c.l.b16 %v865
        %v906 = vunpack.c.l.b16 %v866
        %v907 = vunpack.c.l.b16 %v867
        %v908 = vunpack.c.l.b16 %v868
        %v909 = vunpack.c.l.b16 %v869
        %v910 = vunpack.c.l.b16 %v870
        %v911 = vunpack.c.l.b16 %v871
        %v912 = vunpack.c.l.b16 %v872
        %v913 = vunpack.c.l.b16 %v873
        %v914 = vunpack.c.l.b16 %v874
        %v915 = vunpack.c.l.b16 %v875
        %v916 = vunpack.c.l.b16 %v876
        %v917 = vunpack.c.l.b16 %v877
        %v918 = vunpack.c.l.b16 %v878
        %v919 = vunpack.c.l.b16 %v879
        %v920 = vunpack.c.l.b16 %v880
        %v921 = vpack.c.b16 %v906, %v905
        %v922 = vpack.c.b16 %v908, %v907
        %v923 = vpack.c.b16 %v910, %v909
        %v924 = vpack.c.b16 %v912, %v911
        %v925 = vpack.c.b16 %v914, %v913
        %v926 = vpack.c.b16 %v916, %v915
        %v927 = vpack.c.b16 %v918, %v917
        %v928 = vpack.c.b16 %v920, %v919
        %937 = vmatprep.subr.bf16.mxu0 0
        %938 = vmatpush1.bf16.msra.mxu0 %v928
        %939 = vmatprep.subr.bf16.mxu0 0
        %940 = vmatpush1.bf16.msra.mxu0 %v927
        %941 = vmatprep.subr.bf16.mxu0 0
        %942 = vmatpush1.bf16.msra.mxu0 %v926
        %943 = vmatprep.subr.bf16.mxu0 0
        %944 = vmatpush1.bf16.msra.mxu0 %v925
        %945 = vmatprep.subr.bf16.mxu0 0
        %946 = vmatpush1.bf16.msra.mxu0 %v924
        %947 = vmatprep.subr.bf16.mxu0 0
        %948 = vmatpush1.bf16.msra.mxu0 %v923
        %949 = vmatprep.subr.bf16.mxu0 0
        %950 = vmatpush1.bf16.msra.mxu0 %v922
        %951 = vmatprep.subr.bf16.mxu0 0
        %952 = vmatpush1.bf16.msra.mxu0 %v921
        %953 = vmatprep.subr.bf16.mxu0 0
        %954 = vmatpush2.bf16.msra.mxu0 0
        %955 = vmatprep.subr.bf16.mxu0 0
        %956 = vmatpush2.bf16.msra.mxu0 0
        %957 = vmatprep.subr.bf16.mxu0 0
        %958 = vmatpush2.bf16.msra.mxu0 0
        %959 = vmatprep.subr.bf16.mxu0 0
        %960 = vmatpush2.bf16.msra.mxu0 0
        %961 = vmatprep.subr.bf16.mxu0 0
        %962 = vmatpush2.bf16.msra.mxu0 0
        %963 = vmatprep.subr.bf16.mxu0 0
        %964 = vmatpush2.bf16.msra.mxu0 0
        %965 = vmatprep.subr.bf16.mxu0 0
        %966 = vmatpush2.bf16.msra.mxu0 0
        %967 = vmatprep.subr.bf16.mxu0 0
        %968 = vmatpush2.bf16.msra.mxu0 0
        %969 = vmatprep.mubr.bf16.mxu0 0
        %970 = vmatmul.mubr.bf16.gmra.mxu0 %v848
        %v971 = vpop.f32.mrf.mxu0
        %v972 = vadd.f32 %v887, %v971
        %v973 = vpop.f32.mrf.mxu0
        %v974 = vpop.f32.mrf.mxu0
        %v975 = vadd.f32 %v887, %v974
        %v976 = vpop.f32.mrf.mxu0
        %977 = vmatprep.mubr.bf16.mxu0 0
        %978 = vmatmul.mubr.bf16.gmra.mxu0 %v849
        %v979 = vpop.f32.mrf.mxu0
        %v980 = vadd.f32 %v887, %v979
        %v981 = vpop.f32.mrf.mxu0
        %v982 = vpop.f32.mrf.mxu0
        %v983 = vadd.f32 %v887, %v982
        %v984 = vpop.f32.mrf.mxu0
        %985 = vmatprep.mubr.bf16.mxu0 0
        %986 = vmatmul.mubr.bf16.gmra.mxu0 %v850
        %v987 = vpop.f32.mrf.mxu0
        %v988 = vadd.f32 %v887, %v987
        %v989 = vpop.f32.mrf.mxu0
        %v990 = vpop.f32.mrf.mxu0
        %v991 = vadd.f32 %v887, %v990
        %v992 = vpop.f32.mrf.mxu0
        %993 = vmatprep.mubr.bf16.mxu0 0
        %994 = vmatmul.mubr.bf16.gmra.mxu0 %v851
        %v995 = vpop.f32.mrf.mxu0
        %v996 = vadd.f32 %v887, %v995
        %v997 = vpop.f32.mrf.mxu0
        %v998 = vpop.f32.mrf.mxu0
        %v999 = vadd.f32 %v887, %v998
        %v1000 = vpop.f32.mrf.mxu0
        %1001 = vmatprep.mubr.bf16.mxu0 0
        %1002 = vmatmul.mubr.bf16.gmra.mxu0 %v852
        %v1003 = vpop.f32.mrf.mxu0
        %v1004 = vadd.f32 %v887, %v1003
        %v1005 = vpop.f32.mrf.mxu0
        %v1006 = vpop.f32.mrf.mxu0
        %v1007 = vadd.f32 %v887, %v1006
        %v1008 = vpop.f32.mrf.mxu0
        %1009 = vmatprep.mubr.bf16.mxu0 0
        %1010 = vmatmul.mubr.bf16.gmra.mxu0 %v853
        %v1011 = vpop.f32.mrf.mxu0
        %v1012 = vadd.f32 %v887, %v1011
        %v1013 = vpop.f32.mrf.mxu0
        %v1014 = vpop.f32.mrf.mxu0
        %v1015 = vadd.f32 %v887, %v1014
        %v1016 = vpop.f32.mrf.mxu0
        %1017 = vmatprep.mubr.bf16.mxu0 0
        %1018 = vmatmul.mubr.bf16.gmra.mxu0 %v854
        %v1019 = vpop.f32.mrf.mxu0
        %v1020 = vadd.f32 %v887, %v1019
        %v1021 = vpop.f32.mrf.mxu0
        %v1022 = vpop.f32.mrf.mxu0
        %v1023 = vadd.f32 %v887, %v1022
        %v1024 = vpop.f32.mrf.mxu0
        %1025 = vmatprep.mubr.bf16.mxu0 0
        %1026 = vmatmul.mubr.bf16.gmra.mxu0 %v855
        %v1027 = vpop.f32.mrf.mxu0
        %v1028 = vadd.f32 %v887, %v1027
        %v1029 = vpop.f32.mrf.mxu0
        %v1030 = vpop.f32.mrf.mxu0
        %v1031 = vadd.f32 %v887, %v1030
        %v1032 = vpop.f32.mrf.mxu0
        %1033 = vmatprep.mubr.bf16.mxu0 0
        %1034 = vmatmul.mubr.bf16.gmra.mxu0 %v856
        %v1035 = vpop.f32.mrf.mxu0
        %v1036 = vadd.f32 %v887, %v1035
        %v1037 = vpop.f32.mrf.mxu0
        %v1038 = vpop.f32.mrf.mxu0
        %v1039 = vadd.f32 %v887, %v1038
        %v1040 = vpop.f32.mrf.mxu0
        %1041 = vmatprep.mubr.bf16.mxu0 0
        %1042 = vmatmul.mubr.bf16.gmra.mxu0 %v857
        %v1043 = vpop.f32.mrf.mxu0
        %v1044 = vadd.f32 %v887, %v1043
        %v1045 = vpop.f32.mrf.mxu0
        %v1046 = vpop.f32.mrf.mxu0
        %v1047 = vadd.f32 %v887, %v1046
        %v1048 = vpop.f32.mrf.mxu0
        %1049 = vmatprep.mubr.bf16.mxu0 0
        %1050 = vmatmul.mubr.bf16.gmra.mxu0 %v858
        %v1051 = vpop.f32.mrf.mxu0
        %v1052 = vadd.f32 %v887, %v1051
        %v1053 = vpop.f32.mrf.mxu0
        %v1054 = vpop.f32.mrf.mxu0
        %v1055 = vadd.f32 %v887, %v1054
        %v1056 = vpop.f32.mrf.mxu0
        %1057 = vmatprep.mubr.bf16.mxu0 0
        %1058 = vmatmul.mubr.bf16.gmra.mxu0 %v859
        %v1059 = vpop.f32.mrf.mxu0
        %v1060 = vadd.f32 %v887, %v1059
        %v1061 = vpop.f32.mrf.mxu0
        %v1062 = vpop.f32.mrf.mxu0
        %v1063 = vadd.f32 %v887, %v1062
        %v1064 = vpop.f32.mrf.mxu0
        %1065 = vmatprep.mubr.bf16.mxu0 0
        %1066 = vmatmul.mubr.bf16.gmra.mxu0 %v860
        %v1067 = vpop.f32.mrf.mxu0
        %v1068 = vadd.f32 %v887, %v1067
        %v1069 = vpop.f32.mrf.mxu0
        %v1070 = vpop.f32.mrf.mxu0
        %v1071 = vadd.f32 %v887, %v1070
        %v1072 = vpop.f32.mrf.mxu0
        %1073 = vmatprep.mubr.bf16.mxu0 0
        %1074 = vmatmul.mubr.bf16.gmra.mxu0 %v861
        %v1075 = vpop.f32.mrf.mxu0
        %v1076 = vadd.f32 %v887, %v1075
        %v1077 = vpop.f32.mrf.mxu0
        %v1078 = vpop.f32.mrf.mxu0
        %v1079 = vadd.f32 %v887, %v1078
        %v1080 = vpop.f32.mrf.mxu0
        %1081 = vmatprep.mubr.bf16.mxu0 0
        %1082 = vmatmul.mubr.bf16.gmra.mxu0 %v862
        %v1083 = vpop.f32.mrf.mxu0
        %v1084 = vadd.f32 %v887, %v1083
        %v1085 = vpop.f32.mrf.mxu0
        %v1086 = vpop.f32.mrf.mxu0
        %v1087 = vadd.f32 %v887, %v1086
        %v1088 = vpop.f32.mrf.mxu0
        %1089 = vmatprep.mubr.bf16.mxu0 0
        %1090 = vmatmul.mubr.bf16.gmra.mxu0 %v863
        %v1091 = vpop.f32.mrf.mxu0
        %v1092 = vadd.f32 %v887, %v1091
        %v1093 = vpop.f32.mrf.mxu0
        %v1094 = vpop.f32.mrf.mxu0
        %v1095 = vadd.f32 %v887, %v1094
        %v1096 = vpop.f32.mrf.mxu0
        %1097 = vdwg.mxu0
        %v1098 = vmax.f32 %v972, 0.0
        %v1099 = vmax.f32 %v975, 0.0
        %v1100 = vmax.f32 %v980, 0.0
        %v1101 = vmax.f32 %v983, 0.0
        %v1102 = vmax.f32 %v988, 0.0
        %v1103 = vmax.f32 %v991, 0.0
        %v1104 = vmax.f32 %v996, 0.0
        %v1105 = vmax.f32 %v999, 0.0
        %v1106 = vmax.f32 %v1004, 0.0
        %v1107 = vmax.f32 %v1007, 0.0
        %v1108 = vmax.f32 %v1012, 0.0
        %v1109 = vmax.f32 %v1015, 0.0
        %v1110 = vmax.f32 %v1020, 0.0
        %v1111 = vmax.f32 %v1023, 0.0
        %v1112 = vmax.f32 %v1028, 0.0
        %v1113 = vmax.f32 %v1031, 0.0
        %v1114 = vmax.f32 %v1036, 0.0
        %v1115 = vmax.f32 %v1039, 0.0
        %v1116 = vmax.f32 %v1044, 0.0
        %v1117 = vmax.f32 %v1047, 0.0
        %v1118 = vmax.f32 %v1052, 0.0
        %v1119 = vmax.f32 %v1055, 0.0
        %v1120 = vmax.f32 %v1060, 0.0
        %v1121 = vmax.f32 %v1063, 0.0
        %v1122 = vmax.f32 %v1068, 0.0
        %v1123 = vmax.f32 %v1071, 0.0
        %v1124 = vmax.f32 %v1076, 0.0
        %v1125 = vmax.f32 %v1079, 0.0
        %v1126 = vmax.f32 %v1084, 0.0
        %v1127 = vmax.f32 %v1087, 0.0
        %v1128 = vmax.f32 %v1092, 0.0
        %v1129 = vmax.f32 %v1095, 0.0
        %v1130 = vadd.f32 %v535, %v1098
        %v1131 = vadd.f32 %v536, %v1099
        %v1132 = vadd.f32 %v537, %v1100
        %v1133 = vadd.f32 %v538, %v1101
        %v1134 = vadd.f32 %v539, %v1102
        %v1135 = vadd.f32 %v540, %v1103
        %v1136 = vadd.f32 %v541, %v1104
        %v1137 = vadd.f32 %v542, %v1105
        %v1138 = vadd.f32 %v543, %v1106
        %v1139 = vadd.f32 %v544, %v1107
        %v1140 = vadd.f32 %v545, %v1108
        %v1141 = vadd.f32 %v546, %v1109
        %v1142 = vadd.f32 %v547, %v1110
        %v1143 = vadd.f32 %v548, %v1111
        %v1144 = vadd.f32 %v549, %v1112
        %v1145 = vadd.f32 %v550, %v1113
        %v1146 = vadd.f32 %v551, %v1114
        %v1147 = vadd.f32 %v552, %v1115
        %v1148 = vadd.f32 %v553, %v1116
        %v1149 = vadd.f32 %v554, %v1117
        %v1150 = vadd.f32 %v555, %v1118
        %v1151 = vadd.f32 %v556, %v1119
        %v1152 = vadd.f32 %v557, %v1120
        %v1153 = vadd.f32 %v558, %v1121
        %v1154 = vadd.f32 %v559, %v1122
        %v1155 = vadd.f32 %v560, %v1123
        %v1156 = vadd.f32 %v561, %v1124
        %v1157 = vadd.f32 %v562, %v1125
        %v1158 = vadd.f32 %v563, %v1126
        %v1159 = vadd.f32 %v564, %v1127
        %v1160 = vadd.f32 %v565, %v1128
        %v1161 = vadd.f32 %v566, %v1129
        %v1162 = vpack.c.bf16 %v1131, %v1130
        %v1163 = vpack.c.bf16 %v1133, %v1132
        %v1164 = vpack.c.bf16 %v1135, %v1134
        %v1165 = vpack.c.bf16 %v1137, %v1136
        %v1166 = vpack.c.bf16 %v1139, %v1138
        %v1167 = vpack.c.bf16 %v1141, %v1140
        %v1168 = vpack.c.bf16 %v1143, %v1142
        %v1169 = vpack.c.bf16 %v1145, %v1144
        %v1170 = vpack.c.bf16 %v1147, %v1146
        %v1171 = vpack.c.bf16 %v1149, %v1148
        %v1172 = vpack.c.bf16 %v1151, %v1150
        %v1173 = vpack.c.bf16 %v1153, %v1152
        %v1174 = vpack.c.bf16 %v1155, %v1154
        %v1175 = vpack.c.bf16 %v1157, %v1156
        %v1176 = vpack.c.bf16 %v1159, %v1158
        %v1177 = vpack.c.bf16 %v1161, %v1160
        %s1178 = scalar_lea.vmem %s3, 128
        %v1179 = vld [vmem:[%s1178] sm:$0xf]
        %v1180 = vld [vmem:[%s1178 + $0x4] sm:$0xf]
        %v1181 = vld [vmem:[%s1178 + $0x8] sm:$0xf]
        %v1182 = vld [vmem:[%s1178 + $0xc] sm:$0xf]
        %v1183 = vld [vmem:[%s1178 + $0x10] sm:$0xf]
        %v1184 = vld [vmem:[%s1178 + $0x14] sm:$0xf]
        %v1185 = vld [vmem:[%s1178 + $0x18] sm:$0xf]
        %v1186 = vld [vmem:[%s1178 + $0x1c] sm:$0xf]
        %v1187 = vld [vmem:[%s1178 + $0x20] sm:$0xf]
        %v1188 = vld [vmem:[%s1178 + $0x24] sm:$0xf]
        %v1189 = vld [vmem:[%s1178 + $0x28] sm:$0xf]
        %v1190 = vld [vmem:[%s1178 + $0x2c] sm:$0xf]
        %v1191 = vld [vmem:[%s1178 + $0x30] sm:$0xf]
        %v1192 = vld [vmem:[%s1178 + $0x34] sm:$0xf]
        %v1193 = vld [vmem:[%s1178 + $0x38] sm:$0xf]
        %v1194 = vld [vmem:[%s1178 + $0x3c] sm:$0xf]
        %s1195 = scalar_lea.vmem %s2, 3
        %v1196 = vld [vmem:[%s1195] sm:$0x1]
        %v1198 = vlaneseq
        %v1199 = vshrl.u32 %v1198, 7
        %v1200 = vsub.s32 0, %v1199
        %v1201 = vrot.slane %v1196, %v1200
        %v1219 = vunpack.c.l.b16 %v1179
        %v1220 = vunpack.c.l.b16 %v1180
        %v1221 = vunpack.c.l.b16 %v1181
        %v1222 = vunpack.c.l.b16 %v1182
        %v1223 = vunpack.c.l.b16 %v1183
        %v1224 = vunpack.c.l.b16 %v1184
        %v1225 = vunpack.c.l.b16 %v1185
        %v1226 = vunpack.c.l.b16 %v1186
        %v1227 = vunpack.c.l.b16 %v1187
        %v1228 = vunpack.c.l.b16 %v1188
        %v1229 = vunpack.c.l.b16 %v1189
        %v1230 = vunpack.c.l.b16 %v1190
        %v1231 = vunpack.c.l.b16 %v1191
        %v1232 = vunpack.c.l.b16 %v1192
        %v1233 = vunpack.c.l.b16 %v1193
        %v1234 = vunpack.c.l.b16 %v1194
        %v1235 = vpack.c.b16 %v1220, %v1219
        %v1236 = vpack.c.b16 %v1222, %v1221
        %v1237 = vpack.c.b16 %v1224, %v1223
        %v1238 = vpack.c.b16 %v1226, %v1225
        %v1239 = vpack.c.b16 %v1228, %v1227
        %v1240 = vpack.c.b16 %v1230, %v1229
        %v1241 = vpack.c.b16 %v1232, %v1231
        %v1242 = vpack.c.b16 %v1234, %v1233
        %1251 = vmatprep.subr.bf16.mxu0 0
        %1252 = vmatpush1.bf16.msra.mxu0 %v1242
        %1253 = vmatprep.subr.bf16.mxu0 0
        %1254 = vmatpush1.bf16.msra.mxu0 %v1241
        %1255 = vmatprep.subr.bf16.mxu0 0
        %1256 = vmatpush1.bf16.msra.mxu0 %v1240
        %1257 = vmatprep.subr.bf16.mxu0 0
        %1258 = vmatpush1.bf16.msra.mxu0 %v1239
        %1259 = vmatprep.subr.bf16.mxu0 0
        %1260 = vmatpush1.bf16.msra.mxu0 %v1238
        %1261 = vmatprep.subr.bf16.mxu0 0
        %1262 = vmatpush1.bf16.msra.mxu0 %v1237
        %1263 = vmatprep.subr.bf16.mxu0 0
        %1264 = vmatpush1.bf16.msra.mxu0 %v1236
        %1265 = vmatprep.subr.bf16.mxu0 0
        %1266 = vmatpush1.bf16.msra.mxu0 %v1235
        %1267 = vmatprep.subr.bf16.mxu0 0
        %1268 = vmatpush2.bf16.msra.mxu0 0
        %1269 = vmatprep.subr.bf16.mxu0 0
        %1270 = vmatpush2.bf16.msra.mxu0 0
        %1271 = vmatprep.subr.bf16.mxu0 0
        %1272 = vmatpush2.bf16.msra.mxu0 0
        %1273 = vmatprep.subr.bf16.mxu0 0
        %1274 = vmatpush2.bf16.msra.mxu0 0
        %1275 = vmatprep.subr.bf16.mxu0 0
        %1276 = vmatpush2.bf16.msra.mxu0 0
        %1277 = vmatprep.subr.bf16.mxu0 0
        %1278 = vmatpush2.bf16.msra.mxu0 0
        %1279 = vmatprep.subr.bf16.mxu0 0
        %1280 = vmatpush2.bf16.msra.mxu0 0
        %1281 = vmatprep.subr.bf16.mxu0 0
        %1282 = vmatpush2.bf16.msra.mxu0 0
        %1283 = vmatprep.mubr.bf16.mxu0 0
        %1284 = vmatmul.mubr.bf16.gmra.mxu0 %v1162
        %v1285 = vpop.f32.mrf.mxu0
        %v1286 = vadd.f32 %v1201, %v1285
        %v1287 = vpop.f32.mrf.mxu0
        %v1288 = vpop.f32.mrf.mxu0
        %v1289 = vadd.f32 %v1201, %v1288
        %v1290 = vpop.f32.mrf.mxu0
        %1291 = vmatprep.mubr.bf16.mxu0 0
        %1292 = vmatmul.mubr.bf16.gmra.mxu0 %v1163
        %v1293 = vpop.f32.mrf.mxu0
        %v1294 = vadd.f32 %v1201, %v1293
        %v1295 = vpop.f32.mrf.mxu0
        %v1296 = vpop.f32.mrf.mxu0
        %v1297 = vadd.f32 %v1201, %v1296
        %v1298 = vpop.f32.mrf.mxu0
        %1299 = vmatprep.mubr.bf16.mxu0 0
        %1300 = vmatmul.mubr.bf16.gmra.mxu0 %v1164
        %v1301 = vpop.f32.mrf.mxu0
        %v1302 = vadd.f32 %v1201, %v1301
        %v1303 = vpop.f32.mrf.mxu0
        %v1304 = vpop.f32.mrf.mxu0
        %v1305 = vadd.f32 %v1201, %v1304
        %v1306 = vpop.f32.mrf.mxu0
        %1307 = vmatprep.mubr.bf16.mxu0 0
        %1308 = vmatmul.mubr.bf16.gmra.mxu0 %v1165
        %v1309 = vpop.f32.mrf.mxu0
        %v1310 = vadd.f32 %v1201, %v1309
        %v1311 = vpop.f32.mrf.mxu0
        %v1312 = vpop.f32.mrf.mxu0
        %v1313 = vadd.f32 %v1201, %v1312
        %v1314 = vpop.f32.mrf.mxu0
        %1315 = vmatprep.mubr.bf16.mxu0 0
        %1316 = vmatmul.mubr.bf16.gmra.mxu0 %v1166
        %v1317 = vpop.f32.mrf.mxu0
        %v1318 = vadd.f32 %v1201, %v1317
        %v1319 = vpop.f32.mrf.mxu0
        %v1320 = vpop.f32.mrf.mxu0
        %v1321 = vadd.f32 %v1201, %v1320
        %v1322 = vpop.f32.mrf.mxu0
        %1323 = vmatprep.mubr.bf16.mxu0 0
        %1324 = vmatmul.mubr.bf16.gmra.mxu0 %v1167
        %v1325 = vpop.f32.mrf.mxu0
        %v1326 = vadd.f32 %v1201, %v1325
        %v1327 = vpop.f32.mrf.mxu0
        %v1328 = vpop.f32.mrf.mxu0
        %v1329 = vadd.f32 %v1201, %v1328
        %v1330 = vpop.f32.mrf.mxu0
        %1331 = vmatprep.mubr.bf16.mxu0 0
        %1332 = vmatmul.mubr.bf16.gmra.mxu0 %v1168
        %v1333 = vpop.f32.mrf.mxu0
        %v1334 = vadd.f32 %v1201, %v1333
        %v1335 = vpop.f32.mrf.mxu0
        %v1336 = vpop.f32.mrf.mxu0
        %v1337 = vadd.f32 %v1201, %v1336
        %v1338 = vpop.f32.mrf.mxu0
        %1339 = vmatprep.mubr.bf16.mxu0 0
        %1340 = vmatmul.mubr.bf16.gmra.mxu0 %v1169
        %v1341 = vpop.f32.mrf.mxu0
        %v1342 = vadd.f32 %v1201, %v1341
        %v1343 = vpop.f32.mrf.mxu0
        %v1344 = vpop.f32.mrf.mxu0
        %v1345 = vadd.f32 %v1201, %v1344
        %v1346 = vpop.f32.mrf.mxu0
        %1347 = vmatprep.mubr.bf16.mxu0 0
        %1348 = vmatmul.mubr.bf16.gmra.mxu0 %v1170
        %v1349 = vpop.f32.mrf.mxu0
        %v1350 = vadd.f32 %v1201, %v1349
        %v1351 = vpop.f32.mrf.mxu0
        %v1352 = vpop.f32.mrf.mxu0
        %v1353 = vadd.f32 %v1201, %v1352
        %v1354 = vpop.f32.mrf.mxu0
        %1355 = vmatprep.mubr.bf16.mxu0 0
        %1356 = vmatmul.mubr.bf16.gmra.mxu0 %v1171
        %v1357 = vpop.f32.mrf.mxu0
        %v1358 = vadd.f32 %v1201, %v1357
        %v1359 = vpop.f32.mrf.mxu0
        %v1360 = vpop.f32.mrf.mxu0
        %v1361 = vadd.f32 %v1201, %v1360
        %v1362 = vpop.f32.mrf.mxu0
        %1363 = vmatprep.mubr.bf16.mxu0 0
        %1364 = vmatmul.mubr.bf16.gmra.mxu0 %v1172
        %v1365 = vpop.f32.mrf.mxu0
        %v1366 = vadd.f32 %v1201, %v1365
        %v1367 = vpop.f32.mrf.mxu0
        %v1368 = vpop.f32.mrf.mxu0
        %v1369 = vadd.f32 %v1201, %v1368
        %v1370 = vpop.f32.mrf.mxu0
        %1371 = vmatprep.mubr.bf16.mxu0 0
        %1372 = vmatmul.mubr.bf16.gmra.mxu0 %v1173
        %v1373 = vpop.f32.mrf.mxu0
        %v1374 = vadd.f32 %v1201, %v1373
        %v1375 = vpop.f32.mrf.mxu0
        %v1376 = vpop.f32.mrf.mxu0
        %v1377 = vadd.f32 %v1201, %v1376
        %v1378 = vpop.f32.mrf.mxu0
        %1379 = vmatprep.mubr.bf16.mxu0 0
        %1380 = vmatmul.mubr.bf16.gmra.mxu0 %v1174
        %v1381 = vpop.f32.mrf.mxu0
        %v1382 = vadd.f32 %v1201, %v1381
        %v1383 = vpop.f32.mrf.mxu0
        %v1384 = vpop.f32.mrf.mxu0
        %v1385 = vadd.f32 %v1201, %v1384
        %v1386 = vpop.f32.mrf.mxu0
        %1387 = vmatprep.mubr.bf16.mxu0 0
        %1388 = vmatmul.mubr.bf16.gmra.mxu0 %v1175
        %v1389 = vpop.f32.mrf.mxu0
        %v1390 = vadd.f32 %v1201, %v1389
        %v1391 = vpop.f32.mrf.mxu0
        %v1392 = vpop.f32.mrf.mxu0
        %v1393 = vadd.f32 %v1201, %v1392
        %v1394 = vpop.f32.mrf.mxu0
        %1395 = vmatprep.mubr.bf16.mxu0 0
        %1396 = vmatmul.mubr.bf16.gmra.mxu0 %v1176
        %v1397 = vpop.f32.mrf.mxu0
        %v1398 = vadd.f32 %v1201, %v1397
        %v1399 = vpop.f32.mrf.mxu0
        %v1400 = vpop.f32.mrf.mxu0
        %v1401 = vadd.f32 %v1201, %v1400
        %v1402 = vpop.f32.mrf.mxu0
        %1403 = vmatprep.mubr.bf16.mxu0 0
        %1404 = vmatmul.mubr.bf16.gmra.mxu0 %v1177
        %v1405 = vpop.f32.mrf.mxu0
        %v1406 = vadd.f32 %v1201, %v1405
        %v1407 = vpop.f32.mrf.mxu0
        %v1408 = vpop.f32.mrf.mxu0
        %v1409 = vadd.f32 %v1201, %v1408
        %v1410 = vpop.f32.mrf.mxu0
        %1411 = vdwg.mxu0
        %v1412 = vmax.f32 %v1286, 0.0
        %v1413 = vmax.f32 %v1289, 0.0
        %v1414 = vmax.f32 %v1294, 0.0
        %v1415 = vmax.f32 %v1297, 0.0
        %v1416 = vmax.f32 %v1302, 0.0
        %v1417 = vmax.f32 %v1305, 0.0
        %v1418 = vmax.f32 %v1310, 0.0
        %v1419 = vmax.f32 %v1313, 0.0
        %v1420 = vmax.f32 %v1318, 0.0
        %v1421 = vmax.f32 %v1321, 0.0
        %v1422 = vmax.f32 %v1326, 0.0
        %v1423 = vmax.f32 %v1329, 0.0
        %v1424 = vmax.f32 %v1334, 0.0
        %v1425 = vmax.f32 %v1337, 0.0
        %v1426 = vmax.f32 %v1342, 0.0
        %v1427 = vmax.f32 %v1345, 0.0
        %v1428 = vmax.f32 %v1350, 0.0
        %v1429 = vmax.f32 %v1353, 0.0
        %v1430 = vmax.f32 %v1358, 0.0
        %v1431 = vmax.f32 %v1361, 0.0
        %v1432 = vmax.f32 %v1366, 0.0
        %v1433 = vmax.f32 %v1369, 0.0
        %v1434 = vmax.f32 %v1374, 0.0
        %v1435 = vmax.f32 %v1377, 0.0
        %v1436 = vmax.f32 %v1382, 0.0
        %v1437 = vmax.f32 %v1385, 0.0
        %v1438 = vmax.f32 %v1390, 0.0
        %v1439 = vmax.f32 %v1393, 0.0
        %v1440 = vmax.f32 %v1398, 0.0
        %v1441 = vmax.f32 %v1401, 0.0
        %v1442 = vmax.f32 %v1406, 0.0
        %v1443 = vmax.f32 %v1409, 0.0
        %v1444 = vpack.c.bf16 %v1413, %v1412
        %v1445 = vpack.c.bf16 %v1415, %v1414
        %v1446 = vpack.c.bf16 %v1417, %v1416
        %v1447 = vpack.c.bf16 %v1419, %v1418
        %v1448 = vpack.c.bf16 %v1421, %v1420
        %v1449 = vpack.c.bf16 %v1423, %v1422
        %v1450 = vpack.c.bf16 %v1425, %v1424
        %v1451 = vpack.c.bf16 %v1427, %v1426
        %v1452 = vpack.c.bf16 %v1429, %v1428
        %v1453 = vpack.c.bf16 %v1431, %v1430
        %v1454 = vpack.c.bf16 %v1433, %v1432
        %v1455 = vpack.c.bf16 %v1435, %v1434
        %v1456 = vpack.c.bf16 %v1437, %v1436
        %v1457 = vpack.c.bf16 %v1439, %v1438
        %v1458 = vpack.c.bf16 %v1441, %v1440
        %v1459 = vpack.c.bf16 %v1443, %v1442
        %s1460 = scalar_lea.vmem %s3, 192
        %v1461 = vld [vmem:[%s1460] sm:$0xf]
        %v1462 = vld [vmem:[%s1460 + $0x4] sm:$0xf]
        %v1463 = vld [vmem:[%s1460 + $0x8] sm:$0xf]
        %v1464 = vld [vmem:[%s1460 + $0xc] sm:$0xf]
        %v1465 = vld [vmem:[%s1460 + $0x10] sm:$0xf]
        %v1466 = vld [vmem:[%s1460 + $0x14] sm:$0xf]
        %v1467 = vld [vmem:[%s1460 + $0x18] sm:$0xf]
        %v1468 = vld [vmem:[%s1460 + $0x1c] sm:$0xf]
        %v1469 = vld [vmem:[%s1460 + $0x20] sm:$0xf]
        %v1470 = vld [vmem:[%s1460 + $0x24] sm:$0xf]
        %v1471 = vld [vmem:[%s1460 + $0x28] sm:$0xf]
        %v1472 = vld [vmem:[%s1460 + $0x2c] sm:$0xf]
        %v1473 = vld [vmem:[%s1460 + $0x30] sm:$0xf]
        %v1474 = vld [vmem:[%s1460 + $0x34] sm:$0xf]
        %v1475 = vld [vmem:[%s1460 + $0x38] sm:$0xf]
        %v1476 = vld [vmem:[%s1460 + $0x3c] sm:$0xf]
        %s1477 = scalar_lea.vmem %s2, 4
        %v1478 = vld [vmem:[%s1477] sm:$0x1]
        %v1480 = vlaneseq
        %v1481 = vshrl.u32 %v1480, 7
        %v1482 = vsub.s32 0, %v1481
        %v1483 = vrot.slane %v1478, %v1482
        %v1501 = vunpack.c.l.b16 %v1461
        %v1502 = vunpack.c.l.b16 %v1462
        %v1503 = vunpack.c.l.b16 %v1463
        %v1504 = vunpack.c.l.b16 %v1464
        %v1505 = vunpack.c.l.b16 %v1465
        %v1506 = vunpack.c.l.b16 %v1466
        %v1507 = vunpack.c.l.b16 %v1467
        %v1508 = vunpack.c.l.b16 %v1468
        %v1509 = vunpack.c.l.b16 %v1469
        %v1510 = vunpack.c.l.b16 %v1470
        %v1511 = vunpack.c.l.b16 %v1471
        %v1512 = vunpack.c.l.b16 %v1472
        %v1513 = vunpack.c.l.b16 %v1473
        %v1514 = vunpack.c.l.b16 %v1474
        %v1515 = vunpack.c.l.b16 %v1475
        %v1516 = vunpack.c.l.b16 %v1476
        %v1517 = vpack.c.b16 %v1502, %v1501
        %v1518 = vpack.c.b16 %v1504, %v1503
        %v1519 = vpack.c.b16 %v1506, %v1505
        %v1520 = vpack.c.b16 %v1508, %v1507
        %v1521 = vpack.c.b16 %v1510, %v1509
        %v1522 = vpack.c.b16 %v1512, %v1511
        %v1523 = vpack.c.b16 %v1514, %v1513
        %v1524 = vpack.c.b16 %v1516, %v1515
        %1533 = vmatprep.subr.bf16.mxu0 0
        %1534 = vmatpush1.bf16.msra.mxu0 %v1524
        %1535 = vmatprep.subr.bf16.mxu0 0
        %1536 = vmatpush1.bf16.msra.mxu0 %v1523
        %1537 = vmatprep.subr.bf16.mxu0 0
        %1538 = vmatpush1.bf16.msra.mxu0 %v1522
        %1539 = vmatprep.subr.bf16.mxu0 0
        %1540 = vmatpush1.bf16.msra.mxu0 %v1521
        %1541 = vmatprep.subr.bf16.mxu0 0
        %1542 = vmatpush1.bf16.msra.mxu0 %v1520
        %1543 = vmatprep.subr.bf16.mxu0 0
        %1544 = vmatpush1.bf16.msra.mxu0 %v1519
        %1545 = vmatprep.subr.bf16.mxu0 0
        %1546 = vmatpush1.bf16.msra.mxu0 %v1518
        %1547 = vmatprep.subr.bf16.mxu0 0
        %1548 = vmatpush1.bf16.msra.mxu0 %v1517
        %1549 = vmatprep.subr.bf16.mxu0 0
        %1550 = vmatpush2.bf16.msra.mxu0 0
        %1551 = vmatprep.subr.bf16.mxu0 0
        %1552 = vmatpush2.bf16.msra.mxu0 0
        %1553 = vmatprep.subr.bf16.mxu0 0
        %1554 = vmatpush2.bf16.msra.mxu0 0
        %1555 = vmatprep.subr.bf16.mxu0 0
        %1556 = vmatpush2.bf16.msra.mxu0 0
        %1557 = vmatprep.subr.bf16.mxu0 0
        %1558 = vmatpush2.bf16.msra.mxu0 0
        %1559 = vmatprep.subr.bf16.mxu0 0
        %1560 = vmatpush2.bf16.msra.mxu0 0
        %1561 = vmatprep.subr.bf16.mxu0 0
        %1562 = vmatpush2.bf16.msra.mxu0 0
        %1563 = vmatprep.subr.bf16.mxu0 0
        %1564 = vmatpush2.bf16.msra.mxu0 0
        %1565 = vmatprep.mubr.bf16.mxu0 0
        %1566 = vmatmul.mubr.bf16.gmra.mxu0 %v1444
        %v1567 = vpop.f32.mrf.mxu0
        %v1568 = vadd.f32 %v1483, %v1567
        %v1569 = vpop.f32.mrf.mxu0
        %v1570 = vpop.f32.mrf.mxu0
        %v1571 = vadd.f32 %v1483, %v1570
        %v1572 = vpop.f32.mrf.mxu0
        %1573 = vmatprep.mubr.bf16.mxu0 0
        %1574 = vmatmul.mubr.bf16.gmra.mxu0 %v1445
        %v1575 = vpop.f32.mrf.mxu0
        %v1576 = vadd.f32 %v1483, %v1575
        %v1577 = vpop.f32.mrf.mxu0
        %v1578 = vpop.f32.mrf.mxu0
        %v1579 = vadd.f32 %v1483, %v1578
        %v1580 = vpop.f32.mrf.mxu0
        %1581 = vmatprep.mubr.bf16.mxu0 0
        %1582 = vmatmul.mubr.bf16.gmra.mxu0 %v1446
        %v1583 = vpop.f32.mrf.mxu0
        %v1584 = vadd.f32 %v1483, %v1583
        %v1585 = vpop.f32.mrf.mxu0
        %v1586 = vpop.f32.mrf.mxu0
        %v1587 = vadd.f32 %v1483, %v1586
        %v1588 = vpop.f32.mrf.mxu0
        %1589 = vmatprep.mubr.bf16.mxu0 0
        %1590 = vmatmul.mubr.bf16.gmra.mxu0 %v1447
        %v1591 = vpop.f32.mrf.mxu0
        %v1592 = vadd.f32 %v1483, %v1591
        %v1593 = vpop.f32.mrf.mxu0
        %v1594 = vpop.f32.mrf.mxu0
        %v1595 = vadd.f32 %v1483, %v1594
        %v1596 = vpop.f32.mrf.mxu0
        %1597 = vmatprep.mubr.bf16.mxu0 0
        %1598 = vmatmul.mubr.bf16.gmra.mxu0 %v1448
        %v1599 = vpop.f32.mrf.mxu0
        %v1600 = vadd.f32 %v1483, %v1599
        %v1601 = vpop.f32.mrf.mxu0
        %v1602 = vpop.f32.mrf.mxu0
        %v1603 = vadd.f32 %v1483, %v1602
        %v1604 = vpop.f32.mrf.mxu0
        %1605 = vmatprep.mubr.bf16.mxu0 0
        %1606 = vmatmul.mubr.bf16.gmra.mxu0 %v1449
        %v1607 = vpop.f32.mrf.mxu0
        %v1608 = vadd.f32 %v1483, %v1607
        %v1609 = vpop.f32.mrf.mxu0
        %v1610 = vpop.f32.mrf.mxu0
        %v1611 = vadd.f32 %v1483, %v1610
        %v1612 = vpop.f32.mrf.mxu0
        %1613 = vmatprep.mubr.bf16.mxu0 0
        %1614 = vmatmul.mubr.bf16.gmra.mxu0 %v1450
        %v1615 = vpop.f32.mrf.mxu0
        %v1616 = vadd.f32 %v1483, %v1615
        %v1617 = vpop.f32.mrf.mxu0
        %v1618 = vpop.f32.mrf.mxu0
        %v1619 = vadd.f32 %v1483, %v1618
        %v1620 = vpop.f32.mrf.mxu0
        %1621 = vmatprep.mubr.bf16.mxu0 0
        %1622 = vmatmul.mubr.bf16.gmra.mxu0 %v1451
        %v1623 = vpop.f32.mrf.mxu0
        %v1624 = vadd.f32 %v1483, %v1623
        %v1625 = vpop.f32.mrf.mxu0
        %v1626 = vpop.f32.mrf.mxu0
        %v1627 = vadd.f32 %v1483, %v1626
        %v1628 = vpop.f32.mrf.mxu0
        %1629 = vmatprep.mubr.bf16.mxu0 0
        %1630 = vmatmul.mubr.bf16.gmra.mxu0 %v1452
        %v1631 = vpop.f32.mrf.mxu0
        %v1632 = vadd.f32 %v1483, %v1631
        %v1633 = vpop.f32.mrf.mxu0
        %v1634 = vpop.f32.mrf.mxu0
        %v1635 = vadd.f32 %v1483, %v1634
        %v1636 = vpop.f32.mrf.mxu0
        %1637 = vmatprep.mubr.bf16.mxu0 0
        %1638 = vmatmul.mubr.bf16.gmra.mxu0 %v1453
        %v1639 = vpop.f32.mrf.mxu0
        %v1640 = vadd.f32 %v1483, %v1639
        %v1641 = vpop.f32.mrf.mxu0
        %v1642 = vpop.f32.mrf.mxu0
        %v1643 = vadd.f32 %v1483, %v1642
        %v1644 = vpop.f32.mrf.mxu0
        %1645 = vmatprep.mubr.bf16.mxu0 0
        %1646 = vmatmul.mubr.bf16.gmra.mxu0 %v1454
        %v1647 = vpop.f32.mrf.mxu0
        %v1648 = vadd.f32 %v1483, %v1647
        %v1649 = vpop.f32.mrf.mxu0
        %v1650 = vpop.f32.mrf.mxu0
        %v1651 = vadd.f32 %v1483, %v1650
        %v1652 = vpop.f32.mrf.mxu0
        %1653 = vmatprep.mubr.bf16.mxu0 0
        %1654 = vmatmul.mubr.bf16.gmra.mxu0 %v1455
        %v1655 = vpop.f32.mrf.mxu0
        %v1656 = vadd.f32 %v1483, %v1655
        %v1657 = vpop.f32.mrf.mxu0
        %v1658 = vpop.f32.mrf.mxu0
        %v1659 = vadd.f32 %v1483, %v1658
        %v1660 = vpop.f32.mrf.mxu0
        %1661 = vmatprep.mubr.bf16.mxu0 0
        %1662 = vmatmul.mubr.bf16.gmra.mxu0 %v1456
        %v1663 = vpop.f32.mrf.mxu0
        %v1664 = vadd.f32 %v1483, %v1663
        %v1665 = vpop.f32.mrf.mxu0
        %v1666 = vpop.f32.mrf.mxu0
        %v1667 = vadd.f32 %v1483, %v1666
        %v1668 = vpop.f32.mrf.mxu0
        %1669 = vmatprep.mubr.bf16.mxu0 0
        %1670 = vmatmul.mubr.bf16.gmra.mxu0 %v1457
        %v1671 = vpop.f32.mrf.mxu0
        %v1672 = vadd.f32 %v1483, %v1671
        %v1673 = vpop.f32.mrf.mxu0
        %v1674 = vpop.f32.mrf.mxu0
        %v1675 = vadd.f32 %v1483, %v1674
        %v1676 = vpop.f32.mrf.mxu0
        %1677 = vmatprep.mubr.bf16.mxu0 0
        %1678 = vmatmul.mubr.bf16.gmra.mxu0 %v1458
        %v1679 = vpop.f32.mrf.mxu0
        %v1680 = vadd.f32 %v1483, %v1679
        %v1681 = vpop.f32.mrf.mxu0
        %v1682 = vpop.f32.mrf.mxu0
        %v1683 = vadd.f32 %v1483, %v1682
        %v1684 = vpop.f32.mrf.mxu0
        %1685 = vmatprep.mubr.bf16.mxu0 0
        %1686 = vmatmul.mubr.bf16.gmra.mxu0 %v1459
        %v1687 = vpop.f32.mrf.mxu0
        %v1688 = vadd.f32 %v1483, %v1687
        %v1689 = vpop.f32.mrf.mxu0
        %v1690 = vpop.f32.mrf.mxu0
        %v1691 = vadd.f32 %v1483, %v1690
        %v1692 = vpop.f32.mrf.mxu0
        %1693 = vdwg.mxu0
        %v1694 = vmax.f32 %v1568, 0.0
        %v1695 = vmax.f32 %v1571, 0.0
        %v1696 = vmax.f32 %v1576, 0.0
        %v1697 = vmax.f32 %v1579, 0.0
        %v1698 = vmax.f32 %v1584, 0.0
        %v1699 = vmax.f32 %v1587, 0.0
        %v1700 = vmax.f32 %v1592, 0.0
        %v1701 = vmax.f32 %v1595, 0.0
        %v1702 = vmax.f32 %v1600, 0.0
        %v1703 = vmax.f32 %v1603, 0.0
        %v1704 = vmax.f32 %v1608, 0.0
        %v1705 = vmax.f32 %v1611, 0.0
        %v1706 = vmax.f32 %v1616, 0.0
        %v1707 = vmax.f32 %v1619, 0.0
        %v1708 = vmax.f32 %v1624, 0.0
        %v1709 = vmax.f32 %v1627, 0.0
        %v1710 = vmax.f32 %v1632, 0.0
        %v1711 = vmax.f32 %v1635, 0.0
        %v1712 = vmax.f32 %v1640, 0.0
        %v1713 = vmax.f32 %v1643, 0.0
        %v1714 = vmax.f32 %v1648, 0.0
        %v1715 = vmax.f32 %v1651, 0.0
        %v1716 = vmax.f32 %v1656, 0.0
        %v1717 = vmax.f32 %v1659, 0.0
        %v1718 = vmax.f32 %v1664, 0.0
        %v1719 = vmax.f32 %v1667, 0.0
        %v1720 = vmax.f32 %v1672, 0.0
        %v1721 = vmax.f32 %v1675, 0.0
        %v1722 = vmax.f32 %v1680, 0.0
        %v1723 = vmax.f32 %v1683, 0.0
        %v1724 = vmax.f32 %v1688, 0.0
        %v1725 = vmax.f32 %v1691, 0.0
        %v1726 = vadd.f32 %v1130, %v1694
        %v1727 = vadd.f32 %v1131, %v1695
        %v1728 = vadd.f32 %v1132, %v1696
        %v1729 = vadd.f32 %v1133, %v1697
        %v1730 = vadd.f32 %v1134, %v1698
        %v1731 = vadd.f32 %v1135, %v1699
        %v1732 = vadd.f32 %v1136, %v1700
        %v1733 = vadd.f32 %v1137, %v1701
        %v1734 = vadd.f32 %v1138, %v1702
        %v1735 = vadd.f32 %v1139, %v1703
        %v1736 = vadd.f32 %v1140, %v1704
        %v1737 = vadd.f32 %v1141, %v1705
        %v1738 = vadd.f32 %v1142, %v1706
        %v1739 = vadd.f32 %v1143, %v1707
        %v1740 = vadd.f32 %v1144, %v1708
        %v1741 = vadd.f32 %v1145, %v1709
        %v1742 = vadd.f32 %v1146, %v1710
        %v1743 = vadd.f32 %v1147, %v1711
        %v1744 = vadd.f32 %v1148, %v1712
        %v1745 = vadd.f32 %v1149, %v1713
        %v1746 = vadd.f32 %v1150, %v1714
        %v1747 = vadd.f32 %v1151, %v1715
        %v1748 = vadd.f32 %v1152, %v1716
        %v1749 = vadd.f32 %v1153, %v1717
        %v1750 = vadd.f32 %v1154, %v1718
        %v1751 = vadd.f32 %v1155, %v1719
        %v1752 = vadd.f32 %v1156, %v1720
        %v1753 = vadd.f32 %v1157, %v1721
        %v1754 = vadd.f32 %v1158, %v1722
        %v1755 = vadd.f32 %v1159, %v1723
        %v1756 = vadd.f32 %v1160, %v1724
        %v1757 = vadd.f32 %v1161, %v1725
        %v1758 = vpack.c.bf16 %v1727, %v1726
        %v1759 = vpack.c.bf16 %v1729, %v1728
        %v1760 = vpack.c.bf16 %v1731, %v1730
        %v1761 = vpack.c.bf16 %v1733, %v1732
        %v1762 = vpack.c.bf16 %v1735, %v1734
        %v1763 = vpack.c.bf16 %v1737, %v1736
        %v1764 = vpack.c.bf16 %v1739, %v1738
        %v1765 = vpack.c.bf16 %v1741, %v1740
        %v1766 = vpack.c.bf16 %v1743, %v1742
        %v1767 = vpack.c.bf16 %v1745, %v1744
        %v1768 = vpack.c.bf16 %v1747, %v1746
        %v1769 = vpack.c.bf16 %v1749, %v1748
        %v1770 = vpack.c.bf16 %v1751, %v1750
        %v1771 = vpack.c.bf16 %v1753, %v1752
        %v1772 = vpack.c.bf16 %v1755, %v1754
        %v1773 = vpack.c.bf16 %v1757, %v1756
        %v1774 = vld [vmem:[%s4] sm:$0xf]
        %v1775 = vld [vmem:[%s4 + $0x4] sm:$0xf]
        %v1776 = vld [vmem:[%s4 + $0x8] sm:$0xf]
        %v1777 = vld [vmem:[%s4 + $0xc] sm:$0xf]
        %v1778 = vld [vmem:[%s4 + $0x10] sm:$0xf]
        %v1779 = vld [vmem:[%s4 + $0x14] sm:$0xf]
        %v1780 = vld [vmem:[%s4 + $0x18] sm:$0xf]
        %v1781 = vld [vmem:[%s4 + $0x1c] sm:$0xf]
        %v1782 = vld [vmem:[%s4 + $0x20] sm:$0xf]
        %v1783 = vld [vmem:[%s4 + $0x24] sm:$0xf]
        %v1784 = vld [vmem:[%s4 + $0x28] sm:$0xf]
        %v1785 = vld [vmem:[%s4 + $0x2c] sm:$0xf]
        %v1786 = vld [vmem:[%s4 + $0x30] sm:$0xf]
        %v1787 = vld [vmem:[%s4 + $0x34] sm:$0xf]
        %v1788 = vld [vmem:[%s4 + $0x38] sm:$0xf]
        %v1789 = vld [vmem:[%s4 + $0x3c] sm:$0xf]
        %v1790 = vld [vmem:[%s5] sm:$0x1]
        %v1792 = vlaneseq
        %v1793 = vshrl.u32 %v1792, 7
        %v1794 = vsub.s32 0, %v1793
        %v1795 = vrot.slane %v1790, %v1794
        %v1813 = vunpack.c.l.b16 %v1774
        %v1814 = vunpack.c.l.b16 %v1775
        %v1815 = vunpack.c.l.b16 %v1776
        %v1816 = vunpack.c.l.b16 %v1777
        %v1817 = vunpack.c.l.b16 %v1778
        %v1818 = vunpack.c.l.b16 %v1779
        %v1819 = vunpack.c.l.b16 %v1780
        %v1820 = vunpack.c.l.b16 %v1781
        %v1821 = vunpack.c.l.b16 %v1782
        %v1822 = vunpack.c.l.b16 %v1783
        %v1823 = vunpack.c.l.b16 %v1784
        %v1824 = vunpack.c.l.b16 %v1785
        %v1825 = vunpack.c.l.b16 %v1786
        %v1826 = vunpack.c.l.b16 %v1787
        %v1827 = vunpack.c.l.b16 %v1788
        %v1828 = vunpack.c.l.b16 %v1789
        %v1829 = vpack.c.b16 %v1814, %v1813
        %v1830 = vpack.c.b16 %v1816, %v1815
        %v1831 = vpack.c.b16 %v1818, %v1817
        %v1832 = vpack.c.b16 %v1820, %v1819
        %v1833 = vpack.c.b16 %v1822, %v1821
        %v1834 = vpack.c.b16 %v1824, %v1823
        %v1835 = vpack.c.b16 %v1826, %v1825
        %v1836 = vpack.c.b16 %v1828, %v1827
        %1845 = vmatprep.subr.bf16.mxu0 0
        %1846 = vmatpush1.bf16.msra.mxu0 %v1836
        %1847 = vmatprep.subr.bf16.mxu0 0
        %1848 = vmatpush1.bf16.msra.mxu0 %v1835
        %1849 = vmatprep.subr.bf16.mxu0 0
        %1850 = vmatpush1.bf16.msra.mxu0 %v1834
        %1851 = vmatprep.subr.bf16.mxu0 0
        %1852 = vmatpush1.bf16.msra.mxu0 %v1833
        %1853 = vmatprep.subr.bf16.mxu0 0
        %1854 = vmatpush1.bf16.msra.mxu0 %v1832
        %1855 = vmatprep.subr.bf16.mxu0 0
        %1856 = vmatpush1.bf16.msra.mxu0 %v1831
        %1857 = vmatprep.subr.bf16.mxu0 0
        %1858 = vmatpush1.bf16.msra.mxu0 %v1830
        %1859 = vmatprep.subr.bf16.mxu0 0
        %1860 = vmatpush1.bf16.msra.mxu0 %v1829
        %1861 = vmatprep.subr.bf16.mxu0 0
        %1862 = vmatpush2.bf16.msra.mxu0 0
        %1863 = vmatprep.subr.bf16.mxu0 0
        %1864 = vmatpush2.bf16.msra.mxu0 0
        %1865 = vmatprep.subr.bf16.mxu0 0
        %1866 = vmatpush2.bf16.msra.mxu0 0
        %1867 = vmatprep.subr.bf16.mxu0 0
        %1868 = vmatpush2.bf16.msra.mxu0 0
        %1869 = vmatprep.subr.bf16.mxu0 0
        %1870 = vmatpush2.bf16.msra.mxu0 0
        %1871 = vmatprep.subr.bf16.mxu0 0
        %1872 = vmatpush2.bf16.msra.mxu0 0
        %1873 = vmatprep.subr.bf16.mxu0 0
        %1874 = vmatpush2.bf16.msra.mxu0 0
        %1875 = vmatprep.subr.bf16.mxu0 0
        %1876 = vmatpush2.bf16.msra.mxu0 0
        %1877 = vmatprep.mubr.bf16.mxu0 0
        %1878 = vmatmul.mubr.bf16.gmra.mxu0 %v1758
        %v1879 = vpop.f32.mrf.mxu0
        %v1880 = vadd.f32 %v1795, %v1879
        %v1881 = vpop.f32.mrf.mxu0
        %v1882 = vpop.f32.mrf.mxu0
        %v1883 = vadd.f32 %v1795, %v1882
        %v1884 = vpop.f32.mrf.mxu0
        %1885 = vmatprep.mubr.bf16.mxu0 0
        %1886 = vmatmul.mubr.bf16.gmra.mxu0 %v1759
        %v1887 = vpop.f32.mrf.mxu0
        %v1888 = vadd.f32 %v1795, %v1887
        %v1889 = vpop.f32.mrf.mxu0
        %v1890 = vpop.f32.mrf.mxu0
        %v1891 = vadd.f32 %v1795, %v1890
        %v1892 = vpop.f32.mrf.mxu0
        %1893 = vmatprep.mubr.bf16.mxu0 0
        %1894 = vmatmul.mubr.bf16.gmra.mxu0 %v1760
        %v1895 = vpop.f32.mrf.mxu0
        %v1896 = vadd.f32 %v1795, %v1895
        %v1897 = vpop.f32.mrf.mxu0
        %v1898 = vpop.f32.mrf.mxu0
        %v1899 = vadd.f32 %v1795, %v1898
        %v1900 = vpop.f32.mrf.mxu0
        %1901 = vmatprep.mubr.bf16.mxu0 0
        %1902 = vmatmul.mubr.bf16.gmra.mxu0 %v1761
        %v1903 = vpop.f32.mrf.mxu0
        %v1904 = vadd.f32 %v1795, %v1903
        %v1905 = vpop.f32.mrf.mxu0
        %v1906 = vpop.f32.mrf.mxu0
        %v1907 = vadd.f32 %v1795, %v1906
        %v1908 = vpop.f32.mrf.mxu0
        %1909 = vmatprep.mubr.bf16.mxu0 0
        %1910 = vmatmul.mubr.bf16.gmra.mxu0 %v1762
        %v1911 = vpop.f32.mrf.mxu0
        %v1912 = vadd.f32 %v1795, %v1911
        %v1913 = vpop.f32.mrf.mxu0
        %v1914 = vpop.f32.mrf.mxu0
        %v1915 = vadd.f32 %v1795, %v1914
        %v1916 = vpop.f32.mrf.mxu0
        %1917 = vmatprep.mubr.bf16.mxu0 0
        %1918 = vmatmul.mubr.bf16.gmra.mxu0 %v1763
        %v1919 = vpop.f32.mrf.mxu0
        %v1920 = vadd.f32 %v1795, %v1919
        %v1921 = vpop.f32.mrf.mxu0
        %v1922 = vpop.f32.mrf.mxu0
        %v1923 = vadd.f32 %v1795, %v1922
        %v1924 = vpop.f32.mrf.mxu0
        %1925 = vmatprep.mubr.bf16.mxu0 0
        %1926 = vmatmul.mubr.bf16.gmra.mxu0 %v1764
        %v1927 = vpop.f32.mrf.mxu0
        %v1928 = vadd.f32 %v1795, %v1927
        %v1929 = vpop.f32.mrf.mxu0
        %v1930 = vpop.f32.mrf.mxu0
        %v1931 = vadd.f32 %v1795, %v1930
        %v1932 = vpop.f32.mrf.mxu0
        %1933 = vmatprep.mubr.bf16.mxu0 0
        %1934 = vmatmul.mubr.bf16.gmra.mxu0 %v1765
        %v1935 = vpop.f32.mrf.mxu0
        %v1936 = vadd.f32 %v1795, %v1935
        %v1937 = vpop.f32.mrf.mxu0
        %v1938 = vpop.f32.mrf.mxu0
        %v1939 = vadd.f32 %v1795, %v1938
        %v1940 = vpop.f32.mrf.mxu0
        %1941 = vmatprep.mubr.bf16.mxu0 0
        %1942 = vmatmul.mubr.bf16.gmra.mxu0 %v1766
        %v1943 = vpop.f32.mrf.mxu0
        %v1944 = vadd.f32 %v1795, %v1943
        %v1945 = vpop.f32.mrf.mxu0
        %v1946 = vpop.f32.mrf.mxu0
        %v1947 = vadd.f32 %v1795, %v1946
        %v1948 = vpop.f32.mrf.mxu0
        %1949 = vmatprep.mubr.bf16.mxu0 0
        %1950 = vmatmul.mubr.bf16.gmra.mxu0 %v1767
        %v1951 = vpop.f32.mrf.mxu0
        %v1952 = vadd.f32 %v1795, %v1951
        %v1953 = vpop.f32.mrf.mxu0
        %v1954 = vpop.f32.mrf.mxu0
        %v1955 = vadd.f32 %v1795, %v1954
        %v1956 = vpop.f32.mrf.mxu0
        %1957 = vmatprep.mubr.bf16.mxu0 0
        %1958 = vmatmul.mubr.bf16.gmra.mxu0 %v1768
        %v1959 = vpop.f32.mrf.mxu0
        %v1960 = vadd.f32 %v1795, %v1959
        %v1961 = vpop.f32.mrf.mxu0
        %v1962 = vpop.f32.mrf.mxu0
        %v1963 = vadd.f32 %v1795, %v1962
        %v1964 = vpop.f32.mrf.mxu0
        %1965 = vmatprep.mubr.bf16.mxu0 0
        %1966 = vmatmul.mubr.bf16.gmra.mxu0 %v1769
        %v1967 = vpop.f32.mrf.mxu0
        %v1968 = vadd.f32 %v1795, %v1967
        %v1969 = vpop.f32.mrf.mxu0
        %v1970 = vpop.f32.mrf.mxu0
        %v1971 = vadd.f32 %v1795, %v1970
        %v1972 = vpop.f32.mrf.mxu0
        %1973 = vmatprep.mubr.bf16.mxu0 0
        %1974 = vmatmul.mubr.bf16.gmra.mxu0 %v1770
        %v1975 = vpop.f32.mrf.mxu0
        %v1976 = vadd.f32 %v1795, %v1975
        %v1977 = vpop.f32.mrf.mxu0
        %v1978 = vpop.f32.mrf.mxu0
        %v1979 = vadd.f32 %v1795, %v1978
        %v1980 = vpop.f32.mrf.mxu0
        %1981 = vmatprep.mubr.bf16.mxu0 0
        %1982 = vmatmul.mubr.bf16.gmra.mxu0 %v1771
        %v1983 = vpop.f32.mrf.mxu0
        %v1984 = vadd.f32 %v1795, %v1983
        %v1985 = vpop.f32.mrf.mxu0
        %v1986 = vpop.f32.mrf.mxu0
        %v1987 = vadd.f32 %v1795, %v1986
        %v1988 = vpop.f32.mrf.mxu0
        %1989 = vmatprep.mubr.bf16.mxu0 0
        %1990 = vmatmul.mubr.bf16.gmra.mxu0 %v1772
        %v1991 = vpop.f32.mrf.mxu0
        %v1992 = vadd.f32 %v1795, %v1991
        %v1993 = vpop.f32.mrf.mxu0
        %v1994 = vpop.f32.mrf.mxu0
        %v1995 = vadd.f32 %v1795, %v1994
        %v1996 = vpop.f32.mrf.mxu0
        %1997 = vmatprep.mubr.bf16.mxu0 0
        %1998 = vmatmul.mubr.bf16.gmra.mxu0 %v1773
        %v1999 = vpop.f32.mrf.mxu0
        %v2000 = vadd.f32 %v1795, %v1999
        %v2001 = vpop.f32.mrf.mxu0
        %v2002 = vpop.f32.mrf.mxu0
        %v2003 = vadd.f32 %v1795, %v2002
        %v2004 = vpop.f32.mrf.mxu0
        %2005 = vdwg.mxu0
        %2006 = vst [vmem:[%s245] sm:$0xff] %v1880
        %2007 = vst [vmem:[%s245 + $0x8] sm:$0xff] %v1883
        %2008 = vst [vmem:[%s245 + $0x10] sm:$0xff] %v1888
        %2009 = vst [vmem:[%s245 + $0x18] sm:$0xff] %v1891
        %2010 = vst [vmem:[%s245 + $0x20] sm:$0xff] %v1896
        %2011 = vst [vmem:[%s245 + $0x28] sm:$0xff] %v1899
        %2012 = vst [vmem:[%s245 + $0x30] sm:$0xff] %v1904
        %2013 = vst [vmem:[%s245 + $0x38] sm:$0xff] %v1907
        %2014 = vst [vmem:[%s245 + $0x40] sm:$0xff] %v1912
        %2015 = vst [vmem:[%s245 + $0x48] sm:$0xff] %v1915
        %2016 = vst [vmem:[%s245 + $0x50] sm:$0xff] %v1920
        %2017 = vst [vmem:[%s245 + $0x58] sm:$0xff] %v1923
        %2018 = vst [vmem:[%s245 + $0x60] sm:$0xff] %v1928
        %2019 = vst [vmem:[%s245 + $0x68] sm:$0xff] %v1931
        %2020 = vst [vmem:[%s245 + $0x70] sm:$0xff] %v1936
        %2021 = vst [vmem:[%s245 + $0x78] sm:$0xff] %v1939
        %2022 = vst [vmem:[%s245 + $0x80] sm:$0xff] %v1944
        %2023 = vst [vmem:[%s245 + $0x88] sm:$0xff] %v1947
        %2024 = vst [vmem:[%s245 + $0x90] sm:$0xff] %v1952
        %2025 = vst [vmem:[%s245 + $0x98] sm:$0xff] %v1955
        %2026 = vst [vmem:[%s245 + $0xa0] sm:$0xff] %v1960
        %2027 = vst [vmem:[%s245 + $0xa8] sm:$0xff] %v1963
        %2028 = vst [vmem:[%s245 + $0xb0] sm:$0xff] %v1968
        %2029 = vst [vmem:[%s245 + $0xb8] sm:$0xff] %v1971
        %2030 = vst [vmem:[%s245 + $0xc0] sm:$0xff] %v1976
        %2031 = vst [vmem:[%s245 + $0xc8] sm:$0xff] %v1979
        %2032 = vst [vmem:[%s245 + $0xd0] sm:$0xff] %v1984
        %2033 = vst [vmem:[%s245 + $0xd8] sm:$0xff] %v1987
        %2034 = vst [vmem:[%s245 + $0xe0] sm:$0xff] %v1992
        %2035 = vst [vmem:[%s245 + $0xe8] sm:$0xff] %v1995
        %2036 = vst [vmem:[%s245 + $0xf0] sm:$0xff] %v2000
        %2037 = vst [vmem:[%s245 + $0xf8] sm:$0xff] %v2003
        %s2038 = sand.u32 %s159, 1
        %s2039 = scalar_lea.sflag [#allocation3], %s2038
        %s2040 = sand.u32 %s159, 1
        %s2041 = smul.addr %s2040, 256
        %s2042 = scalar_lea.vmem [#allocation2], %s2041
        // Predicated region
        $region45: #{_forward_padded.1} parent=43 // pred_check
          %p2043 = pneg %p169
        $region46: #{_forward_padded.1} parent=43 // pred_check_branch
          %2045 = sbr.rel (%p2043) target = $region48
        $region47: #{_forward_padded.1} parent=43 // pred_region
          %s2046 = smul.u32 32, %s20
          %s2048 = ssub.s32 4096, 4096
          %2049 = vsyncadd %s2039, %s2048
          %s2050 = smul.addr %s2046, 128
          %s2051 = scalar_lea.hbm %s6, %s2050
          %s2052 = sshll.u32 %s2042, 4
          %s2053 = int_to_ptr.vmem [resolvable:$true] %s2052
          %2058 = dma.vmem_to_hbm [thread:$0]  %s2053, 4096, %s2051, %s2039, 128, 128, 8
        $region48: #{_forward_padded.1} parent=43 // pred_fallthru
          _
      $region44: #{_forward_padded.1} parent=5 // pred_fallthru
        _
      %p2059 = scmp.le.s32.totalorder 2, %s15
      // Predicated region
      $region49: #{_forward_padded.1} parent=5 // pred_check
        %p2060 = pneg %p2059
      $region50: #{_forward_padded.1} parent=5 // pred_check_branch
        %2062 = sbr.rel (%p2060) target = $region52
      $region51: #{_forward_padded.1} parent=5 // pred_region
        %s2063 = ssub.s32 %s15, 2
        // Predicated region
        $region53: #{_forward_padded.1} parent=51 // pred_check
          %p2064 = pneg %p175
        $region54: #{_forward_padded.1} parent=51 // pred_check_branch
          %2066 = sbr.rel (%p2064) target = $region56
        $region55: #{_forward_padded.1} parent=51 // pred_region
          %s2067 = sand.u32 %s160, 1
          %s2068 = scalar_lea.sflag [#allocation3], %s2067
          %s2069 = sand.u32 %s160, 1
          %s2070 = smul.addr %s2069, 256
          %s2071 = scalar_lea.vmem [#allocation2], %s2070
          %2072 = dma.done %s2068, 4096
        $region56: #{_forward_padded.1} parent=51 // pred_fallthru
          _
      $region52: #{_forward_padded.1} parent=5 // pred_fallthru
        _
    $region6: #{_forward_padded.1} parent=1 // loop_footer
      %s19 = sadd.s32 1, %s15
    $region7: #{_forward_padded.1} parent=1 // loop_footer_branch
      %14 = sbr.rel target = $region3
    $region8: #{_forward_padded.1} parent=1 // loop_exit
      _
    %2073 = vsyncpa [#allocation3], 1
    %s2074 = scalar_lea.sflag [#allocation3], 1
    %2075 = vsyncpa %s2074, 1

// kernel: _forward_padded.1
$region0: #{_forward_padded.1}
  #allocation0 [shape = 'u32[]', space=smem, size = 0x4, offset = 0x4, fixed_abs, tag = 'smem constant byte address 0x4 - core index']
  #allocation1 [shape = 'u32[144,128]{1,0:T(1,128)}', space=vmem, size = 0x12000, scoped, tag = 'internal scratch']
  %s0 = inlined_call_operand.vmem [shape: f32[512,32], index: 0, kind: input, shape index: {}]
  %s1 = inlined_call_operand.vmem [shape: bf16[32,128], index: 1, kind: input, shape index: {}]
  %s2 = inlined_call_operand.vmem [shape: f32[5,1,128], index: 2, kind: input, shape index: {}]
  %s3 = inlined_call_operand.vmem [shape: bf16[4,128,128], index: 3, kind: input, shape index: {}]
  %s4 = inlined_call_operand.vmem [shape: bf16[128,128], index: 4, kind: input, shape index: {}]
  %s5 = inlined_call_operand.vmem [shape: f32[1,128], index: 5, kind: input, shape index: {}]
  %s6 = inlined_call_operand.hbm [shape: f32[512,128], index: 6, kind: output, shape index: {}]
  %s7 = sld [smem:[#allocation0]]
  $region57: #{_forward_padded.1} parent=0
    _
  %s9 = ssub.s32 1, %s7
  %s10 = scalar_select 0, %s9, %s7
  $region1: #{_forward_padded.1} parent=0
    #allocation2 [shape = 'u8[262144]{0}', space=vmem, size = 0x40000, scoped, tag = 'output window, operand 0']
    #allocation3 [shape = 's32[2]{0}', space=sflag, size = 0x8, scoped, tag = 'scoped memory for _forward_padded.1']
    %11 = vsyncpa [#allocation3], 0
    %s12 = scalar_lea.sflag [#allocation3], 1
    %13 = vsyncpa %s12, 0
    loop: start=0, step=1, limit=4
    $region2: #{_forward_padded.1} parent=1 // loop_pre_header
      _
    $region3: #{_forward_padded.1} parent=1 // loop_header
      %s15 = sphi 0, %s19
      %p16 = scmp.ge.s32.totalorder %s15, 4
      %s25 = sphi 0, %s27
      %s28 = sphi 0, %s25
      %s29 = sphi 0, %s28
      %s45 = sphi 0, %s29
      %s49 = sphi 0, %s49
      %s51 = sphi 0, %s49
      %s52 = sphi 0, %s51
      %s66 = sphi 0, %s52
      %s70 = sphi 0, %s70
      %s72 = sphi 0, %s70
      %s73 = sphi 0, %s72
      %s87 = sphi 0, %s73
      %s91 = sphi 0, %s91
      %s93 = sphi 0, %s91
      %s94 = sphi 0, %s93
      %s108 = sphi 0, %s94
      %s112 = sphi 0, %s112
      %s114 = sphi 0, %s112
      %s115 = sphi 0, %s114
      %s129 = sphi 0, %s115
      %s133 = sphi 0, %s133
      %s135 = sphi 0, %s133
      %s136 = sphi 0, %s135
      %s150 = sphi 0, %s136
      %s156 = sphi 0, %s158
      %s159 = sphi 0, %s156
      %s160 = sphi 0, %s159
      %s176 = sphi 0, %s160
    $region4: #{_forward_padded.1} parent=1 // loop_header_branch
      %18 = sbr.rel (%p16) target = $region8
    $region5: #{_forward_padded.1} parent=1 // loop_body
      %s20 = ssub.s32 %s15, 1
      %s21 = ssub.s32 %s15, 2
      %s22 = sadd.s32 %s15, 1
      %s23 = ssub.s32 %s15, %s22
      %p24 = scmp.eq.s32.totalorder %s23, 0
      %s26 = sadd.s32 %s25, 1
      %s27 = scalar_select %p24, %s25, %s26
      %p30 = pneg %p24
      %p31 = scmp.eq.s32.totalorder %s15, 1
      %p32 = por %p30, %p31
      %p33 = scmp.ne.s32.totalorder %s25, %s28
      %p34 = scmp.eq.s32.totalorder %s15, 0
      %p35 = por %p33, %p34
      %p36 = scmp.ne.s32.totalorder %s25, %s28
      %p37 = scmp.eq.s32.totalorder %s20, 1
      %p38 = por %p36, %p37
      %p39 = scmp.ne.s32.totalorder %s28, %s29
      %p40 = scmp.eq.s32.totalorder %s20, 0
      %p41 = por %p39, %p40
      %p42 = scmp.ne.s32.totalorder %s28, %s29
      %p43 = scmp.eq.s32.totalorder %s21, 1
      %p44 = por %p42, %p43
      %p46 = scmp.ne.s32.totalorder %s29, %s45
      %p47 = scmp.eq.s32.totalorder %s21, 0
      %p48 = por %p46, %p47
      %s50 = sadd.s32 %s49, 1
      %p53 = scmp.eq.s32.totalorder %s15, 1
      %p54 = scmp.ne.s32.totalorder %s49, %s51
      %p55 = scmp.eq.s32.totalorder %s15, 0
      %p56 = por %p54, %p55
      %p57 = scmp.ne.s32.totalorder %s49, %s51
      %p58 = scmp.eq.s32.totalorder %s20, 1
      %p59 = por %p57, %p58
      %p60 = scmp.ne.s32.totalorder %s51, %s52
      %p61 = scmp.eq.s32.totalorder %s20, 0
      %p62 = por %p60, %p61
      %p63 = scmp.ne.s32.totalorder %s51, %s52
      %p64 = scmp.eq.s32.totalorder %s21, 1
      %p65 = por %p63, %p64
      %p67 = scmp.ne.s32.totalorder %s52, %s66
      %p68 = scmp.eq.s32.totalorder %s21, 0
      %p69 = por %p67, %p68
      %s71 = sadd.s32 %s70, 1
      %p74 = scmp.eq.s32.totalorder %s15, 1
      %p75 = scmp.ne.s32.totalorder %s70, %s72
      %p76 = scmp.eq.s32.totalorder %s15, 0
      %p77 = por %p75, %p76
      %p78 = scmp.ne.s32.totalorder %s70, %s72
      %p79 = scmp.eq.s32.totalorder %s20, 1
      %p80 = por %p78, %p79
      %p81 = scmp.ne.s32.totalorder %s72, %s73
      %p82 = scmp.eq.s32.totalorder %s20, 0
      %p83 = por %p81, %p82
      %p84 = scmp.ne.s32.totalorder %s72, %s73
      %p85 = scmp.eq.s32.totalorder %s21, 1
      %p86 = por %p84, %p85
      %p88 = scmp.ne.s32.totalorder %s73, %s87
      %p89 = scmp.eq.s32.totalorder %s21, 0
      %p90 = por %p88, %p89
      %s92 = sadd.s32 %s91, 1
      %p95 = scmp.eq.s32.totalorder %s15, 1
      %p96 = scmp.ne.s32.totalorder %s91, %s93
      %p97 = scmp.eq.s32.totalorder %s15, 0
      %p98 = por %p96, %p97
      %p99 = scmp.ne.s32.totalorder %s91, %s93
      %p100 = scmp.eq.s32.totalorder %s20, 1
      %p101 = por %p99, %p100
      %p102 = scmp.ne.s32.totalorder %s93, %s94
      %p103 = scmp.eq.s32.totalorder %s20, 0
      %p104 = por %p102, %p103
      %p105 = scmp.ne.s32.totalorder %s93, %s94
      %p106 = scmp.eq.s32.totalorder %s21, 1
      %p107 = por %p105, %p106
      %p109 = scmp.ne.s32.totalorder %s94, %s108
      %p110 = scmp.eq.s32.totalorder %s21, 0
      %p111 = por %p109, %p110
      %s113 = sadd.s32 %s112, 1
      %p116 = scmp.eq.s32.totalorder %s15, 1
      %p117 = scmp.ne.s32.totalorder %s112, %s114
      %p118 = scmp.eq.s32.totalorder %s15, 0
      %p119 = por %p117, %p118
      %p120 = scmp.ne.s32.totalorder %s112, %s114
      %p121 = scmp.eq.s32.totalorder %s20, 1
      %p122 = por %p120, %p121
      %p123 = scmp.ne.s32.totalorder %s114, %s115
      %p124 = scmp.eq.s32.totalorder %s20, 0
      %p125 = por %p123, %p124
      %p126 = scmp.ne.s32.totalorder %s114, %s115
      %p127 = scmp.eq.s32.totalorder %s21, 1
      %p128 = por %p126, %p127
      %p130 = scmp.ne.s32.totalorder %s115, %s129
      %p131 = scmp.eq.s32.totalorder %s21, 0
      %p132 = por %p130, %p131
      %s134 = sadd.s32 %s133, 1
      %p137 = scmp.eq.s32.totalorder %s15, 1
      %p138 = scmp.ne.s32.totalorder %s133, %s135
      %p139 = scmp.eq.s32.totalorder %s15, 0
      %p140 = por %p138, %p139
      %p141 = scmp.ne.s32.totalorder %s133, %s135
      %p142 = scmp.eq.s32.totalorder %s20, 1
      %p143 = por %p141, %p142
      %p144 = scmp.ne.s32.totalorder %s135, %s136
      %p145 = scmp.eq.s32.totalorder %s20, 0
      %p146 = por %p144, %p145
      %p147 = scmp.ne.s32.totalorder %s135, %s136
      %p148 = scmp.eq.s32.totalorder %s21, 1
      %p149 = por %p147, %p148
      %p151 = scmp.ne.s32.totalorder %s136, %s150
      %p152 = scmp.eq.s32.totalorder %s21, 0
      %p153 = por %p151, %p152
      %s154 = ssub.s32 %s15, %s22
      %p155 = scmp.eq.s32.totalorder %s154, 0
      %s157 = sadd.s32 %s156, 1
      %s158 = scalar_select %p155, %s156, %s157
      %p161 = pneg %p155
      %p162 = scmp.eq.s32.totalorder %s15, 1
      %p163 = por %p161, %p162
      %p164 = scmp.ne.s32.totalorder %s156, %s159
      %p165 = scmp.eq.s32.totalorder %s15, 0
      %p166 = por %p164, %p165
      %p167 = scmp.ne.s32.totalorder %s156, %s159
      %p168 = scmp.eq.s32.totalorder %s20, 1
      %p169 = por %p167, %p168
      %p170 = scmp.ne.s32.totalorder %s159, %s160
      %p171 = scmp.eq.s32.totalorder %s20, 0
      %p172 = por %p170, %p171
      %p173 = scmp.ne.s32.totalorder %s159, %s160
      %p174 = scmp.eq.s32.totalorder %s21, 1
      %p175 = por %p173, %p174
      %p177 = scmp.ne.s32.totalorder %s160, %s176
      %p178 = scmp.eq.s32.totalorder %s21, 0
      %p179 = por %p177, %p178
      %p180 = scmp.le.s32.totalorder 1, %s15
      %p181 = scmp.lt.s32.totalorder %s15, 3
      %p182 = pnand %p180, %p181
      %p183 = pneg %p182
      // Predicated region
      $region9: #{_forward_padded.1} parent=5 // pred_check
        _
      $region10: #{_forward_padded.1} parent=5 // pred_check_branch
        %185 = sbr.rel (%p182) target = $region12
      $region11: #{_forward_padded.1} parent=5 // pred_region
        %s186 = ssub.s32 %s15, 1
        // Predicated region
        $region13: #{_forward_padded.1} parent=11 // pred_check
          %p187 = pneg %p62
        $region14: #{_forward_padded.1} parent=11 // pred_check_branch
          %189 = sbr.rel (%p187) target = $region16
        $region15: #{_forward_padded.1} parent=11 // pred_region
          _
        $region16: #{_forward_padded.1} parent=11 // pred_fallthru
          _
        // Predicated region
        $region17: #{_forward_padded.1} parent=11 // pred_check
          %p190 = pneg %p83
        $region18: #{_forward_padded.1} parent=11 // pred_check_branch
          %192 = sbr.rel (%p190) target = $region20
        $region19: #{_forward_padded.1} parent=11 // pred_region
          _
        $region20: #{_forward_padded.1} parent=11 // pred_fallthru
          _
        // Predicated region
        $region21: #{_forward_padded.1} parent=11 // pred_check
          %p193 = pneg %p104
        $region22: #{_forward_padded.1} parent=11 // pred_check_branch
          %195 = sbr.rel (%p193) target = $region24
        $region23: #{_forward_padded.1} parent=11 // pred_region
          _
        $region24: #{_forward_padded.1} parent=11 // pred_fallthru
          _
        // Predicated region
        $region25: #{_forward_padded.1} parent=11 // pred_check
          %p196 = pneg %p125
        $region26: #{_forward_padded.1} parent=11 // pred_check_branch
          %198 = sbr.rel (%p196) target = $region28
        $region27: #{_forward_padded.1} parent=11 // pred_region
          _
        $region28: #{_forward_padded.1} parent=11 // pred_fallthru
          _
        // Predicated region
        $region29: #{_forward_padded.1} parent=11 // pred_check
          %p199 = pneg %p146
        $region30: #{_forward_padded.1} parent=11 // pred_check_branch
          %201 = sbr.rel (%p199) target = $region32
        $region31: #{_forward_padded.1} parent=11 // pred_region
          _
        $region32: #{_forward_padded.1} parent=11 // pred_fallthru
          _
      $region12: #{_forward_padded.1} parent=5 // pred_fallthru
        _
      %p202 = scmp.lt.s32.totalorder %s15, 2
      // Predicated region
      $region33: #{_forward_padded.1} parent=5 // pred_check
        %p203 = pneg %p202
      $region34: #{_forward_padded.1} parent=5 // pred_check_branch
        %205 = sbr.rel (%p203) target = $region36
      $region35: #{_forward_padded.1} parent=5 // pred_region
        // Predicated region
        $region37: #{_forward_padded.1} parent=35 // pred_check
          %p206 = pneg %p35
        $region38: #{_forward_padded.1} parent=35 // pred_check_branch
          %208 = sbr.rel (%p206) target = $region40
        $region39: #{_forward_padded.1} parent=35 // pred_region
          %s209 = smul.u32 32, %s15
          %p210 = scmp.lt.s32.totalorder %s209, 63
          %s211 = scalar_select %p210, %s209, 63
          %s212 = smul.addr %s211, 8
          %s213 = scalar_lea.vmem %s0, %s212
          %s214 = smul.u32 32, %s15
        $region40: #{_forward_padded.1} parent=35 // pred_fallthru
          _
      $region36: #{_forward_padded.1} parent=5 // pred_fallthru
        _
      %p215 = scmp.le.s32.totalorder 1, %s15
      %p216 = scmp.lt.s32.totalorder %s15, 3
      %p217 = pnand %p215, %p216
      %p218 = pneg %p217
      // Predicated region
      $region41: #{_forward_padded.1} parent=5 // pred_check
        _
      $region42: #{_forward_padded.1} parent=5 // pred_check_branch
        %220 = sbr.rel (%p217) target = $region44
      $region43: #{_forward_padded.1} parent=5 // pred_region
        %s221 = ssub.s32 %s15, 1
        %s222 = smul.u32 32, %s20
        %p223 = scmp.lt.s32.totalorder %s222, 63
        %s224 = scalar_select %p223, %s222, 63
        %s225 = smul.addr %s224, 8
        %s226 = scalar_lea.vmem %s0, %s225
        %p227 = pneg %p41
        %p228 = pneg %p38
        %p229 = pneg %p62
        %p230 = pneg %p59
        %p231 = pneg %p83
        %p232 = pneg %p80
        %p233 = pneg %p104
        %p234 = pneg %p101
        %p235 = pneg %p125
        %p236 = pneg %p122
        %p237 = pneg %p146
        %p238 = pneg %p143
        %p239 = pneg %p172
        %p240 = pneg %p169
        %s241 = sand.u32 %s159, 1
        %s242 = scalar_lea.sflag [#allocation3], %s241
        %s243 = sand.u32 %s159, 1
        %s244 = smul.addr %s243, 256
        %s245 = scalar_lea.vmem [#allocation2], %s244
        %s246 = smul.u32 32, %s20
        %p247 = scmp.lt.s32.totalorder %s246, 63
        %s248 = scalar_select %p247, %s246, 63
        %s249 = smul.addr %s248, 8
        %s250 = scalar_lea.vmem %s0, %s249
        %s251 = smul.u32 32, %s20
        %s252 = smul.u32 32, %s20
        %v254 = vld [vmem:[%s250] sm:$0xff]
        %v255 = vld [vmem:[%s250 + $0x8] sm:$0xff]
        %v256 = vld [vmem:[%s250 + $0x10] sm:$0xff]
        %v257 = vld [vmem:[%s250 + $0x18] sm:$0xff]
        %v258 = vld [vmem:[%s250 + $0x20] sm:$0xff]
        %v259 = vld [vmem:[%s250 + $0x28] sm:$0xff]
        %v260 = vld [vmem:[%s250 + $0x30] sm:$0xff]
        %v261 = vld [vmem:[%s250 + $0x38] sm:$0xff]
        %v262 = vld [vmem:[%s250 + $0x40] sm:$0xff]
        %v263 = vld [vmem:[%s250 + $0x48] sm:$0xff]
        %v264 = vld [vmem:[%s250 + $0x50] sm:$0xff]
        %v265 = vld [vmem:[%s250 + $0x58] sm:$0xff]
        %v266 = vld [vmem:[%s250 + $0x60] sm:$0xff]
        %v267 = vld [vmem:[%s250 + $0x68] sm:$0xff]
        %v268 = vld [vmem:[%s250 + $0x70] sm:$0xff]
        %v269 = vld [vmem:[%s250 + $0x78] sm:$0xff]
        %v270 = vld [vmem:[%s250 + $0x80] sm:$0xff]
        %v271 = vld [vmem:[%s250 + $0x88] sm:$0xff]
        %v272 = vld [vmem:[%s250 + $0x90] sm:$0xff]
        %v273 = vld [vmem:[%s250 + $0x98] sm:$0xff]
        %v274 = vld [vmem:[%s250 + $0xa0] sm:$0xff]
        %v275 = vld [vmem:[%s250 + $0xa8] sm:$0xff]
        %v276 = vld [vmem:[%s250 + $0xb0] sm:$0xff]
        %v277 = vld [vmem:[%s250 + $0xb8] sm:$0xff]
        %v278 = vld [vmem:[%s250 + $0xc0] sm:$0xff]
        %v279 = vld [vmem:[%s250 + $0xc8] sm:$0xff]
        %v280 = vld [vmem:[%s250 + $0xd0] sm:$0xff]
        %v281 = vld [vmem:[%s250 + $0xd8] sm:$0xff]
        %v282 = vld [vmem:[%s250 + $0xe0] sm:$0xff]
        %v283 = vld [vmem:[%s250 + $0xe8] sm:$0xff]
        %v284 = vld [vmem:[%s250 + $0xf0] sm:$0xff]
        %v285 = vld [vmem:[%s250 + $0xf8] sm:$0xff]
        %v286 = vpack.c.bf16 %v255, %v254
        %v287 = vpack.c.bf16 %v257, %v256
        %v288 = vpack.c.bf16 %v259, %v258
        %v289 = vpack.c.bf16 %v261, %v260
        %v290 = vpack.c.bf16 %v263, %v262
        %v291 = vpack.c.bf16 %v265, %v264
        %v292 = vpack.c.bf16 %v267, %v266
        %v293 = vpack.c.bf16 %v269, %v268
        %v294 = vpack.c.bf16 %v271, %v270
        %v295 = vpack.c.bf16 %v273, %v272
        %v296 = vpack.c.bf16 %v275, %v274
        %v297 = vpack.c.bf16 %v277, %v276
        %v298 = vpack.c.bf16 %v279, %v278
        %v299 = vpack.c.bf16 %v281, %v280
        %v300 = vpack.c.bf16 %v283, %v282
        %v301 = vpack.c.bf16 %v285, %v284
        %v302 = vld [vmem:[%s1] sm:$0xf]
        %v303 = vld [vmem:[%s1 + $0x4] sm:$0xf]
        %v304 = vld [vmem:[%s1 + $0x8] sm:$0xf]
        %v305 = vld [vmem:[%s1 + $0xc] sm:$0xf]
        %v306 = vld [vmem:[%s2] sm:$0x1]
        %v308 = vlaneseq
        %v309 = vshrl.u32 %v308, 7
        %v310 = vsub.s32 0, %v309
        %v311 = vrot.slane %v306, %v310
        %v317 = vunpack.c.l.b16 %v302
        %v318 = vunpack.c.l.b16 %v303
        %v319 = vunpack.c.l.b16 %v304
        %v320 = vunpack.c.l.b16 %v305
        %v321 = vpack.c.b16 %v318, %v317
        %v322 = vpack.c.b16 %v320, %v319
        %vm325 = vcmask 261120
        %v327 = vsel %vm325, %v286, 0
        %v330 = vsel %vm325, %v287, 0
        %v333 = vsel %vm325, %v288, 0
        %v336 = vsel %vm325, %v289, 0
        %v339 = vsel %vm325, %v290, 0
        %v342 = vsel %vm325, %v291, 0
        %v345 = vsel %vm325, %v292, 0
        %v348 = vsel %vm325, %v293, 0
        %v351 = vsel %vm325, %v294, 0
        %v354 = vsel %vm325, %v295, 0
        %v357 = vsel %vm325, %v296, 0
        %v360 = vsel %vm325, %v297, 0
        %v363 = vsel %vm325, %v298, 0
        %v366 = vsel %vm325, %v299, 0
        %v369 = vsel %vm325, %v300, 0
        %v372 = vsel %vm325, %v301, 0
        %374 = vmatprep.subr.bf16.mxu0 0
        %375 = vmatpush1.bf16.msra.mxu0 0
        %376 = vmatprep.subr.bf16.mxu0 0
        %377 = vmatpush1.bf16.msra.mxu0 0
        %378 = vmatprep.subr.bf16.mxu0 0
        %379 = vmatpush1.bf16.msra.mxu0 0
        %380 = vmatprep.subr.bf16.mxu0 0
        %381 = vmatpush1.bf16.msra.mxu0 0
        %382 = vmatprep.subr.bf16.mxu0 0
        %383 = vmatpush1.bf16.msra.mxu0 0
        %384 = vmatprep.subr.bf16.mxu0 0
        %385 = vmatpush1.bf16.msra.mxu0 0
        %386 = vmatprep.subr.bf16.mxu0 0
        %387 = vmatpush1.bf16.msra.mxu0 %v322
        %388 = vmatprep.subr.bf16.mxu0 0
        %389 = vmatpush1.bf16.msra.mxu0 %v321
        %390 = vmatprep.subr.bf16.mxu0 0
        %391 = vmatpush2.bf16.msra.mxu0 0
        %392 = vmatprep.subr.bf16.mxu0 0
        %393 = vmatpush2.bf16.msra.mxu0 0
        %394 = vmatprep.subr.bf16.mxu0 0
        %395 = vmatpush2.bf16.msra.mxu0 0
        %396 = vmatprep.subr.bf16.mxu0 0
        %397 = vmatpush2.bf16.msra.mxu0 0
        %398 = vmatprep.subr.bf16.mxu0 0
        %399 = vmatpush2.bf16.msra.mxu0 0
        %400 = vmatprep.subr.bf16.mxu0 0
        %401 = vmatpush2.bf16.msra.mxu0 0
        %402 = vmatprep.subr.bf16.mxu0 0
        %403 = vmatpush2.bf16.msra.mxu0 0
        %404 = vmatprep.subr.bf16.mxu0 0
        %405 = vmatpush2.bf16.msra.mxu0 0
        %406 = vmatprep.mubr.bf16.mxu0 0
        %407 = vmatmul.mubr.bf16.gmra.mxu0 %v327
        %v408 = vpop.f32.mrf.mxu0
        %v409 = vadd.f32 %v311, %v408
        %v410 = vpop.f32.mrf.mxu0
        %v411 = vpop.f32.mrf.mxu0
        %v412 = vadd.f32 %v311, %v411
        %v413 = vpop.f32.mrf.mxu0
        %414 = vmatprep.mubr.bf16.mxu0 0
        %415 = vmatmul.mubr.bf16.gmra.mxu0 %v330
        %v416 = vpop.f32.mrf.mxu0
        %v417 = vadd.f32 %v311, %v416
        %v418 = vpop.f32.mrf.mxu0
        %v419 = vpop.f32.mrf.mxu0
        %v420 = vadd.f32 %v311, %v419
        %v421 = vpop.f32.mrf.mxu0
        %422 = vmatprep.mubr.bf16.mxu0 0
        %423 = vmatmul.mubr.bf16.gmra.mxu0 %v333
        %v424 = vpop.f32.mrf.mxu0
        %v425 = vadd.f32 %v311, %v424
        %v426 = vpop.f32.mrf.mxu0
        %v427 = vpop.f32.mrf.mxu0
        %v428 = vadd.f32 %v311, %v427
        %v429 = vpop.f32.mrf.mxu0
        %430 = vmatprep.mubr.bf16.mxu0 0
        %431 = vmatmul.mubr.bf16.gmra.mxu0 %v336
        %v432 = vpop.f32.mrf.mxu0
        %v433 = vadd.f32 %v311, %v432
        %v434 = vpop.f32.mrf.mxu0
        %v435 = vpop.f32.mrf.mxu0
        %v436 = vadd.f32 %v311, %v435
        %v437 = vpop.f32.mrf.mxu0
        %438 = vmatprep.mubr.bf16.mxu0 0
        %439 = vmatmul.mubr.bf16.gmra.mxu0 %v339
        %v440 = vpop.f32.mrf.mxu0
        %v441 = vadd.f32 %v311, %v440
        %v442 = vpop.f32.mrf.mxu0
        %v443 = vpop.f32.mrf.mxu0
        %v444 = vadd.f32 %v311, %v443
        %v445 = vpop.f32.mrf.mxu0
        %446 = vmatprep.mubr.bf16.mxu0 0
        %447 = vmatmul.mubr.bf16.gmra.mxu0 %v342
        %v448 = vpop.f32.mrf.mxu0
        %v449 = vadd.f32 %v311, %v448
        %v450 = vpop.f32.mrf.mxu0
        %v451 = vpop.f32.mrf.mxu0
        %v452 = vadd.f32 %v311, %v451
        %v453 = vpop.f32.mrf.mxu0
        %454 = vmatprep.mubr.bf16.mxu0 0
        %455 = vmatmul.mubr.bf16.gmra.mxu0 %v345
        %v456 = vpop.f32.mrf.mxu0
        %v457 = vadd.f32 %v311, %v456
        %v458 = vpop.f32.mrf.mxu0
        %v459 = vpop.f32.mrf.mxu0
        %v460 = vadd.f32 %v311, %v459
        %v461 = vpop.f32.mrf.mxu0
        %462 = vmatprep.mubr.bf16.mxu0 0
        %463 = vmatmul.mubr.bf16.gmra.mxu0 %v348
        %v464 = vpop.f32.mrf.mxu0
        %v465 = vadd.f32 %v311, %v464
        %v466 = vpop.f32.mrf.mxu0
        %v467 = vpop.f32.mrf.mxu0
        %v468 = vadd.f32 %v311, %v467
        %v469 = vpop.f32.mrf.mxu0
        %470 = vmatprep.mubr.bf16.mxu0 0
        %471 = vmatmul.mubr.bf16.gmra.mxu0 %v351
        %v472 = vpop.f32.mrf.mxu0
        %v473 = vadd.f32 %v311, %v472
        %v474 = vpop.f32.mrf.mxu0
        %v475 = vpop.f32.mrf.mxu0
        %v476 = vadd.f32 %v311, %v475
        %v477 = vpop.f32.mrf.mxu0
        %478 = vmatprep.mubr.bf16.mxu0 0
        %479 = vmatmul.mubr.bf16.gmra.mxu0 %v354
        %v480 = vpop.f32.mrf.mxu0
        %v481 = vadd.f32 %v311, %v480
        %v482 = vpop.f32.mrf.mxu0
        %v483 = vpop.f32.mrf.mxu0
        %v484 = vadd.f32 %v311, %v483
        %v485 = vpop.f32.mrf.mxu0
        %486 = vmatprep.mubr.bf16.mxu0 0
        %487 = vmatmul.mubr.bf16.gmra.mxu0 %v357
        %v488 = vpop.f32.mrf.mxu0
        %v489 = vadd.f32 %v311, %v488
        %v490 = vpop.f32.mrf.mxu0
        %v491 = vpop.f32.mrf.mxu0
        %v492 = vadd.f32 %v311, %v491
        %v493 = vpop.f32.mrf.mxu0
        %494 = vmatprep.mubr.bf16.mxu0 0
        %495 = vmatmul.mubr.bf16.gmra.mxu0 %v360
        %v496 = vpop.f32.mrf.mxu0
        %v497 = vadd.f32 %v311, %v496
        %v498 = vpop.f32.mrf.mxu0
        %v499 = vpop.f32.mrf.mxu0
        %v500 = vadd.f32 %v311, %v499
        %v501 = vpop.f32.mrf.mxu0
        %502 = vmatprep.mubr.bf16.mxu0 0
        %503 = vmatmul.mubr.bf16.gmra.mxu0 %v363
        %v504 = vpop.f32.mrf.mxu0
        %v505 = vadd.f32 %v311, %v504
        %v506 = vpop.f32.mrf.mxu0
        %v507 = vpop.f32.mrf.mxu0
        %v508 = vadd.f32 %v311, %v507
        %v509 = vpop.f32.mrf.mxu0
        %510 = vmatprep.mubr.bf16.mxu0 0
        %511 = vmatmul.mubr.bf16.gmra.mxu0 %v366
        %v512 = vpop.f32.mrf.mxu0
        %v513 = vadd.f32 %v311, %v512
        %v514 = vpop.f32.mrf.mxu0
        %v515 = vpop.f32.mrf.mxu0
        %v516 = vadd.f32 %v311, %v515
        %v517 = vpop.f32.mrf.mxu0
        %518 = vmatprep.mubr.bf16.mxu0 0
        %519 = vmatmul.mubr.bf16.gmra.mxu0 %v369
        %v520 = vpop.f32.mrf.mxu0
        %v521 = vadd.f32 %v311, %v520
        %v522 = vpop.f32.mrf.mxu0
        %v523 = vpop.f32.mrf.mxu0
        %v524 = vadd.f32 %v311, %v523
        %v525 = vpop.f32.mrf.mxu0
        %526 = vmatprep.mubr.bf16.mxu0 0
        %527 = vmatmul.mubr.bf16.gmra.mxu0 %v372
        %v528 = vpop.f32.mrf.mxu0
        %v529 = vadd.f32 %v311, %v528
        %v530 = vpop.f32.mrf.mxu0
        %v531 = vpop.f32.mrf.mxu0
        %v532 = vadd.f32 %v311, %v531
        %v533 = vpop.f32.mrf.mxu0
        %534 = vdwg.mxu0
        %v535 = vmax.f32 %v409, 0.0
        %v536 = vmax.f32 %v412, 0.0
        %v537 = vmax.f32 %v417, 0.0
        %v538 = vmax.f32 %v420, 0.0
        %v539 = vmax.f32 %v425, 0.0
        %v540 = vmax.f32 %v428, 0.0
        %v541 = vmax.f32 %v433, 0.0
        %v542 = vmax.f32 %v436, 0.0
        %v543 = vmax.f32 %v441, 0.0
        %v544 = vmax.f32 %v444, 0.0
        %v545 = vmax.f32 %v449, 0.0
        %v546 = vmax.f32 %v452, 0.0
        %v547 = vmax.f32 %v457, 0.0
        %v548 = vmax.f32 %v460, 0.0
        %v549 = vmax.f32 %v465, 0.0
        %v550 = vmax.f32 %v468, 0.0
        %v551 = vmax.f32 %v473, 0.0
        %v552 = vmax.f32 %v476, 0.0
        %v553 = vmax.f32 %v481, 0.0
        %v554 = vmax.f32 %v484, 0.0
        %v555 = vmax.f32 %v489, 0.0
        %v556 = vmax.f32 %v492, 0.0
        %v557 = vmax.f32 %v497, 0.0
        %v558 = vmax.f32 %v500, 0.0
        %v559 = vmax.f32 %v505, 0.0
        %v560 = vmax.f32 %v508, 0.0
        %v561 = vmax.f32 %v513, 0.0
        %v562 = vmax.f32 %v516, 0.0
        %v563 = vmax.f32 %v521, 0.0
        %v564 = vmax.f32 %v524, 0.0
        %v565 = vmax.f32 %v529, 0.0
        %v566 = vmax.f32 %v532, 0.0
        %v567 = vpack.c.bf16 %v536, %v535
        %v568 = vpack.c.bf16 %v538, %v537
        %v569 = vpack.c.bf16 %v540, %v539
        %v570 = vpack.c.bf16 %v542, %v541
        %v571 = vpack.c.bf16 %v544, %v543
        %v572 = vpack.c.bf16 %v546, %v545
        %v573 = vpack.c.bf16 %v548, %v547
        %v574 = vpack.c.bf16 %v550, %v549
        %v575 = vpack.c.bf16 %v552, %v551
        %v576 = vpack.c.bf16 %v554, %v553
        %v577 = vpack.c.bf16 %v556, %v555
        %v578 = vpack.c.bf16 %v558, %v557
        %v579 = vpack.c.bf16 %v560, %v559
        %v580 = vpack.c.bf16 %v562, %v561
        %v581 = vpack.c.bf16 %v564, %v563
        %v582 = vpack.c.bf16 %v566, %v565
        %v583 = vld [vmem:[%s3] sm:$0xf]
        %v584 = vld [vmem:[%s3 + $0x4] sm:$0xf]
        %v585 = vld [vmem:[%s3 + $0x8] sm:$0xf]
        %v586 = vld [vmem:[%s3 + $0xc] sm:$0xf]
        %v587 = vld [vmem:[%s3 + $0x10] sm:$0xf]
        %v588 = vld [vmem:[%s3 + $0x14] sm:$0xf]
        %v589 = vld [vmem:[%s3 + $0x18] sm:$0xf]
        %v590 = vld [vmem:[%s3 + $0x1c] sm:$0xf]
        %v591 = vld [vmem:[%s3 + $0x20] sm:$0xf]
        %v592 = vld [vmem:[%s3 + $0x24] sm:$0xf]
        %v593 = vld [vmem:[%s3 + $0x28] sm:$0xf]
        %v594 = vld [vmem:[%s3 + $0x2c] sm:$0xf]
        %v595 = vld [vmem:[%s3 + $0x30] sm:$0xf]
        %v596 = vld [vmem:[%s3 + $0x34] sm:$0xf]
        %v597 = vld [vmem:[%s3 + $0x38] sm:$0xf]
        %v598 = vld [vmem:[%s3 + $0x3c] sm:$0xf]
        %s599 = scalar_lea.vmem %s2, 1
        %v600 = vld [vmem:[%s599] sm:$0x1]
        %v602 = vlaneseq
        %v603 = vshrl.u32 %v602, 7
        %v604 = vsub.s32 0, %v603
        %v605 = vrot.slane %v600, %v604
        %v623 = vunpack.c.l.b16 %v583
        %v624 = vunpack.c.l.b16 %v584
        %v625 = vunpack.c.l.b16 %v585
        %v626 = vunpack.c.l.b16 %v586
        %v627 = vunpack.c.l.b16 %v587
        %v628 = vunpack.c.l.b16 %v588
        %v629 = vunpack.c.l.b16 %v589
        %v630 = vunpack.c.l.b16 %v590
        %v631 = vunpack.c.l.b16 %v591
        %v632 = vunpack.c.l.b16 %v592
        %v633 = vunpack.c.l.b16 %v593
        %v634 = vunpack.c.l.b16 %v594
        %v635 = vunpack.c.l.b16 %v595
        %v636 = vunpack.c.l.b16 %v596
        %v637 = vunpack.c.l.b16 %v597
        %v638 = vunpack.c.l.b16 %v598
        %v639 = vpack.c.b16 %v624, %v623
        %v640 = vpack.c.b16 %v626, %v625
        %v641 = vpack.c.b16 %v628, %v627
        %v642 = vpack.c.b16 %v630, %v629
        %v643 = vpack.c.b16 %v632, %v631
        %v644 = vpack.c.b16 %v634, %v633
        %v645 = vpack.c.b16 %v636, %v635
        %v646 = vpack.c.b16 %v638, %v637
        %655 = vmatprep.subr.bf16.mxu0 0
        %656 = vmatpush1.bf16.msra.mxu0 %v646
        %657 = vmatprep.subr.bf16.mxu0 0
        %658 = vmatpush1.bf16.msra.mxu0 %v645
        %659 = vmatprep.subr.bf16.mxu0 0
        %660 = vmatpush1.bf16.msra.mxu0 %v644
        %661 = vmatprep.subr.bf16.mxu0 0
        %662 = vmatpush1.bf16.msra.mxu0 %v643
        %663 = vmatprep.subr.bf16.mxu0 0
        %664 = vmatpush1.bf16.msra.mxu0 %v642
        %665 = vmatprep.subr.bf16.mxu0 0
        %666 = vmatpush1.bf16.msra.mxu0 %v641
        %667 = vmatprep.subr.bf16.mxu0 0
        %668 = vmatpush1.bf16.msra.mxu0 %v640
        %669 = vmatprep.subr.bf16.mxu0 0
        %670 = vmatpush1.bf16.msra.mxu0 %v639
        %671 = vmatprep.subr.bf16.mxu0 0
        %672 = vmatpush2.bf16.msra.mxu0 0
        %673 = vmatprep.subr.bf16.mxu0 0
        %674 = vmatpush2.bf16.msra.mxu0 0
        %675 = vmatprep.subr.bf16.mxu0 0
        %676 = vmatpush2.bf16.msra.mxu0 0
        %677 = vmatprep.subr.bf16.mxu0 0
        %678 = vmatpush2.bf16.msra.mxu0 0
        %679 = vmatprep.subr.bf16.mxu0 0
        %680 = vmatpush2.bf16.msra.mxu0 0
        %681 = vmatprep.subr.bf16.mxu0 0
        %682 = vmatpush2.bf16.msra.mxu0 0
        %683 = vmatprep.subr.bf16.mxu0 0
        %684 = vmatpush2.bf16.msra.mxu0 0
        %685 = vmatprep.subr.bf16.mxu0 0
        %686 = vmatpush2.bf16.msra.mxu0 0
        %687 = vmatprep.mubr.bf16.mxu0 0
        %688 = vmatmul.mubr.bf16.gmra.mxu0 %v567
        %v689 = vpop.f32.mrf.mxu0
        %v690 = vadd.f32 %v605, %v689
        %v691 = vpop.f32.mrf.mxu0
        %v692 = vpop.f32.mrf.mxu0
        %v693 = vadd.f32 %v605, %v692
        %v694 = vpop.f32.mrf.mxu0
        %695 = vmatprep.mubr.bf16.mxu0 0
        %696 = vmatmul.mubr.bf16.gmra.mxu0 %v568
        %v697 = vpop.f32.mrf.mxu0
        %v698 = vadd.f32 %v605, %v697
        %v699 = vpop.f32.mrf.mxu0
        %v700 = vpop.f32.mrf.mxu0
        %v701 = vadd.f32 %v605, %v700
        %v702 = vpop.f32.mrf.mxu0
        %703 = vmatprep.mubr.bf16.mxu0 0
        %704 = vmatmul.mubr.bf16.gmra.mxu0 %v569
        %v705 = vpop.f32.mrf.mxu0
        %v706 = vadd.f32 %v605, %v705
        %v707 = vpop.f32.mrf.mxu0
        %v708 = vpop.f32.mrf.mxu0
        %v709 = vadd.f32 %v605, %v708
        %v710 = vpop.f32.mrf.mxu0
        %711 = vmatprep.mubr.bf16.mxu0 0
        %712 = vmatmul.mubr.bf16.gmra.mxu0 %v570
        %v713 = vpop.f32.mrf.mxu0
        %v714 = vadd.f32 %v605, %v713
        %v715 = vpop.f32.mrf.mxu0
        %v716 = vpop.f32.mrf.mxu0
        %v717 = vadd.f32 %v605, %v716
        %v718 = vpop.f32.mrf.mxu0
        %719 = vmatprep.mubr.bf16.mxu0 0
        %720 = vmatmul.mubr.bf16.gmra.mxu0 %v571
        %v721 = vpop.f32.mrf.mxu0
        %v722 = vadd.f32 %v605, %v721
        %v723 = vpop.f32.mrf.mxu0
        %v724 = vpop.f32.mrf.mxu0
        %v725 = vadd.f32 %v605, %v724
        %v726 = vpop.f32.mrf.mxu0
        %727 = vmatprep.mubr.bf16.mxu0 0
        %728 = vmatmul.mubr.bf16.gmra.mxu0 %v572
        %v729 = vpop.f32.mrf.mxu0
        %v730 = vadd.f32 %v605, %v729
        %v731 = vpop.f32.mrf.mxu0
        %v732 = vpop.f32.mrf.mxu0
        %v733 = vadd.f32 %v605, %v732
        %v734 = vpop.f32.mrf.mxu0
        %735 = vmatprep.mubr.bf16.mxu0 0
        %736 = vmatmul.mubr.bf16.gmra.mxu0 %v573
        %v737 = vpop.f32.mrf.mxu0
        %v738 = vadd.f32 %v605, %v737
        %v739 = vpop.f32.mrf.mxu0
        %v740 = vpop.f32.mrf.mxu0
        %v741 = vadd.f32 %v605, %v740
        %v742 = vpop.f32.mrf.mxu0
        %743 = vmatprep.mubr.bf16.mxu0 0
        %744 = vmatmul.mubr.bf16.gmra.mxu0 %v574
        %v745 = vpop.f32.mrf.mxu0
        %v746 = vadd.f32 %v605, %v745
        %v747 = vpop.f32.mrf.mxu0
        %v748 = vpop.f32.mrf.mxu0
        %v749 = vadd.f32 %v605, %v748
        %v750 = vpop.f32.mrf.mxu0
        %751 = vmatprep.mubr.bf16.mxu0 0
        %752 = vmatmul.mubr.bf16.gmra.mxu0 %v575
        %v753 = vpop.f32.mrf.mxu0
        %v754 = vadd.f32 %v605, %v753
        %v755 = vpop.f32.mrf.mxu0
        %v756 = vpop.f32.mrf.mxu0
        %v757 = vadd.f32 %v605, %v756
        %v758 = vpop.f32.mrf.mxu0
        %759 = vmatprep.mubr.bf16.mxu0 0
        %760 = vmatmul.mubr.bf16.gmra.mxu0 %v576
        %v761 = vpop.f32.mrf.mxu0
        %v762 = vadd.f32 %v605, %v761
        %v763 = vpop.f32.mrf.mxu0
        %v764 = vpop.f32.mrf.mxu0
        %v765 = vadd.f32 %v605, %v764
        %v766 = vpop.f32.mrf.mxu0
        %767 = vmatprep.mubr.bf16.mxu0 0
        %768 = vmatmul.mubr.bf16.gmra.mxu0 %v577
        %v769 = vpop.f32.mrf.mxu0
        %v770 = vadd.f32 %v605, %v769
        %v771 = vpop.f32.mrf.mxu0
        %v772 = vpop.f32.mrf.mxu0
        %v773 = vadd.f32 %v605, %v772
        %v774 = vpop.f32.mrf.mxu0
        %775 = vmatprep.mubr.bf16.mxu0 0
        %776 = vmatmul.mubr.bf16.gmra.mxu0 %v578
        %v777 = vpop.f32.mrf.mxu0
        %v778 = vadd.f32 %v605, %v777
        %v779 = vpop.f32.mrf.mxu0
        %v780 = vpop.f32.mrf.mxu0
        %v781 = vadd.f32 %v605, %v780
        %v782 = vpop.f32.mrf.mxu0
        %783 = vmatprep.mubr.bf16.mxu0 0
        %784 = vmatmul.mubr.bf16.gmra.mxu0 %v579
        %v785 = vpop.f32.mrf.mxu0
        %v786 = vadd.f32 %v605, %v785
        %v787 = vpop.f32.mrf.mxu0
        %v788 = vpop.f32.mrf.mxu0
        %v789 = vadd.f32 %v605, %v788
        %v790 = vpop.f32.mrf.mxu0
        %791 = vmatprep.mubr.bf16.mxu0 0
        %792 = vmatmul.mubr.bf16.gmra.mxu0 %v580
        %v793 = vpop.f32.mrf.mxu0
        %v794 = vadd.f32 %v605, %v793
        %v795 = vpop.f32.mrf.mxu0
        %v796 = vpop.f32.mrf.mxu0
        %v797 = vadd.f32 %v605, %v796
        %v798 = vpop.f32.mrf.mxu0
        %799 = vmatprep.mubr.bf16.mxu0 0
        %800 = vmatmul.mubr.bf16.gmra.mxu0 %v581
        %v801 = vpop.f32.mrf.mxu0
        %v802 = vadd.f32 %v605, %v801
        %v803 = vpop.f32.mrf.mxu0
        %v804 = vpop.f32.mrf.mxu0
        %v805 = vadd.f32 %v605, %v804
        %v806 = vpop.f32.mrf.mxu0
        %807 = vmatprep.mubr.bf16.mxu0 0
        %808 = vmatmul.mubr.bf16.gmra.mxu0 %v582
        %v809 = vpop.f32.mrf.mxu0
        %v810 = vadd.f32 %v605, %v809
        %v811 = vpop.f32.mrf.mxu0
        %v812 = vpop.f32.mrf.mxu0
        %v813 = vadd.f32 %v605, %v812
        %v814 = vpop.f32.mrf.mxu0
        %815 = vdwg.mxu0
        %v816 = vmax.f32 %v690, 0.0
        %v817 = vmax.f32 %v693, 0.0
        %v818 = vmax.f32 %v698, 0.0
        %v819 = vmax.f32 %v701, 0.0
        %v820 = vmax.f32 %v706, 0.0
        %v821 = vmax.f32 %v709, 0.0
        %v822 = vmax.f32 %v714, 0.0
        %v823 = vmax.f32 %v717, 0.0
        %v824 = vmax.f32 %v722, 0.0
        %v825 = vmax.f32 %v725, 0.0
        %v826 = vmax.f32 %v730, 0.0
        %v827 = vmax.f32 %v733, 0.0
        %v828 = vmax.f32 %v738, 0.0
        %v829 = vmax.f32 %v741, 0.0
        %v830 = vmax.f32 %v746, 0.0
        %v831 = vmax.f32 %v749, 0.0
        %v832 = vmax.f32 %v754, 0.0
        %v833 = vmax.f32 %v757, 0.0
        %v834 = vmax.f32 %v762, 0.0
        %v835 = vmax.f32 %v765, 0.0
        %v836 = vmax.f32 %v770, 0.0
        %v837 = vmax.f32 %v773, 0.0
        %v838 = vmax.f32 %v778, 0.0
        %v839 = vmax.f32 %v781, 0.0
        %v840 = vmax.f32 %v786, 0.0
        %v841 = vmax.f32 %v789, 0.0
        %v842 = vmax.f32 %v794, 0.0
        %v843 = vmax.f32 %v797, 0.0
        %v844 = vmax.f32 %v802, 0.0
        %v845 = vmax.f32 %v805, 0.0
        %v846 = vmax.f32 %v810, 0.0
        %v847 = vmax.f32 %v813, 0.0
        %v848 = vpack.c.bf16 %v817, %v816
        %v849 = vpack.c.bf16 %v819, %v818
        %v850 = vpack.c.bf16 %v821, %v820
        %v851 = vpack.c.bf16 %v823, %v822
        %v852 = vpack.c.bf16 %v825, %v824
        %v853 = vpack.c.bf16 %v827, %v826
        %v854 = vpack.c.bf16 %v829, %v828
        %v855 = vpack.c.bf16 %v831, %v830
        %v856 = vpack.c.bf16 %v833, %v832
        %v857 = vpack.c.bf16 %v835, %v834
        %v858 = vpack.c.bf16 %v837, %v836
        %v859 = vpack.c.bf16 %v839, %v838
        %v860 = vpack.c.bf16 %v841, %v840
        %v861 = vpack.c.bf16 %v843, %v842
        %v862 = vpack.c.bf16 %v845, %v844
        %v863 = vpack.c.bf16 %v847, %v846
        %s864 = scalar_lea.vmem %s3, 64
        %v865 = vld [vmem:[%s864] sm:$0xf]
        %v866 = vld [vmem:[%s864 + $0x4] sm:$0xf]
        %v867 = vld [vmem:[%s864 + $0x8] sm:$0xf]
        %v868 = vld [vmem:[%s864 + $0xc] sm:$0xf]
        %v869 = vld [vmem:[%s864 + $0x10] sm:$0xf]
        %v870 = vld [vmem:[%s864 + $0x14] sm:$0xf]
        %v871 = vld [vmem:[%s864 + $0x18] sm:$0xf]
        %v872 = vld [vmem:[%s864 + $0x1c] sm:$0xf]
        %v873 = vld [vmem:[%s864 + $0x20] sm:$0xf]
        %v874 = vld [vmem:[%s864 + $0x24] sm:$0xf]
        %v875 = vld [vmem:[%s864 + $0x28] sm:$0xf]
        %v876 = vld [vmem:[%s864 + $0x2c] sm:$0xf]
        %v877 = vld [vmem:[%s864 + $0x30] sm:$0xf]
        %v878 = vld [vmem:[%s864 + $0x34] sm:$0xf]
        %v879 = vld [vmem:[%s864 + $0x38] sm:$0xf]
        %v880 = vld [vmem:[%s864 + $0x3c] sm:$0xf]
        %s881 = scalar_lea.vmem %s2, 2
        %v882 = vld [vmem:[%s881] sm:$0x1]
        %v884 = vlaneseq
        %v885 = vshrl.u32 %v884, 7
        %v886 = vsub.s32 0, %v885
        %v887 = vrot.slane %v882, %v886
        %v905 = vunpack.c.l.b16 %v865
        %v906 = vunpack.c.l.b16 %v866
        %v907 = vunpack.c.l.b16 %v867
        %v908 = vunpack.c.l.b16 %v868
        %v909 = vunpack.c.l.b16 %v869
        %v910 = vunpack.c.l.b16 %v870
        %v911 = vunpack.c.l.b16 %v871
        %v912 = vunpack.c.l.b16 %v872
        %v913 = vunpack.c.l.b16 %v873
        %v914 = vunpack.c.l.b16 %v874
        %v915 = vunpack.c.l.b16 %v875
        %v916 = vunpack.c.l.b16 %v876
        %v917 = vunpack.c.l.b16 %v877
        %v918 = vunpack.c.l.b16 %v878
        %v919 = vunpack.c.l.b16 %v879
        %v920 = vunpack.c.l.b16 %v880
        %v921 = vpack.c.b16 %v906, %v905
        %v922 = vpack.c.b16 %v908, %v907
        %v923 = vpack.c.b16 %v910, %v909
        %v924 = vpack.c.b16 %v912, %v911
        %v925 = vpack.c.b16 %v914, %v913
        %v926 = vpack.c.b16 %v916, %v915
        %v927 = vpack.c.b16 %v918, %v917
        %v928 = vpack.c.b16 %v920, %v919
        %937 = vmatprep.subr.bf16.mxu0 0
        %938 = vmatpush1.bf16.msra.mxu0 %v928
        %939 = vmatprep.subr.bf16.mxu0 0
        %940 = vmatpush1.bf16.msra.mxu0 %v927
        %941 = vmatprep.subr.bf16.mxu0 0
        %942 = vmatpush1.bf16.msra.mxu0 %v926
        %943 = vmatprep.subr.bf16.mxu0 0
        %944 = vmatpush1.bf16.msra.mxu0 %v925
        %945 = vmatprep.subr.bf16.mxu0 0
        %946 = vmatpush1.bf16.msra.mxu0 %v924
        %947 = vmatprep.subr.bf16.mxu0 0
        %948 = vmatpush1.bf16.msra.mxu0 %v923
        %949 = vmatprep.subr.bf16.mxu0 0
        %950 = vmatpush1.bf16.msra.mxu0 %v922
        %951 = vmatprep.subr.bf16.mxu0 0
        %952 = vmatpush1.bf16.msra.mxu0 %v921
        %953 = vmatprep.subr.bf16.mxu0 0
        %954 = vmatpush2.bf16.msra.mxu0 0
        %955 = vmatprep.subr.bf16.mxu0 0
        %956 = vmatpush2.bf16.msra.mxu0 0
        %957 = vmatprep.subr.bf16.mxu0 0
        %958 = vmatpush2.bf16.msra.mxu0 0
        %959 = vmatprep.subr.bf16.mxu0 0
        %960 = vmatpush2.bf16.msra.mxu0 0
        %961 = vmatprep.subr.bf16.mxu0 0
        %962 = vmatpush2.bf16.msra.mxu0 0
        %963 = vmatprep.subr.bf16.mxu0 0
        %964 = vmatpush2.bf16.msra.mxu0 0
        %965 = vmatprep.subr.bf16.mxu0 0
        %966 = vmatpush2.bf16.msra.mxu0 0
        %967 = vmatprep.subr.bf16.mxu0 0
        %968 = vmatpush2.bf16.msra.mxu0 0
        %969 = vmatprep.mubr.bf16.mxu0 0
        %970 = vmatmul.mubr.bf16.gmra.mxu0 %v848
        %v971 = vpop.f32.mrf.mxu0
        %v972 = vadd.f32 %v887, %v971
        %v973 = vpop.f32.mrf.mxu0
        %v974 = vpop.f32.mrf.mxu0
        %v975 = vadd.f32 %v887, %v974
        %v976 = vpop.f32.mrf.mxu0
        %977 = vmatprep.mubr.bf16.mxu0 0
        %978 = vmatmul.mubr.bf16.gmra.mxu0 %v849
        %v979 = vpop.f32.mrf.mxu0
        %v980 = vadd.f32 %v887, %v979
        %v981 = vpop.f32.mrf.mxu0
        %v982 = vpop.f32.mrf.mxu0
        %v983 = vadd.f32 %v887, %v982
        %v984 = vpop.f32.mrf.mxu0
        %985 = vmatprep.mubr.bf16.mxu0 0
        %986 = vmatmul.mubr.bf16.gmra.mxu0 %v850
        %v987 = vpop.f32.mrf.mxu0
        %v988 = vadd.f32 %v887, %v987
        %v989 = vpop.f32.mrf.mxu0
        %v990 = vpop.f32.mrf.mxu0
        %v991 = vadd.f32 %v887, %v990
        %v992 = vpop.f32.mrf.mxu0
        %993 = vmatprep.mubr.bf16.mxu0 0
        %994 = vmatmul.mubr.bf16.gmra.mxu0 %v851
        %v995 = vpop.f32.mrf.mxu0
        %v996 = vadd.f32 %v887, %v995
        %v997 = vpop.f32.mrf.mxu0
        %v998 = vpop.f32.mrf.mxu0
        %v999 = vadd.f32 %v887, %v998
        %v1000 = vpop.f32.mrf.mxu0
        %1001 = vmatprep.mubr.bf16.mxu0 0
        %1002 = vmatmul.mubr.bf16.gmra.mxu0 %v852
        %v1003 = vpop.f32.mrf.mxu0
        %v1004 = vadd.f32 %v887, %v1003
        %v1005 = vpop.f32.mrf.mxu0
        %v1006 = vpop.f32.mrf.mxu0
        %v1007 = vadd.f32 %v887, %v1006
        %v1008 = vpop.f32.mrf.mxu0
        %1009 = vmatprep.mubr.bf16.mxu0 0
        %1010 = vmatmul.mubr.bf16.gmra.mxu0 %v853
        %v1011 = vpop.f32.mrf.mxu0
        %v1012 = vadd.f32 %v887, %v1011
        %v1013 = vpop.f32.mrf.mxu0
        %v1014 = vpop.f32.mrf.mxu0
        %v1015 = vadd.f32 %v887, %v1014
        %v1016 = vpop.f32.mrf.mxu0
        %1017 = vmatprep.mubr.bf16.mxu0 0
        %1018 = vmatmul.mubr.bf16.gmra.mxu0 %v854
        %v1019 = vpop.f32.mrf.mxu0
        %v1020 = vadd.f32 %v887, %v1019
        %v1021 = vpop.f32.mrf.mxu0
        %v1022 = vpop.f32.mrf.mxu0
        %v1023 = vadd.f32 %v887, %v1022
        %v1024 = vpop.f32.mrf.mxu0
        %1025 = vmatprep.mubr.bf16.mxu0 0
        %1026 = vmatmul.mubr.bf16.gmra.mxu0 %v855
        %v1027 = vpop.f32.mrf.mxu0
        %v1028 = vadd.f32 %v887, %v1027
        %v1029 = vpop.f32.mrf.mxu0
        %v1030 = vpop.f32.mrf.mxu0
        %v1031 = vadd.f32 %v887, %v1030
        %v1032 = vpop.f32.mrf.mxu0
        %1033 = vmatprep.mubr.bf16.mxu0 0
        %1034 = vmatmul.mubr.bf16.gmra.mxu0 %v856
        %v1035 = vpop.f32.mrf.mxu0
        %v1036 = vadd.f32 %v887, %v1035
        %v1037 = vpop.f32.mrf.mxu0
        %v1038 = vpop.f32.mrf.mxu0
        %v1039 = vadd.f32 %v887, %v1038
        %v1040 = vpop.f32.mrf.mxu0
        %1041 = vmatprep.mubr.bf16.mxu0 0
        %1042 = vmatmul.mubr.bf16.gmra.mxu0 %v857
        %v1043 = vpop.f32.mrf.mxu0
        %v1044 = vadd.f32 %v887, %v1043
        %v1045 = vpop.f32.mrf.mxu0
        %v1046 = vpop.f32.mrf.mxu0
        %v1047 = vadd.f32 %v887, %v1046
        %v1048 = vpop.f32.mrf.mxu0
        %1049 = vmatprep.mubr.bf16.mxu0 0
        %1050 = vmatmul.mubr.bf16.gmra.mxu0 %v858
        %v1051 = vpop.f32.mrf.mxu0
        %v1052 = vadd.f32 %v887, %v1051
        %v1053 = vpop.f32.mrf.mxu0
        %v1054 = vpop.f32.mrf.mxu0
        %v1055 = vadd.f32 %v887, %v1054
        %v1056 = vpop.f32.mrf.mxu0
        %1057 = vmatprep.mubr.bf16.mxu0 0
        %1058 = vmatmul.mubr.bf16.gmra.mxu0 %v859
        %v1059 = vpop.f32.mrf.mxu0
        %v1060 = vadd.f32 %v887, %v1059
        %v1061 = vpop.f32.mrf.mxu0
        %v1062 = vpop.f32.mrf.mxu0
        %v1063 = vadd.f32 %v887, %v1062
        %v1064 = vpop.f32.mrf.mxu0
        %1065 = vmatprep.mubr.bf16.mxu0 0
        %1066 = vmatmul.mubr.bf16.gmra.mxu0 %v860
        %v1067 = vpop.f32.mrf.mxu0
        %v1068 = vadd.f32 %v887, %v1067
        %v1069 = vpop.f32.mrf.mxu0
        %v1070 = vpop.f32.mrf.mxu0
        %v1071 = vadd.f32 %v887, %v1070
        %v1072 = vpop.f32.mrf.mxu0
        %1073 = vmatprep.mubr.bf16.mxu0 0
        %1074 = vmatmul.mubr.bf16.gmra.mxu0 %v861
        %v1075 = vpop.f32.mrf.mxu0
        %v1076 = vadd.f32 %v887, %v1075
        %v1077 = vpop.f32.mrf.mxu0
        %v1078 = vpop.f32.mrf.mxu0
        %v1079 = vadd.f32 %v887, %v1078
        %v1080 = vpop.f32.mrf.mxu0
        %1081 = vmatprep.mubr.bf16.mxu0 0
        %1082 = vmatmul.mubr.bf16.gmra.mxu0 %v862
        %v1083 = vpop.f32.mrf.mxu0
        %v1084 = vadd.f32 %v887, %v1083
        %v1085 = vpop.f32.mrf.mxu0
        %v1086 = vpop.f32.mrf.mxu0
        %v1087 = vadd.f32 %v887, %v1086
        %v1088 = vpop.f32.mrf.mxu0
        %1089 = vmatprep.mubr.bf16.mxu0 0
        %1090 = vmatmul.mubr.bf16.gmra.mxu0 %v863
        %v1091 = vpop.f32.mrf.mxu0
        %v1092 = vadd.f32 %v887, %v1091
        %v1093 = vpop.f32.mrf.mxu0
        %v1094 = vpop.f32.mrf.mxu0
        %v1095 = vadd.f32 %v887, %v1094
        %v1096 = vpop.f32.mrf.mxu0
        %1097 = vdwg.mxu0
        %v1098 = vmax.f32 %v972, 0.0
        %v1099 = vmax.f32 %v975, 0.0
        %v1100 = vmax.f32 %v980, 0.0
        %v1101 = vmax.f32 %v983, 0.0
        %v1102 = vmax.f32 %v988, 0.0
        %v1103 = vmax.f32 %v991, 0.0
        %v1104 = vmax.f32 %v996, 0.0
        %v1105 = vmax.f32 %v999, 0.0
        %v1106 = vmax.f32 %v1004, 0.0
        %v1107 = vmax.f32 %v1007, 0.0
        %v1108 = vmax.f32 %v1012, 0.0
        %v1109 = vmax.f32 %v1015, 0.0
        %v1110 = vmax.f32 %v1020, 0.0
        %v1111 = vmax.f32 %v1023, 0.0
        %v1112 = vmax.f32 %v1028, 0.0
        %v1113 = vmax.f32 %v1031, 0.0
        %v1114 = vmax.f32 %v1036, 0.0
        %v1115 = vmax.f32 %v1039, 0.0
        %v1116 = vmax.f32 %v1044, 0.0
        %v1117 = vmax.f32 %v1047, 0.0
        %v1118 = vmax.f32 %v1052, 0.0
        %v1119 = vmax.f32 %v1055, 0.0
        %v1120 = vmax.f32 %v1060, 0.0
        %v1121 = vmax.f32 %v1063, 0.0
        %v1122 = vmax.f32 %v1068, 0.0
        %v1123 = vmax.f32 %v1071, 0.0
        %v1124 = vmax.f32 %v1076, 0.0
        %v1125 = vmax.f32 %v1079, 0.0
        %v1126 = vmax.f32 %v1084, 0.0
        %v1127 = vmax.f32 %v1087, 0.0
        %v1128 = vmax.f32 %v1092, 0.0
        %v1129 = vmax.f32 %v1095, 0.0
        %v1130 = vadd.f32 %v535, %v1098
        %v1131 = vadd.f32 %v536, %v1099
        %v1132 = vadd.f32 %v537, %v1100
        %v1133 = vadd.f32 %v538, %v1101
        %v1134 = vadd.f32 %v539, %v1102
        %v1135 = vadd.f32 %v540, %v1103
        %v1136 = vadd.f32 %v541, %v1104
        %v1137 = vadd.f32 %v542, %v1105
        %v1138 = vadd.f32 %v543, %v1106
        %v1139 = vadd.f32 %v544, %v1107
        %v1140 = vadd.f32 %v545, %v1108
        %v1141 = vadd.f32 %v546, %v1109
        %v1142 = vadd.f32 %v547, %v1110
        %v1143 = vadd.f32 %v548, %v1111
        %v1144 = vadd.f32 %v549, %v1112
        %v1145 = vadd.f32 %v550, %v1113
        %v1146 = vadd.f32 %v551, %v1114
        %v1147 = vadd.f32 %v552, %v1115
        %v1148 = vadd.f32 %v553, %v1116
        %v1149 = vadd.f32 %v554, %v1117
        %v1150 = vadd.f32 %v555, %v1118
        %v1151 = vadd.f32 %v556, %v1119
        %v1152 = vadd.f32 %v557, %v1120
        %v1153 = vadd.f32 %v558, %v1121
        %v1154 = vadd.f32 %v559, %v1122
        %v1155 = vadd.f32 %v560, %v1123
        %v1156 = vadd.f32 %v561, %v1124
        %v1157 = vadd.f32 %v562, %v1125
        %v1158 = vadd.f32 %v563, %v1126
        %v1159 = vadd.f32 %v564, %v1127
        %v1160 = vadd.f32 %v565, %v1128
        %v1161 = vadd.f32 %v566, %v1129
        %v1162 = vpack.c.bf16 %v1131, %v1130
        %v1163 = vpack.c.bf16 %v1133, %v1132
        %v1164 = vpack.c.bf16 %v1135, %v1134
        %v1165 = vpack.c.bf16 %v1137, %v1136
        %v1166 = vpack.c.bf16 %v1139, %v1138
        %v1167 = vpack.c.bf16 %v1141, %v1140
        %v1168 = vpack.c.bf16 %v1143, %v1142
        %v1169 = vpack.c.bf16 %v1145, %v1144
        %v1170 = vpack.c.bf16 %v1147, %v1146
        %v1171 = vpack.c.bf16 %v1149, %v1148
        %v1172 = vpack.c.bf16 %v1151, %v1150
        %v1173 = vpack.c.bf16 %v1153, %v1152
        %v1174 = vpack.c.bf16 %v1155, %v1154
        %v1175 = vpack.c.bf16 %v1157, %v1156
        %v1176 = vpack.c.bf16 %v1159, %v1158
        %v1177 = vpack.c.bf16 %v1161, %v1160
        %s1178 = scalar_lea.vmem %s3, 128
        %v1179 = vld [vmem:[%s1178] sm:$0xf]
        %v1180 = vld [vmem:[%s1178 + $0x4] sm:$0xf]
        %v1181 = vld [vmem:[%s1178 + $0x8] sm:$0xf]
        %v1182 = vld [vmem:[%s1178 + $0xc] sm:$0xf]
        %v1183 = vld [vmem:[%s1178 + $0x10] sm:$0xf]
        %v1184 = vld [vmem:[%s1178 + $0x14] sm:$0xf]
        %v1185 = vld [vmem:[%s1178 + $0x18] sm:$0xf]
        %v1186 = vld [vmem:[%s1178 + $0x1c] sm:$0xf]
        %v1187 = vld [vmem:[%s1178 + $0x20] sm:$0xf]
        %v1188 = vld [vmem:[%s1178 + $0x24] sm:$0xf]
        %v1189 = vld [vmem:[%s1178 + $0x28] sm:$0xf]
        %v1190 = vld [vmem:[%s1178 + $0x2c] sm:$0xf]
        %v1191 = vld [vmem:[%s1178 + $0x30] sm:$0xf]
        %v1192 = vld [vmem:[%s1178 + $0x34] sm:$0xf]
        %v1193 = vld [vmem:[%s1178 + $0x38] sm:$0xf]
        %v1194 = vld [vmem:[%s1178 + $0x3c] sm:$0xf]
        %s1195 = scalar_lea.vmem %s2, 3
        %v1196 = vld [vmem:[%s1195] sm:$0x1]
        %v1198 = vlaneseq
        %v1199 = vshrl.u32 %v1198, 7
        %v1200 = vsub.s32 0, %v1199
        %v1201 = vrot.slane %v1196, %v1200
        %v1219 = vunpack.c.l.b16 %v1179
        %v1220 = vunpack.c.l.b16 %v1180
        %v1221 = vunpack.c.l.b16 %v1181
        %v1222 = vunpack.c.l.b16 %v1182
        %v1223 = vunpack.c.l.b16 %v1183
        %v1224 = vunpack.c.l.b16 %v1184
        %v1225 = vunpack.c.l.b16 %v1185
        %v1226 = vunpack.c.l.b16 %v1186
        %v1227 = vunpack.c.l.b16 %v1187
        %v1228 = vunpack.c.l.b16 %v1188
        %v1229 = vunpack.c.l.b16 %v1189
        %v1230 = vunpack.c.l.b16 %v1190
        %v1231 = vunpack.c.l.b16 %v1191
        %v1232 = vunpack.c.l.b16 %v1192
        %v1233 = vunpack.c.l.b16 %v1193
        %v1234 = vunpack.c.l.b16 %v1194
        %v1235 = vpack.c.b16 %v1220, %v1219
        %v1236 = vpack.c.b16 %v1222, %v1221
        %v1237 = vpack.c.b16 %v1224, %v1223
        %v1238 = vpack.c.b16 %v1226, %v1225
        %v1239 = vpack.c.b16 %v1228, %v1227
        %v1240 = vpack.c.b16 %v1230, %v1229
        %v1241 = vpack.c.b16 %v1232, %v1231
        %v1242 = vpack.c.b16 %v1234, %v1233
        %1251 = vmatprep.subr.bf16.mxu0 0
        %1252 = vmatpush1.bf16.msra.mxu0 %v1242
        %1253 = vmatprep.subr.bf16.mxu0 0
        %1254 = vmatpush1.bf16.msra.mxu0 %v1241
        %1255 = vmatprep.subr.bf16.mxu0 0
        %1256 = vmatpush1.bf16.msra.mxu0 %v1240
        %1257 = vmatprep.subr.bf16.mxu0 0
        %1258 = vmatpush1.bf16.msra.mxu0 %v1239
        %1259 = vmatprep.subr.bf16.mxu0 0
        %1260 = vmatpush1.bf16.msra.mxu0 %v1238
        %1261 = vmatprep.subr.bf16.mxu0 0
        %1262 = vmatpush1.bf16.msra.mxu0 %v1237
        %1263 = vmatprep.subr.bf16.mxu0 0
        %1264 = vmatpush1.bf16.msra.mxu0 %v1236
        %1265 = vmatprep.subr.bf16.mxu0 0
        %1266 = vmatpush1.bf16.msra.mxu0 %v1235
        %1267 = vmatprep.subr.bf16.mxu0 0
        %1268 = vmatpush2.bf16.msra.mxu0 0
        %1269 = vmatprep.subr.bf16.mxu0 0
        %1270 = vmatpush2.bf16.msra.mxu0 0
        %1271 = vmatprep.subr.bf16.mxu0 0
        %1272 = vmatpush2.bf16.msra.mxu0 0
        %1273 = vmatprep.subr.bf16.mxu0 0
        %1274 = vmatpush2.bf16.msra.mxu0 0
        %1275 = vmatprep.subr.bf16.mxu0 0
        %1276 = vmatpush2.bf16.msra.mxu0 0
        %1277 = vmatprep.subr.bf16.mxu0 0
        %1278 = vmatpush2.bf16.msra.mxu0 0
        %1279 = vmatprep.subr.bf16.mxu0 0
        %1280 = vmatpush2.bf16.msra.mxu0 0
        %1281 = vmatprep.subr.bf16.mxu0 0
        %1282 = vmatpush2.bf16.msra.mxu0 0
        %1283 = vmatprep.mubr.bf16.mxu0 0
        %1284 = vmatmul.mubr.bf16.gmra.mxu0 %v1162
        %v1285 = vpop.f32.mrf.mxu0
        %v1286 = vadd.f32 %v1201, %v1285
        %v1287 = vpop.f32.mrf.mxu0
        %v1288 = vpop.f32.mrf.mxu0
        %v1289 = vadd.f32 %v1201, %v1288
        %v1290 = vpop.f32.mrf.mxu0
        %1291 = vmatprep.mubr.bf16.mxu0 0
        %1292 = vmatmul.mubr.bf16.gmra.mxu0 %v1163
        %v1293 = vpop.f32.mrf.mxu0
        %v1294 = vadd.f32 %v1201, %v1293
        %v1295 = vpop.f32.mrf.mxu0
        %v1296 = vpop.f32.mrf.mxu0
        %v1297 = vadd.f32 %v1201, %v1296
        %v1298 = vpop.f32.mrf.mxu0
        %1299 = vmatprep.mubr.bf16.mxu0 0
        %1300 = vmatmul.mubr.bf16.gmra.mxu0 %v1164
        %v1301 = vpop.f32.mrf.mxu0
        %v1302 = vadd.f32 %v1201, %v1301
        %v1303 = vpop.f32.mrf.mxu0
        %v1304 = vpop.f32.mrf.mxu0
        %v1305 = vadd.f32 %v1201, %v1304
        %v1306 = vpop.f32.mrf.mxu0
        %1307 = vmatprep.mubr.bf16.mxu0 0
        %1308 = vmatmul.mubr.bf16.gmra.mxu0 %v1165
        %v1309 = vpop.f32.mrf.mxu0
        %v1310 = vadd.f32 %v1201, %v1309
        %v1311 = vpop.f32.mrf.mxu0
        %v1312 = vpop.f32.mrf.mxu0
        %v1313 = vadd.f32 %v1201, %v1312
        %v1314 = vpop.f32.mrf.mxu0
        %1315 = vmatprep.mubr.bf16.mxu0 0
        %1316 = vmatmul.mubr.bf16.gmra.mxu0 %v1166
        %v1317 = vpop.f32.mrf.mxu0
        %v1318 = vadd.f32 %v1201, %v1317
        %v1319 = vpop.f32.mrf.mxu0
        %v1320 = vpop.f32.mrf.mxu0
        %v1321 = vadd.f32 %v1201, %v1320
        %v1322 = vpop.f32.mrf.mxu0
        %1323 = vmatprep.mubr.bf16.mxu0 0
        %1324 = vmatmul.mubr.bf16.gmra.mxu0 %v1167
        %v1325 = vpop.f32.mrf.mxu0
        %v1326 = vadd.f32 %v1201, %v1325
        %v1327 = vpop.f32.mrf.mxu0
        %v1328 = vpop.f32.mrf.mxu0
        %v1329 = vadd.f32 %v1201, %v1328
        %v1330 = vpop.f32.mrf.mxu0
        %1331 = vmatprep.mubr.bf16.mxu0 0
        %1332 = vmatmul.mubr.bf16.gmra.mxu0 %v1168
        %v1333 = vpop.f32.mrf.mxu0
        %v1334 = vadd.f32 %v1201, %v1333
        %v1335 = vpop.f32.mrf.mxu0
        %v1336 = vpop.f32.mrf.mxu0
        %v1337 = vadd.f32 %v1201, %v1336
        %v1338 = vpop.f32.mrf.mxu0
        %1339 = vmatprep.mubr.bf16.mxu0 0
        %1340 = vmatmul.mubr.bf16.gmra.mxu0 %v1169
        %v1341 = vpop.f32.mrf.mxu0
        %v1342 = vadd.f32 %v1201, %v1341
        %v1343 = vpop.f32.mrf.mxu0
        %v1344 = vpop.f32.mrf.mxu0
        %v1345 = vadd.f32 %v1201, %v1344
        %v1346 = vpop.f32.mrf.mxu0
        %1347 = vmatprep.mubr.bf16.mxu0 0
        %1348 = vmatmul.mubr.bf16.gmra.mxu0 %v1170
        %v1349 = vpop.f32.mrf.mxu0
        %v1350 = vadd.f32 %v1201, %v1349
        %v1351 = vpop.f32.mrf.mxu0
        %v1352 = vpop.f32.mrf.mxu0
        %v1353 = vadd.f32 %v1201, %v1352
        %v1354 = vpop.f32.mrf.mxu0
        %1355 = vmatprep.mubr.bf16.mxu0 0
        %1356 = vmatmul.mubr.bf16.gmra.mxu0 %v1171
        %v1357 = vpop.f32.mrf.mxu0
        %v1358 = vadd.f32 %v1201, %v1357
        %v1359 = vpop.f32.mrf.mxu0
        %v1360 = vpop.f32.mrf.mxu0
        %v1361 = vadd.f32 %v1201, %v1360
        %v1362 = vpop.f32.mrf.mxu0
        %1363 = vmatprep.mubr.bf16.mxu0 0
        %1364 = vmatmul.mubr.bf16.gmra.mxu0 %v1172
        %v1365 = vpop.f32.mrf.mxu0
        %v1366 = vadd.f32 %v1201, %v1365
        %v1367 = vpop.f32.mrf.mxu0
        %v1368 = vpop.f32.mrf.mxu0
        %v1369 = vadd.f32 %v1201, %v1368
        %v1370 = vpop.f32.mrf.mxu0
        %1371 = vmatprep.mubr.bf16.mxu0 0
        %1372 = vmatmul.mubr.bf16.gmra.mxu0 %v1173
        %v1373 = vpop.f32.mrf.mxu0
        %v1374 = vadd.f32 %v1201, %v1373
        %v1375 = vpop.f32.mrf.mxu0
        %v1376 = vpop.f32.mrf.mxu0
        %v1377 = vadd.f32 %v1201, %v1376
        %v1378 = vpop.f32.mrf.mxu0
        %1379 = vmatprep.mubr.bf16.mxu0 0
        %1380 = vmatmul.mubr.bf16.gmra.mxu0 %v1174
        %v1381 = vpop.f32.mrf.mxu0
        %v1382 = vadd.f32 %v1201, %v1381
        %v1383 = vpop.f32.mrf.mxu0
        %v1384 = vpop.f32.mrf.mxu0
        %v1385 = vadd.f32 %v1201, %v1384
        %v1386 = vpop.f32.mrf.mxu0
        %1387 = vmatprep.mubr.bf16.mxu0 0
        %1388 = vmatmul.mubr.bf16.gmra.mxu0 %v1175
        %v1389 = vpop.f32.mrf.mxu0
        %v1390 = vadd.f32 %v1201, %v1389
        %v1391 = vpop.f32.mrf.mxu0
        %v1392 = vpop.f32.mrf.mxu0
        %v1393 = vadd.f32 %v1201, %v1392
        %v1394 = vpop.f32.mrf.mxu0
        %1395 = vmatprep.mubr.bf16.mxu0 0
        %1396 = vmatmul.mubr.bf16.gmra.mxu0 %v1176
        %v1397 = vpop.f32.mrf.mxu0
        %v1398 = vadd.f32 %v1201, %v1397
        %v1399 = vpop.f32.mrf.mxu0
        %v1400 = vpop.f32.mrf.mxu0
        %v1401 = vadd.f32 %v1201, %v1400
        %v1402 = vpop.f32.mrf.mxu0
        %1403 = vmatprep.mubr.bf16.mxu0 0
        %1404 = vmatmul.mubr.bf16.gmra.mxu0 %v1177
        %v1405 = vpop.f32.mrf.mxu0
        %v1406 = vadd.f32 %v1201, %v1405
        %v1407 = vpop.f32.mrf.mxu0
        %v1408 = vpop.f32.mrf.mxu0
        %v1409 = vadd.f32 %v1201, %v1408
        %v1410 = vpop.f32.mrf.mxu0
        %1411 = vdwg.mxu0
        %v1412 = vmax.f32 %v1286, 0.0
        %v1413 = vmax.f32 %v1289, 0.0
        %v1414 = vmax.f32 %v1294, 0.0
        %v1415 = vmax.f32 %v1297, 0.0
        %v1416 = vmax.f32 %v1302, 0.0
        %v1417 = vmax.f32 %v1305, 0.0
        %v1418 = vmax.f32 %v1310, 0.0
        %v1419 = vmax.f32 %v1313, 0.0
        %v1420 = vmax.f32 %v1318, 0.0
        %v1421 = vmax.f32 %v1321, 0.0
        %v1422 = vmax.f32 %v1326, 0.0
        %v1423 = vmax.f32 %v1329, 0.0
        %v1424 = vmax.f32 %v1334, 0.0
        %v1425 = vmax.f32 %v1337, 0.0
        %v1426 = vmax.f32 %v1342, 0.0
        %v1427 = vmax.f32 %v1345, 0.0
        %v1428 = vmax.f32 %v1350, 0.0
        %v1429 = vmax.f32 %v1353, 0.0
        %v1430 = vmax.f32 %v1358, 0.0
        %v1431 = vmax.f32 %v1361, 0.0
        %v1432 = vmax.f32 %v1366, 0.0
        %v1433 = vmax.f32 %v1369, 0.0
        %v1434 = vmax.f32 %v1374, 0.0
        %v1435 = vmax.f32 %v1377, 0.0
        %v1436 = vmax.f32 %v1382, 0.0
        %v1437 = vmax.f32 %v1385, 0.0
        %v1438 = vmax.f32 %v1390, 0.0
        %v1439 = vmax.f32 %v1393, 0.0
        %v1440 = vmax.f32 %v1398, 0.0
        %v1441 = vmax.f32 %v1401, 0.0
        %v1442 = vmax.f32 %v1406, 0.0
        %v1443 = vmax.f32 %v1409, 0.0
        %v1444 = vpack.c.bf16 %v1413, %v1412
        %v1445 = vpack.c.bf16 %v1415, %v1414
        %v1446 = vpack.c.bf16 %v1417, %v1416
        %v1447 = vpack.c.bf16 %v1419, %v1418
        %v1448 = vpack.c.bf16 %v1421, %v1420
        %v1449 = vpack.c.bf16 %v1423, %v1422
        %v1450 = vpack.c.bf16 %v1425, %v1424
        %v1451 = vpack.c.bf16 %v1427, %v1426
        %v1452 = vpack.c.bf16 %v1429, %v1428
        %v1453 = vpack.c.bf16 %v1431, %v1430
        %v1454 = vpack.c.bf16 %v1433, %v1432
        %v1455 = vpack.c.bf16 %v1435, %v1434
        %v1456 = vpack.c.bf16 %v1437, %v1436
        %v1457 = vpack.c.bf16 %v1439, %v1438
        %v1458 = vpack.c.bf16 %v1441, %v1440
        %v1459 = vpack.c.bf16 %v1443, %v1442
        %s1460 = scalar_lea.vmem %s3, 192
        %v1461 = vld [vmem:[%s1460] sm:$0xf]
        %v1462 = vld [vmem:[%s1460 + $0x4] sm:$0xf]
        %v1463 = vld [vmem:[%s1460 + $0x8] sm:$0xf]
        %v1464 = vld [vmem:[%s1460 + $0xc] sm:$0xf]
        %v1465 = vld [vmem:[%s1460 + $0x10] sm:$0xf]
        %v1466 = vld [vmem:[%s1460 + $0x14] sm:$0xf]
        %v1467 = vld [vmem:[%s1460 + $0x18] sm:$0xf]
        %v1468 = vld [vmem:[%s1460 + $0x1c] sm:$0xf]
        %v1469 = vld [vmem:[%s1460 + $0x20] sm:$0xf]
        %v1470 = vld [vmem:[%s1460 + $0x24] sm:$0xf]
        %v1471 = vld [vmem:[%s1460 + $0x28] sm:$0xf]
        %v1472 = vld [vmem:[%s1460 + $0x2c] sm:$0xf]
        %v1473 = vld [vmem:[%s1460 + $0x30] sm:$0xf]
        %v1474 = vld [vmem:[%s1460 + $0x34] sm:$0xf]
        %v1475 = vld [vmem:[%s1460 + $0x38] sm:$0xf]
        %v1476 = vld [vmem:[%s1460 + $0x3c] sm:$0xf]
        %s1477 = scalar_lea.vmem %s2, 4
        %v1478 = vld [vmem:[%s1477] sm:$0x1]
        %v1480 = vlaneseq
        %v1481 = vshrl.u32 %v1480, 7
        %v1482 = vsub.s32 0, %v1481
        %v1483 = vrot.slane %v1478, %v1482
        %v1501 = vunpack.c.l.b16 %v1461
        %v1502 = vunpack.c.l.b16 %v1462
        %v1503 = vunpack.c.l.b16 %v1463
        %v1504 = vunpack.c.l.b16 %v1464
        %v1505 = vunpack.c.l.b16 %v1465
        %v1506 = vunpack.c.l.b16 %v1466
        %v1507 = vunpack.c.l.b16 %v1467
        %v1508 = vunpack.c.l.b16 %v1468
        %v1509 = vunpack.c.l.b16 %v1469
        %v1510 = vunpack.c.l.b16 %v1470
        %v1511 = vunpack.c.l.b16 %v1471
        %v1512 = vunpack.c.l.b16 %v1472
        %v1513 = vunpack.c.l.b16 %v1473
        %v1514 = vunpack.c.l.b16 %v1474
        %v1515 = vunpack.c.l.b16 %v1475
        %v1516 = vunpack.c.l.b16 %v1476
        %v1517 = vpack.c.b16 %v1502, %v1501
        %v1518 = vpack.c.b16 %v1504, %v1503
        %v1519 = vpack.c.b16 %v1506, %v1505
        %v1520 = vpack.c.b16 %v1508, %v1507
        %v1521 = vpack.c.b16 %v1510, %v1509
        %v1522 = vpack.c.b16 %v1512, %v1511
        %v1523 = vpack.c.b16 %v1514, %v1513
        %v1524 = vpack.c.b16 %v1516, %v1515
        %1533 = vmatprep.subr.bf16.mxu0 0
        %1534 = vmatpush1.bf16.msra.mxu0 %v1524
        %1535 = vmatprep.subr.bf16.mxu0 0
        %1536 = vmatpush1.bf16.msra.mxu0 %v1523
        %1537 = vmatprep.subr.bf16.mxu0 0
        %1538 = vmatpush1.bf16.msra.mxu0 %v1522
        %1539 = vmatprep.subr.bf16.mxu0 0
        %1540 = vmatpush1.bf16.msra.mxu0 %v1521
        %1541 = vmatprep.subr.bf16.mxu0 0
        %1542 = vmatpush1.bf16.msra.mxu0 %v1520
        %1543 = vmatprep.subr.bf16.mxu0 0
        %1544 = vmatpush1.bf16.msra.mxu0 %v1519
        %1545 = vmatprep.subr.bf16.mxu0 0
        %1546 = vmatpush1.bf16.msra.mxu0 %v1518
        %1547 = vmatprep.subr.bf16.mxu0 0
        %1548 = vmatpush1.bf16.msra.mxu0 %v1517
        %1549 = vmatprep.subr.bf16.mxu0 0
        %1550 = vmatpush2.bf16.msra.mxu0 0
        %1551 = vmatprep.subr.bf16.mxu0 0
        %1552 = vmatpush2.bf16.msra.mxu0 0
        %1553 = vmatprep.subr.bf16.mxu0 0
        %1554 = vmatpush2.bf16.msra.mxu0 0
        %1555 = vmatprep.subr.bf16.mxu0 0
        %1556 = vmatpush2.bf16.msra.mxu0 0
        %1557 = vmatprep.subr.bf16.mxu0 0
        %1558 = vmatpush2.bf16.msra.mxu0 0
        %1559 = vmatprep.subr.bf16.mxu0 0
        %1560 = vmatpush2.bf16.msra.mxu0 0
        %1561 = vmatprep.subr.bf16.mxu0 0
        %1562 = vmatpush2.bf16.msra.mxu0 0
        %1563 = vmatprep.subr.bf16.mxu0 0
        %1564 = vmatpush2.bf16.msra.mxu0 0
        %1565 = vmatprep.mubr.bf16.mxu0 0
        %1566 = vmatmul.mubr.bf16.gmra.mxu0 %v1444
        %v1567 = vpop.f32.mrf.mxu0
        %v1568 = vadd.f32 %v1483, %v1567
        %v1569 = vpop.f32.mrf.mxu0
        %v1570 = vpop.f32.mrf.mxu0
        %v1571 = vadd.f32 %v1483, %v1570
        %v1572 = vpop.f32.mrf.mxu0
        %1573 = vmatprep.mubr.bf16.mxu0 0
        %1574 = vmatmul.mubr.bf16.gmra.mxu0 %v1445
        %v1575 = vpop.f32.mrf.mxu0
        %v1576 = vadd.f32 %v1483, %v1575
        %v1577 = vpop.f32.mrf.mxu0
        %v1578 = vpop.f32.mrf.mxu0
        %v1579 = vadd.f32 %v1483, %v1578
        %v1580 = vpop.f32.mrf.mxu0
        %1581 = vmatprep.mubr.bf16.mxu0 0
        %1582 = vmatmul.mubr.bf16.gmra.mxu0 %v1446
        %v1583 = vpop.f32.mrf.mxu0
        %v1584 = vadd.f32 %v1483, %v1583
        %v1585 = vpop.f32.mrf.mxu0
        %v1586 = vpop.f32.mrf.mxu0
        %v1587 = vadd.f32 %v1483, %v1586
        %v1588 = vpop.f32.mrf.mxu0
        %1589 = vmatprep.mubr.bf16.mxu0 0
        %1590 = vmatmul.mubr.bf16.gmra.mxu0 %v1447
        %v1591 = vpop.f32.mrf.mxu0
        %v1592 = vadd.f32 %v1483, %v1591
        %v1593 = vpop.f32.mrf.mxu0
        %v1594 = vpop.f32.mrf.mxu0
        %v1595 = vadd.f32 %v1483, %v1594
        %v1596 = vpop.f32.mrf.mxu0
        %1597 = vmatprep.mubr.bf16.mxu0 0
        %1598 = vmatmul.mubr.bf16.gmra.mxu0 %v1448
        %v1599 = vpop.f32.mrf.mxu0
        %v1600 = vadd.f32 %v1483, %v1599
        %v1601 = vpop.f32.mrf.mxu0
        %v1602 = vpop.f32.mrf.mxu0
        %v1603 = vadd.f32 %v1483, %v1602
        %v1604 = vpop.f32.mrf.mxu0
        %1605 = vmatprep.mubr.bf16.mxu0 0
        %1606 = vmatmul.mubr.bf16.gmra.mxu0 %v1449
        %v1607 = vpop.f32.mrf.mxu0
        %v1608 = vadd.f32 %v1483, %v1607
        %v1609 = vpop.f32.mrf.mxu0
        %v1610 = vpop.f32.mrf.mxu0
        %v1611 = vadd.f32 %v1483, %v1610
        %v1612 = vpop.f32.mrf.mxu0
        %1613 = vmatprep.mubr.bf16.mxu0 0
        %1614 = vmatmul.mubr.bf16.gmra.mxu0 %v1450
        %v1615 = vpop.f32.mrf.mxu0
        %v1616 = vadd.f32 %v1483, %v1615
        %v1617 = vpop.f32.mrf.mxu0
        %v1618 = vpop.f32.mrf.mxu0
        %v1619 = vadd.f32 %v1483, %v1618
        %v1620 = vpop.f32.mrf.mxu0
        %1621 = vmatprep.mubr.bf16.mxu0 0
        %1622 = vmatmul.mubr.bf16.gmra.mxu0 %v1451
        %v1623 = vpop.f32.mrf.mxu0
        %v1624 = vadd.f32 %v1483, %v1623
        %v1625 = vpop.f32.mrf.mxu0
        %v1626 = vpop.f32.mrf.mxu0
        %v1627 = vadd.f32 %v1483, %v1626
        %v1628 = vpop.f32.mrf.mxu0
        %1629 = vmatprep.mubr.bf16.mxu0 0
        %1630 = vmatmul.mubr.bf16.gmra.mxu0 %v1452
        %v1631 = vpop.f32.mrf.mxu0
        %v1632 = vadd.f32 %v1483, %v1631
        %v1633 = vpop.f32.mrf.mxu0
        %v1634 = vpop.f32.mrf.mxu0
        %v1635 = vadd.f32 %v1483, %v1634
        %v1636 = vpop.f32.mrf.mxu0
        %1637 = vmatprep.mubr.bf16.mxu0 0
        %1638 = vmatmul.mubr.bf16.gmra.mxu0 %v1453
        %v1639 = vpop.f32.mrf.mxu0
        %v1640 = vadd.f32 %v1483, %v1639
        %v1641 = vpop.f32.mrf.mxu0
        %v1642 = vpop.f32.mrf.mxu0
        %v1643 = vadd.f32 %v1483, %v1642
        %v1644 = vpop.f32.mrf.mxu0
        %1645 = vmatprep.mubr.bf16.mxu0 0
        %1646 = vmatmul.mubr.bf16.gmra.mxu0 %v1454
        %v1647 = vpop.f32.mrf.mxu0
        %v1648 = vadd.f32 %v1483, %v1647
        %v1649 = vpop.f32.mrf.mxu0
        %v1650 = vpop.f32.mrf.mxu0
        %v1651 = vadd.f32 %v1483, %v1650
        %v1652 = vpop.f32.mrf.mxu0
        %1653 = vmatprep.mubr.bf16.mxu0 0
        %1654 = vmatmul.mubr.bf16.gmra.mxu0 %v1455
        %v1655 = vpop.f32.mrf.mxu0
        %v1656 = vadd.f32 %v1483, %v1655
        %v1657 = vpop.f32.mrf.mxu0
        %v1658 = vpop.f32.mrf.mxu0
        %v1659 = vadd.f32 %v1483, %v1658
        %v1660 = vpop.f32.mrf.mxu0
        %1661 = vmatprep.mubr.bf16.mxu0 0
        %1662 = vmatmul.mubr.bf16.gmra.mxu0 %v1456
        %v1663 = vpop.f32.mrf.mxu0
        %v1664 = vadd.f32 %v1483, %v1663
        %v1665 = vpop.f32.mrf.mxu0
        %v1666 = vpop.f32.mrf.mxu0
        %v1667 = vadd.f32 %v1483, %v1666
        %v1668 = vpop.f32.mrf.mxu0
        %1669 = vmatprep.mubr.bf16.mxu0 0
        %1670 = vmatmul.mubr.bf16.gmra.mxu0 %v1457
        %v1671 = vpop.f32.mrf.mxu0
        %v1672 = vadd.f32 %v1483, %v1671
        %v1673 = vpop.f32.mrf.mxu0
        %v1674 = vpop.f32.mrf.mxu0
        %v1675 = vadd.f32 %v1483, %v1674
        %v1676 = vpop.f32.mrf.mxu0
        %1677 = vmatprep.mubr.bf16.mxu0 0
        %1678 = vmatmul.mubr.bf16.gmra.mxu0 %v1458
        %v1679 = vpop.f32.mrf.mxu0
        %v1680 = vadd.f32 %v1483, %v1679
        %v1681 = vpop.f32.mrf.mxu0
        %v1682 = vpop.f32.mrf.mxu0
        %v1683 = vadd.f32 %v1483, %v1682
        %v1684 = vpop.f32.mrf.mxu0
        %1685 = vmatprep.mubr.bf16.mxu0 0
        %1686 = vmatmul.mubr.bf16.gmra.mxu0 %v1459
        %v1687 = vpop.f32.mrf.mxu0
        %v1688 = vadd.f32 %v1483, %v1687
        %v1689 = vpop.f32.mrf.mxu0
        %v1690 = vpop.f32.mrf.mxu0
        %v1691 = vadd.f32 %v1483, %v1690
        %v1692 = vpop.f32.mrf.mxu0
        %1693 = vdwg.mxu0
        %v1694 = vmax.f32 %v1568, 0.0
        %v1695 = vmax.f32 %v1571, 0.0
        %v1696 = vmax.f32 %v1576, 0.0
        %v1697 = vmax.f32 %v1579, 0.0
        %v1698 = vmax.f32 %v1584, 0.0
        %v1699 = vmax.f32 %v1587, 0.0
        %v1700 = vmax.f32 %v1592, 0.0
        %v1701 = vmax.f32 %v1595, 0.0
        %v1702 = vmax.f32 %v1600, 0.0
        %v1703 = vmax.f32 %v1603, 0.0
        %v1704 = vmax.f32 %v1608, 0.0
        %v1705 = vmax.f32 %v1611, 0.0
        %v1706 = vmax.f32 %v1616, 0.0
        %v1707 = vmax.f32 %v1619, 0.0
        %v1708 = vmax.f32 %v1624, 0.0
        %v1709 = vmax.f32 %v1627, 0.0
        %v1710 = vmax.f32 %v1632, 0.0
        %v1711 = vmax.f32 %v1635, 0.0
        %v1712 = vmax.f32 %v1640, 0.0
        %v1713 = vmax.f32 %v1643, 0.0
        %v1714 = vmax.f32 %v1648, 0.0
        %v1715 = vmax.f32 %v1651, 0.0
        %v1716 = vmax.f32 %v1656, 0.0
        %v1717 = vmax.f32 %v1659, 0.0
        %v1718 = vmax.f32 %v1664, 0.0
        %v1719 = vmax.f32 %v1667, 0.0
        %v1720 = vmax.f32 %v1672, 0.0
        %v1721 = vmax.f32 %v1675, 0.0
        %v1722 = vmax.f32 %v1680, 0.0
        %v1723 = vmax.f32 %v1683, 0.0
        %v1724 = vmax.f32 %v1688, 0.0
        %v1725 = vmax.f32 %v1691, 0.0
        %v1726 = vadd.f32 %v1130, %v1694
        %v1727 = vadd.f32 %v1131, %v1695
        %v1728 = vadd.f32 %v1132, %v1696
        %v1729 = vadd.f32 %v1133, %v1697
        %v1730 = vadd.f32 %v1134, %v1698
        %v1731 = vadd.f32 %v1135, %v1699
        %v1732 = vadd.f32 %v1136, %v1700
        %v1733 = vadd.f32 %v1137, %v1701
        %v1734 = vadd.f32 %v1138, %v1702
        %v1735 = vadd.f32 %v1139, %v1703
        %v1736 = vadd.f32 %v1140, %v1704
        %v1737 = vadd.f32 %v1141, %v1705
        %v1738 = vadd.f32 %v1142, %v1706
        %v1739 = vadd.f32 %v1143, %v1707
        %v1740 = vadd.f32 %v1144, %v1708
        %v1741 = vadd.f32 %v1145, %v1709
        %v1742 = vadd.f32 %v1146, %v1710
        %v1743 = vadd.f32 %v1147, %v1711
        %v1744 = vadd.f32 %v1148, %v1712
        %v1745 = vadd.f32 %v1149, %v1713
        %v1746 = vadd.f32 %v1150, %v1714
        %v1747 = vadd.f32 %v1151, %v1715
        %v1748 = vadd.f32 %v1152, %v1716
        %v1749 = vadd.f32 %v1153, %v1717
        %v1750 = vadd.f32 %v1154, %v1718
        %v1751 = vadd.f32 %v1155, %v1719
        %v1752 = vadd.f32 %v1156, %v1720
        %v1753 = vadd.f32 %v1157, %v1721
        %v1754 = vadd.f32 %v1158, %v1722
        %v1755 = vadd.f32 %v1159, %v1723
        %v1756 = vadd.f32 %v1160, %v1724
        %v1757 = vadd.f32 %v1161, %v1725
        %v1758 = vpack.c.bf16 %v1727, %v1726
        %v1759 = vpack.c.bf16 %v1729, %v1728
        %v1760 = vpack.c.bf16 %v1731, %v1730
        %v1761 = vpack.c.bf16 %v1733, %v1732
        %v1762 = vpack.c.bf16 %v1735, %v1734
        %v1763 = vpack.c.bf16 %v1737, %v1736
        %v1764 = vpack.c.bf16 %v1739, %v1738
        %v1765 = vpack.c.bf16 %v1741, %v1740
        %v1766 = vpack.c.bf16 %v1743, %v1742
        %v1767 = vpack.c.bf16 %v1745, %v1744
        %v1768 = vpack.c.bf16 %v1747, %v1746
        %v1769 = vpack.c.bf16 %v1749, %v1748
        %v1770 = vpack.c.bf16 %v1751, %v1750
        %v1771 = vpack.c.bf16 %v1753, %v1752
        %v1772 = vpack.c.bf16 %v1755, %v1754
        %v1773 = vpack.c.bf16 %v1757, %v1756
        %v1774 = vld [vmem:[%s4] sm:$0xf]
        %v1775 = vld [vmem:[%s4 + $0x4] sm:$0xf]
        %v1776 = vld [vmem:[%s4 + $0x8] sm:$0xf]
        %v1777 = vld [vmem:[%s4 + $0xc] sm:$0xf]
        %v1778 = vld [vmem:[%s4 + $0x10] sm:$0xf]
        %v1779 = vld [vmem:[%s4 + $0x14] sm:$0xf]
        %v1780 = vld [vmem:[%s4 + $0x18] sm:$0xf]
        %v1781 = vld [vmem:[%s4 + $0x1c] sm:$0xf]
        %v1782 = vld [vmem:[%s4 + $0x20] sm:$0xf]
        %v1783 = vld [vmem:[%s4 + $0x24] sm:$0xf]
        %v1784 = vld [vmem:[%s4 + $0x28] sm:$0xf]
        %v1785 = vld [vmem:[%s4 + $0x2c] sm:$0xf]
        %v1786 = vld [vmem:[%s4 + $0x30] sm:$0xf]
        %v1787 = vld [vmem:[%s4 + $0x34] sm:$0xf]
        %v1788 = vld [vmem:[%s4 + $0x38] sm:$0xf]
        %v1789 = vld [vmem:[%s4 + $0x3c] sm:$0xf]
        %v1790 = vld [vmem:[%s5] sm:$0x1]
        %v1792 = vlaneseq
        %v1793 = vshrl.u32 %v1792, 7
        %v1794 = vsub.s32 0, %v1793
        %v1795 = vrot.slane %v1790, %v1794
        %v1813 = vunpack.c.l.b16 %v1774
        %v1814 = vunpack.c.l.b16 %v1775
        %v1815 = vunpack.c.l.b16 %v1776
        %v1816 = vunpack.c.l.b16 %v1777
        %v1817 = vunpack.c.l.b16 %v1778
        %v1818 = vunpack.c.l.b16 %v1779
        %v1819 = vunpack.c.l.b16 %v1780
        %v1820 = vunpack.c.l.b16 %v1781
        %v1821 = vunpack.c.l.b16 %v1782
        %v1822 = vunpack.c.l.b16 %v1783
        %v1823 = vunpack.c.l.b16 %v1784
        %v1824 = vunpack.c.l.b16 %v1785
        %v1825 = vunpack.c.l.b16 %v1786
        %v1826 = vunpack.c.l.b16 %v1787
        %v1827 = vunpack.c.l.b16 %v1788
        %v1828 = vunpack.c.l.b16 %v1789
        %v1829 = vpack.c.b16 %v1814, %v1813
        %v1830 = vpack.c.b16 %v1816, %v1815
        %v1831 = vpack.c.b16 %v1818, %v1817
        %v1832 = vpack.c.b16 %v1820, %v1819
        %v1833 = vpack.c.b16 %v1822, %v1821
        %v1834 = vpack.c.b16 %v1824, %v1823
        %v1835 = vpack.c.b16 %v1826, %v1825
        %v1836 = vpack.c.b16 %v1828, %v1827
        %1845 = vmatprep.subr.bf16.mxu0 0
        %1846 = vmatpush1.bf16.msra.mxu0 %v1836
        %1847 = vmatprep.subr.bf16.mxu0 0
        %1848 = vmatpush1.bf16.msra.mxu0 %v1835
        %1849 = vmatprep.subr.bf16.mxu0 0
        %1850 = vmatpush1.bf16.msra.mxu0 %v1834
        %1851 = vmatprep.subr.bf16.mxu0 0
        %1852 = vmatpush1.bf16.msra.mxu0 %v1833
        %1853 = vmatprep.subr.bf16.mxu0 0
        %1854 = vmatpush1.bf16.msra.mxu0 %v1832
        %1855 = vmatprep.subr.bf16.mxu0 0
        %1856 = vmatpush1.bf16.msra.mxu0 %v1831
        %1857 = vmatprep.subr.bf16.mxu0 0
        %1858 = vmatpush1.bf16.msra.mxu0 %v1830
        %1859 = vmatprep.subr.bf16.mxu0 0
        %1860 = vmatpush1.bf16.msra.mxu0 %v1829
        %1861 = vmatprep.subr.bf16.mxu0 0
        %1862 = vmatpush2.bf16.msra.mxu0 0
        %1863 = vmatprep.subr.bf16.mxu0 0
        %1864 = vmatpush2.bf16.msra.mxu0 0
        %1865 = vmatprep.subr.bf16.mxu0 0
        %1866 = vmatpush2.bf16.msra.mxu0 0
        %1867 = vmatprep.subr.bf16.mxu0 0
        %1868 = vmatpush2.bf16.msra.mxu0 0
        %1869 = vmatprep.subr.bf16.mxu0 0
        %1870 = vmatpush2.bf16.msra.mxu0 0
        %1871 = vmatprep.subr.bf16.mxu0 0
        %1872 = vmatpush2.bf16.msra.mxu0 0
        %1873 = vmatprep.subr.bf16.mxu0 0
        %1874 = vmatpush2.bf16.msra.mxu0 0
        %1875 = vmatprep.subr.bf16.mxu0 0
        %1876 = vmatpush2.bf16.msra.mxu0 0
        %1877 = vmatprep.mubr.bf16.mxu0 0
        %1878 = vmatmul.mubr.bf16.gmra.mxu0 %v1758
        %v1879 = vpop.f32.mrf.mxu0
        %v1880 = vadd.f32 %v1795, %v1879
        %v1881 = vpop.f32.mrf.mxu0
        %v1882 = vpop.f32.mrf.mxu0
        %v1883 = vadd.f32 %v1795, %v1882
        %v1884 = vpop.f32.mrf.mxu0
        %1885 = vmatprep.mubr.bf16.mxu0 0
        %1886 = vmatmul.mubr.bf16.gmra.mxu0 %v1759
        %v1887 = vpop.f32.mrf.mxu0
        %v1888 = vadd.f32 %v1795, %v1887
        %v1889 = vpop.f32.mrf.mxu0
        %v1890 = vpop.f32.mrf.mxu0
        %v1891 = vadd.f32 %v1795, %v1890
        %v1892 = vpop.f32.mrf.mxu0
        %1893 = vmatprep.mubr.bf16.mxu0 0
        %1894 = vmatmul.mubr.bf16.gmra.mxu0 %v1760
        %v1895 = vpop.f32.mrf.mxu0
        %v1896 = vadd.f32 %v1795, %v1895
        %v1897 = vpop.f32.mrf.mxu0
        %v1898 = vpop.f32.mrf.mxu0
        %v1899 = vadd.f32 %v1795, %v1898
        %v1900 = vpop.f32.mrf.mxu0
        %1901 = vmatprep.mubr.bf16.mxu0 0
        %1902 = vmatmul.mubr.bf16.gmra.mxu0 %v1761
        %v1903 = vpop.f32.mrf.mxu0
        %v1904 = vadd.f32 %v1795, %v1903
        %v1905 = vpop.f32.mrf.mxu0
        %v1906 = vpop.f32.mrf.mxu0
        %v1907 = vadd.f32 %v1795, %v1906
        %v1908 = vpop.f32.mrf.mxu0
        %1909 = vmatprep.mubr.bf16.mxu0 0
        %1910 = vmatmul.mubr.bf16.gmra.mxu0 %v1762
        %v1911 = vpop.f32.mrf.mxu0
        %v1912 = vadd.f32 %v1795, %v1911
        %v1913 = vpop.f32.mrf.mxu0
        %v1914 = vpop.f32.mrf.mxu0
        %v1915 = vadd.f32 %v1795, %v1914
        %v1916 = vpop.f32.mrf.mxu0
        %1917 = vmatprep.mubr.bf16.mxu0 0
        %1918 = vmatmul.mubr.bf16.gmra.mxu0 %v1763
        %v1919 = vpop.f32.mrf.mxu0
        %v1920 = vadd.f32 %v1795, %v1919
        %v1921 = vpop.f32.mrf.mxu0
        %v1922 = vpop.f32.mrf.mxu0
        %v1923 = vadd.f32 %v1795, %v1922
        %v1924 = vpop.f32.mrf.mxu0
        %1925 = vmatprep.mubr.bf16.mxu0 0
        %1926 = vmatmul.mubr.bf16.gmra.mxu0 %v1764
        %v1927 = vpop.f32.mrf.mxu0
        %v1928 = vadd.f32 %v1795, %v1927
        %v1929 = vpop.f32.mrf.mxu0
        %v1930 = vpop.f32.mrf.mxu0
        %v1931 = vadd.f32 %v1795, %v1930
        %v1932 = vpop.f32.mrf.mxu0
        %1933 = vmatprep.mubr.bf16.mxu0 0
        %1934 = vmatmul.mubr.bf16.gmra.mxu0 %v1765
        %v1935 = vpop.f32.mrf.mxu0
        %v1936 = vadd.f32 %v1795, %v1935
        %v1937 = vpop.f32.mrf.mxu0
        %v1938 = vpop.f32.mrf.mxu0
        %v1939 = vadd.f32 %v1795, %v1938
        %v1940 = vpop.f32.mrf.mxu0
        %1941 = vmatprep.mubr.bf16.mxu0 0
        %1942 = vmatmul.mubr.bf16.gmra.mxu0 %v1766
        %v1943 = vpop.f32.mrf.mxu0
        %v1944 = vadd.f32 %v1795, %v1943
        %v1945 = vpop.f32.mrf.mxu0
        %v1946 = vpop.f32.mrf.mxu0
        %v1947 = vadd.f32 %v1795, %v1946
        %v1948 = vpop.f32.mrf.mxu0
        %1949 = vmatprep.mubr.bf16.mxu0 0
        %1950 = vmatmul.mubr.bf16.gmra.mxu0 %v1767
        %v1951 = vpop.f32.mrf.mxu0
        %v1952 = vadd.f32 %v1795, %v1951
        %v1953 = vpop.f32.mrf.mxu0
        %v1954 = vpop.f32.mrf.mxu0
        %v1955 = vadd.f32 %v1795, %v1954
        %v1956 = vpop.f32.mrf.mxu0
        %1957 = vmatprep.mubr.bf16.mxu0 0
        %1958 = vmatmul.mubr.bf16.gmra.mxu0 %v1768
        %v1959 = vpop.f32.mrf.mxu0
        %v1960 = vadd.f32 %v1795, %v1959
        %v1961 = vpop.f32.mrf.mxu0
        %v1962 = vpop.f32.mrf.mxu0
        %v1963 = vadd.f32 %v1795, %v1962
        %v1964 = vpop.f32.mrf.mxu0
        %1965 = vmatprep.mubr.bf16.mxu0 0
        %1966 = vmatmul.mubr.bf16.gmra.mxu0 %v1769
        %v1967 = vpop.f32.mrf.mxu0
        %v1968 = vadd.f32 %v1795, %v1967
        %v1969 = vpop.f32.mrf.mxu0
        %v1970 = vpop.f32.mrf.mxu0
        %v1971 = vadd.f32 %v1795, %v1970
        %v1972 = vpop.f32.mrf.mxu0
        %1973 = vmatprep.mubr.bf16.mxu0 0
        %1974 = vmatmul.mubr.bf16.gmra.mxu0 %v1770
        %v1975 = vpop.f32.mrf.mxu0
        %v1976 = vadd.f32 %v1795, %v1975
        %v1977 = vpop.f32.mrf.mxu0
        %v1978 = vpop.f32.mrf.mxu0
        %v1979 = vadd.f32 %v1795, %v1978
        %v1980 = vpop.f32.mrf.mxu0
        %1981 = vmatprep.mubr.bf16.mxu0 0
        %1982 = vmatmul.mubr.bf16.gmra.mxu0 %v1771
        %v1983 = vpop.f32.mrf.mxu0
        %v1984 = vadd.f32 %v1795, %v1983
        %v1985 = vpop.f32.mrf.mxu0
        %v1986 = vpop.f32.mrf.mxu0
        %v1987 = vadd.f32 %v1795, %v1986
        %v1988 = vpop.f32.mrf.mxu0
        %1989 = vmatprep.mubr.bf16.mxu0 0
        %1990 = vmatmul.mubr.bf16.gmra.mxu0 %v1772
        %v1991 = vpop.f32.mrf.mxu0
        %v1992 = vadd.f32 %v1795, %v1991
        %v1993 = vpop.f32.mrf.mxu0
        %v1994 = vpop.f32.mrf.mxu0
        %v1995 = vadd.f32 %v1795, %v1994
        %v1996 = vpop.f32.mrf.mxu0
        %1997 = vmatprep.mubr.bf16.mxu0 0
        %1998 = vmatmul.mubr.bf16.gmra.mxu0 %v1773
        %v1999 = vpop.f32.mrf.mxu0
        %v2000 = vadd.f32 %v1795, %v1999
        %v2001 = vpop.f32.mrf.mxu0
        %v2002 = vpop.f32.mrf.mxu0
        %v2003 = vadd.f32 %v1795, %v2002
        %v2004 = vpop.f32.mrf.mxu0
        %2005 = vdwg.mxu0
        %2006 = vst [vmem:[%s245] sm:$0xff] %v1880
        %2007 = vst [vmem:[%s245 + $0x8] sm:$0xff] %v1883
        %2008 = vst [vmem:[%s245 + $0x10] sm:$0xff] %v1888
        %2009 = vst [vmem:[%s245 + $0x18] sm:$0xff] %v1891
        %2010 = vst [vmem:[%s245 + $0x20] sm:$0xff] %v1896
        %2011 = vst [vmem:[%s245 + $0x28] sm:$0xff] %v1899
        %2012 = vst [vmem:[%s245 + $0x30] sm:$0xff] %v1904
        %2013 = vst [vmem:[%s245 + $0x38] sm:$0xff] %v1907
        %2014 = vst [vmem:[%s245 + $0x40] sm:$0xff] %v1912
        %2015 = vst [vmem:[%s245 + $0x48] sm:$0xff] %v1915
        %2016 = vst [vmem:[%s245 + $0x50] sm:$0xff] %v1920
        %2017 = vst [vmem:[%s245 + $0x58] sm:$0xff] %v1923
        %2018 = vst [vmem:[%s245 + $0x60] sm:$0xff] %v1928
        %2019 = vst [vmem:[%s245 + $0x68] sm:$0xff] %v1931
        %2020 = vst [vmem:[%s245 + $0x70] sm:$0xff] %v1936
        %2021 = vst [vmem:[%s245 + $0x78] sm:$0xff] %v1939
        %2022 = vst [vmem:[%s245 + $0x80] sm:$0xff] %v1944
        %2023 = vst [vmem:[%s245 + $0x88] sm:$0xff] %v1947
        %2024 = vst [vmem:[%s245 + $0x90] sm:$0xff] %v1952
        %2025 = vst [vmem:[%s245 + $0x98] sm:$0xff] %v1955
        %2026 = vst [vmem:[%s245 + $0xa0] sm:$0xff] %v1960
        %2027 = vst [vmem:[%s245 + $0xa8] sm:$0xff] %v1963
        %2028 = vst [vmem:[%s245 + $0xb0] sm:$0xff] %v1968
        %2029 = vst [vmem:[%s245 + $0xb8] sm:$0xff] %v1971
        %2030 = vst [vmem:[%s245 + $0xc0] sm:$0xff] %v1976
        %2031 = vst [vmem:[%s245 + $0xc8] sm:$0xff] %v1979
        %2032 = vst [vmem:[%s245 + $0xd0] sm:$0xff] %v1984
        %2033 = vst [vmem:[%s245 + $0xd8] sm:$0xff] %v1987
        %2034 = vst [vmem:[%s245 + $0xe0] sm:$0xff] %v1992
        %2035 = vst [vmem:[%s245 + $0xe8] sm:$0xff] %v1995
        %2036 = vst [vmem:[%s245 + $0xf0] sm:$0xff] %v2000
        %2037 = vst [vmem:[%s245 + $0xf8] sm:$0xff] %v2003
        %s2038 = sand.u32 %s159, 1
        %s2039 = scalar_lea.sflag [#allocation3], %s2038
        %s2040 = sand.u32 %s159, 1
        %s2041 = smul.addr %s2040, 256
        %s2042 = scalar_lea.vmem [#allocation2], %s2041
        // Predicated region
        $region45: #{_forward_padded.1} parent=43 // pred_check
          %p2043 = pneg %p169
        $region46: #{_forward_padded.1} parent=43 // pred_check_branch
          %2045 = sbr.rel (%p2043) target = $region48
        $region47: #{_forward_padded.1} parent=43 // pred_region
          %s2046 = smul.u32 32, %s20
          %s2048 = ssub.s32 4096, 4096
          %2049 = vsyncadd %s2039, %s2048
          %s2050 = smul.addr %s2046, 128
          %s2051 = scalar_lea.hbm %s6, %s2050
          %s2052 = sshll.u32 %s2042, 4
          %s2053 = int_to_ptr.vmem [resolvable:$true] %s2052
          %2058 = dma.vmem_to_hbm [thread:$0]  %s2053, 4096, %s2051, %s2039, 128, 128, 8
        $region48: #{_forward_padded.1} parent=43 // pred_fallthru
          _
      $region44: #{_forward_padded.1} parent=5 // pred_fallthru
        _
      %p2059 = scmp.le.s32.totalorder 2, %s15
      // Predicated region
      $region49: #{_forward_padded.1} parent=5 // pred_check
        %p2060 = pneg %p2059
      $region50: #{_forward_padded.1} parent=5 // pred_check_branch
        %2062 = sbr.rel (%p2060) target = $region52
      $region51: #{_forward_padded.1} parent=5 // pred_region
        %s2063 = ssub.s32 %s15, 2
        // Predicated region
        $region53: #{_forward_padded.1} parent=51 // pred_check
          %p2064 = pneg %p175
        $region54: #{_forward_padded.1} parent=51 // pred_check_branch
          %2066 = sbr.rel (%p2064) target = $region56
        $region55: #{_forward_padded.1} parent=51 // pred_region
          %s2067 = sand.u32 %s160, 1
          %s2068 = scalar_lea.sflag [#allocation3], %s2067
          %s2069 = sand.u32 %s160, 1
          %s2070 = smul.addr %s2069, 256
          %s2071 = scalar_lea.vmem [#allocation2], %s2070
          %2072 = dma.done %s2068, 4096
        $region56: #{_forward_padded.1} parent=51 // pred_fallthru
          _
      $region52: #{_forward_padded.1} parent=5 // pred_fallthru
        _
    $region6: #{_forward_padded.1} parent=1 // loop_footer
      %s19 = sadd.s32 1, %s15
    $region7: #{_forward_padded.1} parent=1 // loop_footer_branch
      %14 = sbr.rel target = $region3
    $region8: #{_forward_padded.1} parent=1 // loop_exit
      _
    %2073 = vsyncpa [#allocation3], 1
    %s2074 = scalar_lea.sflag [#allocation3], 1
    %2075 = vsyncpa %s2074, 1

</llo_original>
